<compile_context>
chip_gen: v6e
topology: v6e:2x2x1
jax: 0.10.0
libtpu: 0.0.40
codegen_flags: <defaults>
</compile_context>

<pallas_src>
import functools

import jax
import jax.numpy as jnp
from jax import lax
from jax.experimental import pallas as pl
from jax.experimental.pallas import tpu as pltpu


def _round_up(a, b):
    return (a + b - 1) // b * b


def toad_mtl_kernel(n_ref,                                   # scalar prefetch: actual N
                    h_ref, w1_ref, b1_ref, w2_ref, b2_ref,
                    wab_ref, bab_ref, wc_ref, bc_ref,
                    wch_ref, clin_ref,
                    a_raw_ref, logits_ref, y_prob_ref,
                    m_sc, l_sc, acc_sc):
    i = pl.program_id(0)
    n_tiles = pl.num_programs(0)
    tn = h_ref.shape[0]
    d = wc_ref.shape[0]

    @pl.when(i == 0)
    def _init():
        m_sc[...] = jnp.full_like(m_sc, -1e30)
        l_sc[...] = jnp.zeros_like(l_sc)
        acc_sc[...] = jnp.zeros_like(acc_sc)

    # ---- attention_net backbone: Linear -> ReLU -> Linear -> ReLU (bf16 MXU, f32 accum) ----
    h = h_ref[...]                                                       # (TN, L0) bf16
    x = jnp.dot(h, w1_ref[...], preferred_element_type=jnp.float32) + b1_ref[...]
    x = jnp.maximum(x, 0.0)
    x = jnp.dot(x.astype(jnp.bfloat16), w2_ref[...],
                preferred_element_type=jnp.float32) + b2_ref[...]
    x = jnp.maximum(x, 0.0)                                              # (TN, L1) f32

    # ---- Attn_Net_Gated: fused [Wa|Wb] matmul, then tanh/sigmoid gate, then Wc ----
    ab = jnp.dot(x.astype(jnp.bfloat16), wab_ref[...],
                 preferred_element_type=jnp.float32) + bab_ref[...]      # (TN, 2D)
    gate = jnp.tanh(ab[:, :d]) * jax.nn.sigmoid(ab[:, d:])               # (TN, D) f32
    # A as a lane-dense row: (gate @ wc)^T == wc^T @ gate^T, computed directly on the MXU.
    A = lax.dot_general(wc_ref[...], gate.astype(jnp.bfloat16),
                        (((0,), (1,)), ((), ())),
                        preferred_element_type=jnp.float32) + bc_ref[...]  # (1, TN)
    a_raw_ref[...] = A                                                   # lane-dense store

    # ---- online softmax over instances + running M accumulator ----
    col = lax.broadcasted_iota(jnp.int32, (1, tn), 1) + i * tn
    A_msk = jnp.where(col < n_ref[0], A, -1e30)                          # mask padded rows

    m_prev = m_sc[...]                                                   # (1, 1)
    m_new = jnp.maximum(m_prev, jnp.max(A_msk, axis=1, keepdims=True))   # (1, 1)
    alpha = jnp.exp(m_prev - m_new)                                      # (1, 1)
    p = jnp.exp(A_msk - m_new)                                           # (1, TN) f32
    l_sc[...] = alpha * l_sc[...] + jnp.sum(p, axis=1, keepdims=True)
    part = lax.dot_general(p, x, (((1,), (0,)), ((), ())),
                           preferred_element_type=jnp.float32)           # (1, L1)
    acc_sc[...] = alpha * acc_sc[...] + part
    m_sc[...] = m_new

    # ---- finalize on the last tile: M, classifier, softmax ----
    @pl.when(i == n_tiles - 1)
    def _finalize():
        M = acc_sc[...] * pl.reciprocal(l_sc[...], approx=True)          # (1, L1)
        logits = (jnp.dot(M.astype(jnp.bfloat16), wch_ref[...],
                          preferred_element_type=jnp.float32)
                  + clin_ref[...])                                       # (1, C), clin = tmp@Wct + b
        logits_ref[...] = logits
        lm = jnp.max(logits, axis=1, keepdims=True)
        le = jnp.exp(logits - lm)
        y_prob_ref[...] = le * pl.reciprocal(jnp.sum(le, axis=1, keepdims=True),
                                             approx=True)


def toad_mtl_forward(h, params, tmp, *, tile_n=512):
    """Same outputs as TOAD_mtl.forward (return_features=False, attention_only=False)."""
    N, L0 = h.shape
    L1 = params["w1"].shape[1]
    D = params["wa"].shape[1]
    C = params["bcls"].shape[1]

    # Tile along N: multiple of 128 so A_raw blocks are lane-dense; pad the bag.
    tn = min(tile_n, _round_up(N, 128))
    n_pad = _round_up(N, tn)
    n_tiles = n_pad // tn

    h_pad = jnp.zeros((n_pad, L0), jnp.bfloat16).at[:N].set(h.astype(jnp.bfloat16))

    bf16 = lambda a: a.astype(jnp.bfloat16)
    w1, w2 = bf16(params["w1"]), bf16(params["w2"])
    w_ab = bf16(jnp.concatenate([params["wa"], params["wb"]], axis=1))   # (L1, 2D)
    b_ab = jnp.concatenate([params["ba"], params["bb"]], axis=1)         # (1, 2D) f32
    wc, bc = bf16(params["wc"]), params["bc"]
    wch = bf16(params["wch"])
    # Hoist clinical-scalar contribution: classifier(concat([M, tmp])) == M@Wch + (tmp@Wct + b)
    clin = tmp @ params["wct"] + params["bcls"]                          # (1, C) f32

    n_actual = jnp.array([N], jnp.int32)

    const = lambda shape: pl.BlockSpec(shape, lambda i, n: (0, 0))
    cost = pl.CostEstimate(
        flops=int(n_pad * (2 * L0 * L1 + 2 * L1 * L1 + 2 * L1 * (2 * D) + 2 * D + 4 * L1)
                  + 2 * L1 * C),
        transcendentals=int(n_pad * (2 * D + 2)),
        bytes_accessed=int(h_pad.size * 2 + (w1.size + w2.size + w_ab.size + wc.size
                                             + wch.size) * 2 + n_pad * 4),
    )

    a_raw, logits, y_prob = pl.pallas_call(
        toad_mtl_kernel,
        out_shape=(jax.ShapeDtypeStruct((1, n_pad), jnp.float32),
                   jax.ShapeDtypeStruct((1, C), jnp.float32),
                   jax.ShapeDtypeStruct((1, C), jnp.float32)),
        grid_spec=pltpu.PrefetchScalarGridSpec(
            num_scalar_prefetch=1,
            grid=(n_tiles,),
            in_specs=[
                pl.BlockSpec((tn, L0), lambda i, n: (i, 0)),   # h tile: the only streamed input
                const((L0, L1)), const((1, L1)),               # w1, b1 (resident)
                const((L1, L1)), const((1, L1)),               # w2, b2
                const((L1, 2 * D)), const((1, 2 * D)),         # fused [Wa|Wb], [ba|bb]
                const((D, 1)), const((1, 1)),                  # wc, bc
                const((L1, C)), const((1, C)),                 # wch, clinical bias
            ],
            out_specs=(
                pl.BlockSpec((1, tn), lambda i, n: (0, i)),    # lane-dense A_raw
                pl.BlockSpec((1, C), lambda i, n: (0, 0)),
                pl.BlockSpec((1, C), lambda i, n: (0, 0)),
            ),
            scratch_shapes=[
                pltpu.VMEM((1, 1), jnp.float32),               # running max
                pltpu.VMEM((1, 1), jnp.float32),               # running sum
                pltpu.VMEM((1, L1), jnp.float32),              # running weighted-M accumulator
            ],
        ),
        compiler_params=pltpu.CompilerParams(
            dimension_semantics=("arbitrary",),                # reduction over the bag
            vmem_limit_bytes=32 * 1024 * 1024,                 # fits v7x's 64 MiB with headroom
        ),
        cost_estimate=cost,
    )(n_actual, h_pad, w1, params["b1"], w2, params["b2"],
      w_ab, b_ab, wc, bc, wch, clin)
    # TODO(synk): for multi-slide batches add a leading 'parallel' grid axis over bags so v7x's
    # second TensorCore is used; a single bag's reduction axis stays on one core.

    A_raw = a_raw[:, :N]                                       # (1, N), drop padding
    Y_hat = jnp.argmax(logits, axis=1).reshape(1, 1)           # torch.topk(logits, 1)[1]
    return {"logits": logits, "Y_prob": y_prob, "Y_hat": Y_hat, "A": A_raw}


def init_params(key, L0=256, L1=256, D=128, n_classes=2, n_clinical=9):
    """Deterministic synthetic init (xavier-like normal weights, zero biases)."""
    ks = jax.random.split(key, 6)

    def lin(k, fan_in, fan_out):
        w = jax.random.normal(k, (fan_in, fan_out), jnp.float32) / jnp.sqrt(float(fan_in))
        b = jnp.zeros((1, fan_out), jnp.float32)
        return w, b

    w1, b1 = lin(ks[0], L0, L1)
    w2, b2 = lin(ks[1], L1, L1)
    wa, ba = lin(ks[2], L1, D)
    wb, bb = lin(ks[3], L1, D)
    wc, bc = lin(ks[4], D, 1)
    wcls, bcls = lin(ks[5], L1 + n_clinical, n_classes)
    return dict(w1=w1, b1=b1, w2=w2, b2=b2, wa=wa, ba=ba, wb=wb, bb=bb,
                wc=wc, bc=bc, wch=wcls[:L1], wct=wcls[L1:], bcls=bcls)


def reference_forward(h, p, tmp):
    """Pure-JAX reference mirroring the PyTorch forward, with the same bf16 matmul precision
    as the kernel (bf16 operands, f32 accumulation)."""
    mm = lambda a, b: jnp.dot(a.astype(jnp.bfloat16), b.astype(jnp.bfloat16),
                              preferred_element_type=jnp.float32)
    x = jnp.maximum(mm(h, p["w1"]) + p["b1"], 0.0)
    x = jnp.maximum(mm(x, p["w2"]) + p["b2"], 0.0)
    a = jnp.tanh(mm(x, p["wa"]) + p["ba"])
    b = jax.nn.sigmoid(mm(x, p["wb"]) + p["bb"])
    A = mm(a * b, p["wc"]) + p["bc"]          # (N, 1)
    A_t = A.T                                 # (1, N)
    A_soft = jax.nn.softmax(A_t, axis=1)
    M = A_soft @ x                            # (1, L1) f32
    logits = mm(M, p["wch"]) + (tmp @ p["wct"] + p["bcls"])
    return A_t, logits, jax.nn.softmax(logits, axis=1)


if __name__ == "__main__":
    key = jax.random.PRNGKey(0)
    kh, kp = jax.random.split(key)

    # 'big' config: size = [256, 256, 128]. N chosen to exercise multi-tile streaming + padding.
    N, L0 = 777, 256
    h = jax.random.normal(kh, (N, L0), jnp.float32)
    params = init_params(kp, L0=256, L1=256, D=128, n_classes=2)

    # clinical scalars: pt, pn, pm, stage, OTOS, LCE3E, PCDHA2, METTL8P1, LINC02124
    tmp = jnp.array([[1.0, 0.0, 0.0, 2.0, 0.5, 1.2, -0.3, 0.7, 0.1]], jnp.float32)

    out = toad_mtl_forward(h, params, tmp)
    jax.block_until_ready(out)

    A_ref, logits_ref, yprob_ref = reference_forward(h, params, tmp)
    assert out["A"].shape == A_ref.shape
    assert jnp.allclose(out["A"], A_ref, atol=5e-3, rtol=5e-3)
    assert jnp.allclose(out["logits"], logits_ref, atol=5e-3, rtol=5e-3)
    assert jnp.allclose(out["Y_prob"], yprob_ref, atol=5e-3, rtol=5e-3)
    assert out["Y_hat"].shape == (1, 1)
    assert int(out["Y_hat"][0, 0]) == int(jnp.argmax(logits_ref, axis=1)[0])

    print("KERNEL_OK")
</pallas_src>

<mosaic_0001>
module attributes {stable_mosaic.version = 11 : i64} {
  func.func @toad_mtl_kernel(%arg0: i32, %arg1: memref<1xi32, #tpu.memory_space<smem>>, %arg2: memref<512x256xbf16, #tpu.memory_space<vmem>>, %arg3: memref<256x256xbf16, #tpu.memory_space<vmem>>, %arg4: memref<1x256xf32, #tpu.memory_space<vmem>>, %arg5: memref<256x256xbf16, #tpu.memory_space<vmem>>, %arg6: memref<1x256xf32, #tpu.memory_space<vmem>>, %arg7: memref<256x256xbf16, #tpu.memory_space<vmem>>, %arg8: memref<1x256xf32, #tpu.memory_space<vmem>>, %arg9: memref<128x1xbf16, #tpu.memory_space<vmem>>, %arg10: memref<1x1xf32, #tpu.memory_space<vmem>>, %arg11: memref<256x2xbf16, #tpu.memory_space<vmem>>, %arg12: memref<1x2xf32, #tpu.memory_space<vmem>>, %arg13: memref<1x512xf32, #tpu.memory_space<vmem>>, %arg14: memref<1x2xf32, #tpu.memory_space<vmem>>, %arg15: memref<1x2xf32, #tpu.memory_space<vmem>>, %arg16: memref<1x1xf32, #tpu.memory_space<vmem>>, %arg17: memref<1x1xf32, #tpu.memory_space<vmem>>, %arg18: memref<1x256xf32, #tpu.memory_space<vmem>>) attributes {dimension_semantics = [#tpu.dimension_semantics<arbitrary>], iteration_bounds = array<i64: 2>, scalar_prefetch = 1 : i64, scratch_operands = 3 : i64, tpu.core_type = #tpu.core_type<tc>, window_params = [{transform_indices = @transform_0, window_bounds = array<i64: 512, 256>}, {pipeline_mode = #tpu.pipeline_mode<synchronous>, transform_indices = @transform_1, window_bounds = array<i64: 256, 256>}, {pipeline_mode = #tpu.pipeline_mode<synchronous>, transform_indices = @transform_2, window_bounds = array<i64: 1, 256>}, {pipeline_mode = #tpu.pipeline_mode<synchronous>, transform_indices = @transform_3, window_bounds = array<i64: 256, 256>}, {pipeline_mode = #tpu.pipeline_mode<synchronous>, transform_indices = @transform_4, window_bounds = array<i64: 1, 256>}, {pipeline_mode = #tpu.pipeline_mode<synchronous>, transform_indices = @transform_5, window_bounds = array<i64: 256, 256>}, {pipeline_mode = #tpu.pipeline_mode<synchronous>, transform_indices = @transform_6, window_bounds = array<i64: 1, 256>}, {pipeline_mode = #tpu.pipeline_mode<synchronous>, transform_indices = @transform_7, window_bounds = array<i64: 128, 1>}, {pipeline_mode = #tpu.pipeline_mode<synchronous>, transform_indices = @transform_8, window_bounds = array<i64: 1, 1>}, {pipeline_mode = #tpu.pipeline_mode<synchronous>, transform_indices = @transform_9, window_bounds = array<i64: 256, 2>}, {pipeline_mode = #tpu.pipeline_mode<synchronous>, transform_indices = @transform_10, window_bounds = array<i64: 1, 2>}, {transform_indices = @transform_11, window_bounds = array<i64: 1, 512>}, {pipeline_mode = #tpu.pipeline_mode<synchronous>, transform_indices = @transform_12, window_bounds = array<i64: 1, 2>}, {pipeline_mode = #tpu.pipeline_mode<synchronous>, transform_indices = @transform_13, window_bounds = array<i64: 1, 2>}]} {
    %c0_i32 = arith.constant 0 : i32
    %0 = arith.cmpi eq, %arg0, %c0_i32 : i32
    %1 = arith.extui %0 : i1 to i32
    %c0_i32_0 = arith.constant 0 : i32
    %2 = arith.cmpi ne, %1, %c0_i32_0 : i32
    scf.if %2 {
      %cst_44 = arith.constant -1.000000e+30 : f32
      %75 = vector.broadcast %cst_44 : f32 to vector<1x1xf32>
      %c0_45 = arith.constant 0 : index
      %c0_46 = arith.constant 0 : index
      %76 = vector.load %arg16[%c0_45, %c0_46] : memref<1x1xf32, #tpu.memory_space<vmem>>, vector<1x1xf32>
      tpu.vector_store %arg16[%c0_45, %c0_46], %75 {strides = array<i32>} : memref<1x1xf32, #tpu.memory_space<vmem>>, vector<1x1xf32>,
      %cst_47 = arith.constant 0.000000e+00 : f32
      %77 = vector.broadcast %cst_47 : f32 to vector<1x1xf32>
      %c0_48 = arith.constant 0 : index
      %c0_49 = arith.constant 0 : index
      %78 = vector.load %arg17[%c0_48, %c0_49] : memref<1x1xf32, #tpu.memory_space<vmem>>, vector<1x1xf32>
      tpu.vector_store %arg17[%c0_48, %c0_49], %77 {strides = array<i32>} : memref<1x1xf32, #tpu.memory_space<vmem>>, vector<1x1xf32>,
      %cst_50 = arith.constant 0.000000e+00 : f32
      %79 = vector.broadcast %cst_50 : f32 to vector<1x256xf32>
      %c0_51 = arith.constant 0 : index
      %c0_52 = arith.constant 0 : index
      %80 = vector.load %arg18[%c0_51, %c0_52] : memref<1x256xf32, #tpu.memory_space<vmem>>, vector<1x256xf32>
      tpu.vector_store %arg18[%c0_51, %c0_52], %79 {strides = array<i32>} : memref<1x256xf32, #tpu.memory_space<vmem>>, vector<1x256xf32>,
    } else {
    }
    %c0 = arith.constant 0 : index
    %c0_1 = arith.constant 0 : index
    %3 = vector.load %arg2[%c0, %c0_1] : memref<512x256xbf16, #tpu.memory_space<vmem>>, vector<512x256xbf16>
    %c0_2 = arith.constant 0 : index
    %c0_3 = arith.constant 0 : index
    %4 = vector.load %arg3[%c0_2, %c0_3] : memref<256x256xbf16, #tpu.memory_space<vmem>>, vector<256x256xbf16>
    %cst = arith.constant dense<0.000000e+00> : vector<512x256xf32>
    %5 = tpu.matmul %3, %4, %cst {dimension_numbers = #tpu.dot_dimension_numbers<[1], [0], [0], [1], [0, 0, 1, 1], [], []>} : vector<512x256xbf16>, vector<256x256xbf16>, vector<512x256xf32> -> vector<512x256xf32>
    %c0_4 = arith.constant 0 : index
    %c0_5 = arith.constant 0 : index
    %6 = vector.load %arg4[%c0_4, %c0_5] : memref<1x256xf32, #tpu.memory_space<vmem>>, vector<1x256xf32>
    %7 = vector.broadcast %6 : vector<1x256xf32> to vector<512x256xf32>
    %8 = arith.addf %5, %7 : vector<512x256xf32>
    %cst_6 = arith.constant 0.000000e+00 : f32
    %9 = vector.broadcast %cst_6 : f32 to vector<512x256xf32>
    %10 = arith.maximumf %8, %9 : vector<512x256xf32>
    %11 = arith.truncf %10 : vector<512x256xf32> to vector<512x256xbf16>
    %c0_7 = arith.constant 0 : index
    %c0_8 = arith.constant 0 : index
    %12 = vector.load %arg5[%c0_7, %c0_8] : memref<256x256xbf16, #tpu.memory_space<vmem>>, vector<256x256xbf16>
    %cst_9 = arith.constant dense<0.000000e+00> : vector<512x256xf32>
    %13 = tpu.matmul %11, %12, %cst_9 {dimension_numbers = #tpu.dot_dimension_numbers<[1], [0], [0], [1], [0, 0, 1, 1], [], []>} : vector<512x256xbf16>, vector<256x256xbf16>, vector<512x256xf32> -> vector<512x256xf32>
    %c0_10 = arith.constant 0 : index
    %c0_11 = arith.constant 0 : index
    %14 = vector.load %arg6[%c0_10, %c0_11] : memref<1x256xf32, #tpu.memory_space<vmem>>, vector<1x256xf32>
    %15 = vector.broadcast %14 : vector<1x256xf32> to vector<512x256xf32>
    %16 = arith.addf %13, %15 : vector<512x256xf32>
    %cst_12 = arith.constant 0.000000e+00 : f32
    %17 = vector.broadcast %cst_12 : f32 to vector<512x256xf32>
    %18 = arith.maximumf %16, %17 : vector<512x256xf32>
    %19 = arith.truncf %18 : vector<512x256xf32> to vector<512x256xbf16>
    %c0_13 = arith.constant 0 : index
    %c0_14 = arith.constant 0 : index
    %20 = vector.load %arg7[%c0_13, %c0_14] : memref<256x256xbf16, #tpu.memory_space<vmem>>, vector<256x256xbf16>
    %cst_15 = arith.constant dense<0.000000e+00> : vector<512x256xf32>
    %21 = tpu.matmul %19, %20, %cst_15 {dimension_numbers = #tpu.dot_dimension_numbers<[1], [0], [0], [1], [0, 0, 1, 1], [], []>} : vector<512x256xbf16>, vector<256x256xbf16>, vector<512x256xf32> -> vector<512x256xf32>
    %c0_16 = arith.constant 0 : index
    %c0_17 = arith.constant 0 : index
    %22 = vector.load %arg8[%c0_16, %c0_17] : memref<1x256xf32, #tpu.memory_space<vmem>>, vector<1x256xf32>
    %23 = vector.broadcast %22 : vector<1x256xf32> to vector<512x256xf32>
    %24 = arith.addf %21, %23 : vector<512x256xf32>
    %25 = vector.extract_strided_slice %24 {offsets = [0, 0], sizes = [512, 128], strides = [1, 1]} : vector<512x256xf32> to vector<512x128xf32>
    %26 = math.tanh %25 : vector<512x128xf32>
    %27 = vector.extract_strided_slice %24 {offsets = [0, 128], sizes = [512, 128], strides = [1, 1]} : vector<512x256xf32> to vector<512x128xf32>
    %28 = arith.negf %27 : vector<512x128xf32>
    %29 = math.exp %28 : vector<512x128xf32>
    %cst_18 = arith.constant 1.000000e+00 : f32
    %30 = vector.broadcast %cst_18 : f32 to vector<512x128xf32>
    %31 = arith.addf %30, %29 : vector<512x128xf32>
    %32 = arith.divf %30, %31 : vector<512x128xf32>
    %33 = arith.mulf %26, %32 : vector<512x128xf32>
    %c0_19 = arith.constant 0 : index
    %c0_20 = arith.constant 0 : index
    %34 = vector.load %arg9[%c0_19, %c0_20] : memref<128x1xbf16, #tpu.memory_space<vmem>>, vector<128x1xbf16>
    %35 = arith.truncf %33 : vector<512x128xf32> to vector<512x128xbf16>
    %cst_21 = arith.constant dense<0.000000e+00> : vector<1x512xf32>
    %36 = tpu.matmul %34, %35, %cst_21 {dimension_numbers = #tpu.dot_dimension_numbers<[0], [1], [1], [0], [0, 1, 1, 0], [], []>} : vector<128x1xbf16>, vector<512x128xbf16>, vector<1x512xf32> -> vector<1x512xf32>
    %c0_22 = arith.constant 0 : index
    %c0_23 = arith.constant 0 : index
    %37 = vector.load %arg10[%c0_22, %c0_23] : memref<1x1xf32, #tpu.memory_space<vmem>>, vector<1x1xf32>
    %38 = vector.broadcast %37 : vector<1x1xf32> to vector<1x512xf32>
    %39 = arith.addf %36, %38 : vector<1x512xf32>
    %c0_24 = arith.constant 0 : index
    %c0_25 = arith.constant 0 : index
    %40 = vector.load %arg13[%c0_24, %c0_25] : memref<1x512xf32, #tpu.memory_space<vmem>>, vector<1x512xf32>
    tpu.vector_store %arg13[%c0_24, %c0_25], %39 {strides = array<i32>} : memref<1x512xf32, #tpu.memory_space<vmem>>, vector<1x512xf32>,
    %41 = tpu.iota {dimensions = array<i32: 1>} : vector<1x512xi32>
    %c512_i32 = arith.constant 512 : i32
    %42 = arith.muli %arg0, %c512_i32 : i32
    %43 = vector.broadcast %42 : i32 to vector<1x512xi32>
    %44 = arith.addi %41, %43 : vector<1x512xi32>
    %c0_26 = arith.constant 0 : index
    %45 = memref.load %arg1[%c0_26] : memref<1xi32, #tpu.memory_space<smem>>
    %46 = vector.broadcast %45 : i32 to vector<1x512xi32>
    %47 = arith.cmpi slt, %44, %46 : vector<1x512xi32>
    %cst_27 = arith.constant -1.000000e+30 : f32
    %48 = vector.broadcast %cst_27 : f32 to vector<1x512xf32>
    %49 = arith.select %47, %39, %48 : vector<1x512xi1>, vector<1x512xf32>
    %c0_28 = arith.constant 0 : index
    %c0_29 = arith.constant 0 : index
    %50 = vector.load %arg16[%c0_28, %c0_29] : memref<1x1xf32, #tpu.memory_space<vmem>>, vector<1x1xf32>
    %cst_30 = arith.constant dense<0xFF800000> : vector<1xf32>
    %51 = vector.multi_reduction <maximumf>, %49, %cst_30 [1] : vector<1x512xf32> to vector<1xf32>
    %52 = vector.shape_cast %51 : vector<1xf32> to vector<1x1xf32>
    %53 = arith.maximumf %50, %52 : vector<1x1xf32>
    %54 = arith.subf %50, %53 : vector<1x1xf32>
    %55 = math.exp %54 : vector<1x1xf32>
    %56 = vector.broadcast %53 : vector<1x1xf32> to vector<1x512xf32>
    %57 = arith.subf %49, %56 : vector<1x512xf32>
    %58 = math.exp %57 : vector<1x512xf32>
    %c0_31 = arith.constant 0 : index
    %c0_32 = arith.constant 0 : index
    %59 = vector.load %arg17[%c0_31, %c0_32] : memref<1x1xf32, #tpu.memory_space<vmem>>, vector<1x1xf32>
    %60 = arith.mulf %55, %59 : vector<1x1xf32>
    %cst_33 = arith.constant dense<0.000000e+00> : vector<1xf32>
    %61 = vector.multi_reduction <add>, %58, %cst_33 [1] : vector<1x512xf32> to vector<1xf32>
    %62 = vector.shape_cast %61 : vector<1xf32> to vector<1x1xf32>
    %63 = arith.addf %60, %62 : vector<1x1xf32>
    %c0_34 = arith.constant 0 : index
    %c0_35 = arith.constant 0 : index
    %64 = vector.load %arg17[%c0_34, %c0_35] : memref<1x1xf32, #tpu.memory_space<vmem>>, vector<1x1xf32>
    tpu.vector_store %arg17[%c0_34, %c0_35], %63 {strides = array<i32>} : memref<1x1xf32, #tpu.memory_space<vmem>>, vector<1x1xf32>,
    %cst_36 = arith.constant dense<0.000000e+00> : vector<1x256xf32>
    %65 = tpu.matmul %58, %18, %cst_36 {dimension_numbers = #tpu.dot_dimension_numbers<[1], [0], [0], [1], [0, 0, 1, 1], [], []>} : vector<1x512xf32>, vector<512x256xf32>, vector<1x256xf32> -> vector<1x256xf32>
    %c0_37 = arith.constant 0 : index
    %c0_38 = arith.constant 0 : index
    %66 = vector.load %arg18[%c0_37, %c0_38] : memref<1x256xf32, #tpu.memory_space<vmem>>, vector<1x256xf32>
    %67 = vector.broadcast %55 : vector<1x1xf32> to vector<1x256xf32>
    %68 = arith.mulf %67, %66 : vector<1x256xf32>
    %69 = arith.addf %68, %65 : vector<1x256xf32>
    %c0_39 = arith.constant 0 : index
    %c0_40 = arith.constant 0 : index
    %70 = vector.load %arg18[%c0_39, %c0_40] : memref<1x256xf32, #tpu.memory_space<vmem>>, vector<1x256xf32>
    tpu.vector_store %arg18[%c0_39, %c0_40], %69 {strides = array<i32>} : memref<1x256xf32, #tpu.memory_space<vmem>>, vector<1x256xf32>,
    %c0_41 = arith.constant 0 : index
    %c0_42 = arith.constant 0 : index
    %71 = vector.load %arg16[%c0_41, %c0_42] : memref<1x1xf32, #tpu.memory_space<vmem>>, vector<1x1xf32>
    tpu.vector_store %arg16[%c0_41, %c0_42], %53 {strides = array<i32>} : memref<1x1xf32, #tpu.memory_space<vmem>>, vector<1x1xf32>,
    %c1_i32 = arith.constant 1 : i32
    %72 = arith.cmpi eq, %arg0, %c1_i32 : i32
    %73 = arith.extui %72 : i1 to i32
    %c0_i32_43 = arith.constant 0 : i32
    %74 = arith.cmpi ne, %73, %c0_i32_43 : i32
    scf.if %74 {
      %c0_44 = arith.constant 0 : index
      %c0_45 = arith.constant 0 : index
      %75 = vector.load %arg18[%c0_44, %c0_45] : memref<1x256xf32, #tpu.memory_space<vmem>>, vector<1x256xf32>
      %c0_46 = arith.constant 0 : index
      %c0_47 = arith.constant 0 : index
      %76 = vector.load %arg17[%c0_46, %c0_47] : memref<1x1xf32, #tpu.memory_space<vmem>>, vector<1x1xf32>
      %77 = tpu.reciprocal %76 {approx = true} : vector<1x1xf32> -> vector<1x1xf32>
      %78 = vector.broadcast %77 : vector<1x1xf32> to vector<1x256xf32>
      %79 = arith.mulf %75, %78 : vector<1x256xf32>
      %80 = arith.truncf %79 : vector<1x256xf32> to vector<1x256xbf16>
      %c0_48 = arith.constant 0 : index
      %c0_49 = arith.constant 0 : index
      %81 = vector.load %arg11[%c0_48, %c0_49] : memref<256x2xbf16, #tpu.memory_space<vmem>>, vector<256x2xbf16>
      %cst_50 = arith.constant dense<0.000000e+00> : vector<1x2xf32>
      %82 = tpu.matmul %80, %81, %cst_50 {dimension_numbers = #tpu.dot_dimension_numbers<[1], [0], [0], [1], [0, 0, 1, 1], [], []>} : vector<1x256xbf16>, vector<256x2xbf16>, vector<1x2xf32> -> vector<1x2xf32>
      %c0_51 = arith.constant 0 : index
      %c0_52 = arith.constant 0 : index
      %83 = vector.load %arg12[%c0_51, %c0_52] : memref<1x2xf32, #tpu.memory_space<vmem>>, vector<1x2xf32>
      %84 = arith.addf %82, %83 : vector<1x2xf32>
      %c0_53 = arith.constant 0 : index
      %c0_54 = arith.constant 0 : index
      %85 = vector.load %arg14[%c0_53, %c0_54] : memref<1x2xf32, #tpu.memory_space<vmem>>, vector<1x2xf32>
      tpu.vector_store %arg14[%c0_53, %c0_54], %84 {strides = array<i32>} : memref<1x2xf32, #tpu.memory_space<vmem>>, vector<1x2xf32>,
      %cst_55 = arith.constant dense<0xFF800000> : vector<1xf32>
      %86 = vector.multi_reduction <maximumf>, %84, %cst_55 [1] : vector<1x2xf32> to vector<1xf32>
      %87 = vector.shape_cast %86 : vector<1xf32> to vector<1x1xf32>
      %88 = vector.broadcast %87 : vector<1x1xf32> to vector<1x2xf32>
      %89 = arith.subf %84, %88 : vector<1x2xf32>
      %90 = math.exp %89 : vector<1x2xf32>
      %cst_56 = arith.constant dense<0.000000e+00> : vector<1xf32>
      %91 = vector.multi_reduction <add>, %90, %cst_56 [1] : vector<1x2xf32> to vector<1xf32>
      %92 = vector.shape_cast %91 : vector<1xf32> to vector<1x1xf32>
      %93 = tpu.reciprocal %92 {approx = true} : vector<1x1xf32> -> vector<1x1xf32>
      %94 = vector.broadcast %93 : vector<1x1xf32> to vector<1x2xf32>
      %95 = arith.mulf %90, %94 : vector<1x2xf32>
      %c0_57 = arith.constant 0 : index
      %c0_58 = arith.constant 0 : index
      %96 = vector.load %arg15[%c0_57, %c0_58] : memref<1x2xf32, #tpu.memory_space<vmem>>, vector<1x2xf32>
      tpu.vector_store %arg15[%c0_57, %c0_58], %95 {strides = array<i32>} : memref<1x2xf32, #tpu.memory_space<vmem>>, vector<1x2xf32>,
    } else {
    }
    return
  }
  func.func @transform_0(%arg0: i32, %arg1: memref<1xi32, #tpu.memory_space<smem>>) -> (i32, i32) {
    %c0_i32 = arith.constant 0 : i32
    %c0_i32_0 = arith.constant 0 : i32
    return %arg0, %c0_i32 : i32, i32
  }
  func.func @transform_1(%arg0: i32, %arg1: memref<1xi32, #tpu.memory_space<smem>>) -> (i32, i32) {
    %c0_i32 = arith.constant 0 : i32
    %c0_i32_0 = arith.constant 0 : i32
    %c0_i32_1 = arith.constant 0 : i32
    return %c0_i32, %c0_i32_0 : i32, i32
  }
  func.func @transform_2(%arg0: i32, %arg1: memref<1xi32, #tpu.memory_space<smem>>) -> (i32, i32) {
    %c0_i32 = arith.constant 0 : i32
    %c0_i32_0 = arith.constant 0 : i32
    %c0_i32_1 = arith.constant 0 : i32
    return %c0_i32, %c0_i32_0 : i32, i32
  }
  func.func @transform_3(%arg0: i32, %arg1: memref<1xi32, #tpu.memory_space<smem>>) -> (i32, i32) {
    %c0_i32 = arith.constant 0 : i32
    %c0_i32_0 = arith.constant 0 : i32
    %c0_i32_1 = arith.constant 0 : i32
    return %c0_i32, %c0_i32_0 : i32, i32
  }
  func.func @transform_4(%arg0: i32, %arg1: memref<1xi32, #tpu.memory_space<smem>>) -> (i32, i32) {
    %c0_i32 = arith.constant 0 : i32
    %c0_i32_0 = arith.constant 0 : i32
    %c0_i32_1 = arith.constant 0 : i32
    return %c0_i32, %c0_i32_0 : i32, i32
  }
  func.func @transform_5(%arg0: i32, %arg1: memref<1xi32, #tpu.memory_space<smem>>) -> (i32, i32) {
    %c0_i32 = arith.constant 0 : i32
    %c0_i32_0 = arith.constant 0 : i32
    %c0_i32_1 = arith.constant 0 : i32
    return %c0_i32, %c0_i32_0 : i32, i32
  }
  func.func @transform_6(%arg0: i32, %arg1: memref<1xi32, #tpu.memory_space<smem>>) -> (i32, i32) {
    %c0_i32 = arith.constant 0 : i32
    %c0_i32_0 = arith.constant 0 : i32
    %c0_i32_1 = arith.constant 0 : i32
    return %c0_i32, %c0_i32_0 : i32, i32
  }
  func.func @transform_7(%arg0: i32, %arg1: memref<1xi32, #tpu.memory_space<smem>>) -> (i32, i32) {
    %c0_i32 = arith.constant 0 : i32
    %c0_i32_0 = arith.constant 0 : i32
    %c0_i32_1 = arith.constant 0 : i32
    return %c0_i32, %c0_i32_0 : i32, i32
  }
  func.func @transform_8(%arg0: i32, %arg1: memref<1xi32, #tpu.memory_space<smem>>) -> (i32, i32) {
    %c0_i32 = arith.constant 0 : i32
    %c0_i32_0 = arith.constant 0 : i32
    %c0_i32_1 = arith.constant 0 : i32
    return %c0_i32, %c0_i32_0 : i32, i32
  }
  func.func @transform_9(%arg0: i32, %arg1: memref<1xi32, #tpu.memory_space<smem>>) -> (i32, i32) {
    %c0_i32 = arith.constant 0 : i32
    %c0_i32_0 = arith.constant 0 : i32
    %c0_i32_1 = arith.constant 0 : i32
    return %c0_i32, %c0_i32_0 : i32, i32
  }
  func.func @transform_10(%arg0: i32, %arg1: memref<1xi32, #tpu.memory_space<smem>>) -> (i32, i32) {
    %c0_i32 = arith.constant 0 : i32
    %c0_i32_0 = arith.constant 0 : i32
    %c0_i32_1 = arith.constant 0 : i32
    return %c0_i32, %c0_i32_0 : i32, i32
  }
  func.func @transform_11(%arg0: i32, %arg1: memref<1xi32, #tpu.memory_space<smem>>) -> (i32, i32) {
    %c0_i32 = arith.constant 0 : i32
    %c0_i32_0 = arith.constant 0 : i32
    return %c0_i32, %arg0 : i32, i32
  }
  func.func @transform_12(%arg0: i32, %arg1: memref<1xi32, #tpu.memory_space<smem>>) -> (i32, i32) {
    %c0_i32 = arith.constant 0 : i32
    %c0_i32_0 = arith.constant 0 : i32
    %c0_i32_1 = arith.constant 0 : i32
    return %c0_i32, %c0_i32_0 : i32, i32
  }
  func.func @transform_13(%arg0: i32, %arg1: memref<1xi32, #tpu.memory_space<smem>>) -> (i32, i32) {
    %c0_i32 = arith.constant 0 : i32
    %c0_i32_0 = arith.constant 0 : i32
    %c0_i32_1 = arith.constant 0 : i32
    return %c0_i32, %c0_i32_0 : i32, i32
  }
}

</mosaic_0001>

<llo_original>
// kernel: tpu_custom_call.1
$region0: #{tpu_custom_call.1}
  #allocation0 [shape = 'u32[]', space=smem, size = 0x4, offset = 0x4, fixed_abs, tag = 'smem constant byte address 0x4 - core index']
  #allocation1 [shape = 'u32[144,128]{1,0:T(1,128)}', space=vmem, size = 0x12000, scoped, tag = 'internal scratch']
  #allocation2 [shape = 'f32[1,1]{1,0:T(1,128)}', space=vmem, size = 0x200, scoped, tag = 'scratch operand']
  #allocation3 [shape = 'f32[1,1]{1,0:T(1,128)}', space=vmem, size = 0x200, scoped, tag = 'scratch operand']
  #allocation4 [shape = 'f32[1,256]{1,0:T(1,128)}', space=vmem, size = 0x400, scoped, tag = 'scratch operand']
  #allocation5 [shape = 's32[1]{0}', space=sflag, size = 0x4, scoped, tag = 'scoped memory for tpu_custom_call.1']
  #allocation6 [shape = 's32[1]{0:T(128)S(6)}', space=smem, size = 0x200, scoped, tag = 'prefetched SMEM operand 0']
  #allocation7 [shape = 'f32[1,1]{1,0:T(1,128)S(1)}', space=vmem, size = 0x200, scoped, tag = 'scoped memory for tpu_custom_call.1']
  %s0 = inlined_call_operand.<no memory space> [shape: s32[1], index: 0, kind: input, shape index: {}]
  %s1 = inlined_call_operand.hbm [shape: bf16[1024,256], index: 1, kind: input, shape index: {}]
  %s2 = inlined_call_operand.hbm [shape: bf16[256,256], index: 2, kind: input, shape index: {}]
  %s3 = inlined_call_operand.vmem [shape: f32[1,256], index: 3, kind: input, shape index: {}]
  %s4 = inlined_call_operand.hbm [shape: bf16[256,256], index: 4, kind: input, shape index: {}]
  %s5 = inlined_call_operand.vmem [shape: f32[1,256], index: 5, kind: input, shape index: {}]
  %s6 = inlined_call_operand.hbm [shape: bf16[256,256], index: 6, kind: input, shape index: {}]
  %s7 = inlined_call_operand.vmem [shape: f32[1,256], index: 7, kind: input, shape index: {}]
  %s8 = inlined_call_operand.vmem [shape: bf16[128,1], index: 8, kind: input, shape index: {}]
  %s9 = inlined_call_operand.<no memory space> [shape: f32[1,1], index: 9, kind: input, shape index: {}]
  %s10 = inlined_call_operand.vmem [shape: bf16[256,2], index: 10, kind: input, shape index: {}]
  %s11 = inlined_call_operand.vmem [shape: f32[1,2], index: 11, kind: input, shape index: {}]
  %s12 = inlined_call_operand.hbm [shape: f32[1,1024], index: 12, kind: output, shape index: {0}]
  %s13 = inlined_call_operand.hbm [shape: f32[1,2], index: 13, kind: output, shape index: {1}]
  %s14 = inlined_call_operand.hbm [shape: f32[1,2], index: 14, kind: output, shape index: {2}]
  %15 = xla_tuple %s12, %s13, %s14
  %s16 = sld [smem:[#allocation0]]
  $region117: #{tpu_custom_call.1} parent=0
    _
  %s18 = ssub.s32 1, %s16
  %s19 = scalar_select 0, %s18, %s16
  %20 = sst [smem:[#allocation6]] %s0
  %v21 = vstv %s9
  %22 = vst [vmem:[#allocation7] sm:$0x1] %v21
  $region1: #{tpu_custom_call.1} parent=0
    #allocation8 [shape = 'u8[524288]{0}', space=vmem, size = 0x80000, scoped, tag = 'input window, operand 1']
    #allocation9 [shape = 's32[2]{0}', space=sflag, size = 0x8, scoped, tag = 'scoped memory for tpu_custom_call.1']
    #allocation10 [shape = 's32[2]{0}', space=sflag, size = 0x8, scoped, tag = 'scoped memory for tpu_custom_call.1']
    #allocation11 [shape = 'u8[131072]{0}', space=vmem, size = 0x20000, scoped, tag = 'input window, operand 2, single buffered']
    #allocation12 [shape = 's32[1]{0}', space=sflag, size = 0x4, scoped, tag = 'scoped memory for tpu_custom_call.1']
    #allocation13 [shape = 'u8[131072]{0}', space=vmem, size = 0x20000, scoped, tag = 'input window, operand 4, single buffered']
    #allocation14 [shape = 'u8[131072]{0}', space=vmem, size = 0x20000, scoped, tag = 'input window, operand 6, single buffered']
    #allocation15 [shape = 's32[1]{0}', space=sflag, size = 0x4, scoped, tag = 'scoped memory for tpu_custom_call.1']
    #allocation16 [shape = 'u8[4096]{0}', space=vmem, size = 0x1000, scoped, tag = 'output window, operand 0']
    #allocation17 [shape = 'u8[512]{0}', space=vmem, size = 0x400, scoped, tag = 'output window, operand 1, single buffered']
    #allocation18 [shape = 's32[1]{0}', space=sflag, size = 0x4, scoped, tag = 'scoped memory for tpu_custom_call.1']
    #allocation19 [shape = 'u8[512]{0}', space=vmem, size = 0x400, scoped, tag = 'output window, operand 2, single buffered']
    %23 = vsyncpa [#allocation9], 0
    %s24 = scalar_lea.sflag [#allocation9], 1
    %25 = vsyncpa %s24, 0
    %26 = vsyncpa [#allocation12], 0
    %27 = vsyncpa [#allocation15], 0
    %28 = vsyncpa [#allocation10], 0
    %s29 = scalar_lea.sflag [#allocation10], 1
    %30 = vsyncpa %s29, 0
    %31 = vsyncpa [#allocation18], 0
    loop: start=0, step=1, limit=4
    $region2: #{tpu_custom_call.1} parent=1 // loop_pre_header
      _
    $region3: #{tpu_custom_call.1} parent=1 // loop_header
      %s33 = sphi 0, %s37
      %p34 = scmp.ge.s32.totalorder %s33, 4
      %s43 = sphi 0, %s45
      %s46 = sphi 0, %s43
      %s47 = sphi 0, %s46
      %s63 = sphi 0, %s47
      %s67 = sphi 0, %s67
      %s69 = sphi 0, %s67
      %s70 = sphi 0, %s69
      %s84 = sphi 0, %s70
      %s88 = sphi 0, %s88
      %s90 = sphi 0, %s88
      %s91 = sphi 0, %s90
      %s105 = sphi 0, %s91
      %s109 = sphi 0, %s109
      %s111 = sphi 0, %s109
      %s112 = sphi 0, %s111
      %s126 = sphi 0, %s112
      %s130 = sphi 0, %s130
      %s132 = sphi 0, %s130
      %s133 = sphi 0, %s132
      %s147 = sphi 0, %s133
      %s151 = sphi 0, %s151
      %s153 = sphi 0, %s151
      %s154 = sphi 0, %s153
      %s168 = sphi 0, %s154
      %s172 = sphi 0, %s172
      %s174 = sphi 0, %s172
      %s175 = sphi 0, %s174
      %s189 = sphi 0, %s175
      %s193 = sphi 0, %s193
      %s195 = sphi 0, %s193
      %s196 = sphi 0, %s195
      %s210 = sphi 0, %s196
      %s214 = sphi 0, %s214
      %s216 = sphi 0, %s214
      %s217 = sphi 0, %s216
      %s231 = sphi 0, %s217
      %s235 = sphi 0, %s235
      %s237 = sphi 0, %s235
      %s238 = sphi 0, %s237
      %s252 = sphi 0, %s238
      %s256 = sphi 0, %s256
      %s258 = sphi 0, %s256
      %s259 = sphi 0, %s258
      %s273 = sphi 0, %s259
      %s279 = sphi 0, %s281
      %s282 = sphi 0, %s279
      %s283 = sphi 0, %s282
      %s299 = sphi 0, %s283
      %s303 = sphi 0, %s303
      %s305 = sphi 0, %s303
      %s306 = sphi 0, %s305
      %s320 = sphi 0, %s306
      %s324 = sphi 0, %s324
      %s326 = sphi 0, %s324
      %s327 = sphi 0, %s326
      %s341 = sphi 0, %s327
    $region4: #{tpu_custom_call.1} parent=1 // loop_header_branch
      %36 = sbr.rel (%p34) target = $region8
    $region5: #{tpu_custom_call.1} parent=1 // loop_body
      %s38 = ssub.s32 %s33, 1
      %s39 = ssub.s32 %s33, 2
      %s40 = sadd.s32 %s33, 1
      %s41 = ssub.s32 %s33, %s40
      %p42 = scmp.eq.s32.totalorder %s41, 0
      %s44 = sadd.s32 %s43, 1
      %s45 = scalar_select %p42, %s43, %s44
      %p48 = pneg %p42
      %p49 = scmp.eq.s32.totalorder %s33, 1
      %p50 = por %p48, %p49
      %p51 = scmp.ne.s32.totalorder %s43, %s46
      %p52 = scmp.eq.s32.totalorder %s33, 0
      %p53 = por %p51, %p52
      %p54 = scmp.ne.s32.totalorder %s43, %s46
      %p55 = scmp.eq.s32.totalorder %s38, 1
      %p56 = por %p54, %p55
      %p57 = scmp.ne.s32.totalorder %s46, %s47
      %p58 = scmp.eq.s32.totalorder %s38, 0
      %p59 = por %p57, %p58
      %p60 = scmp.ne.s32.totalorder %s46, %s47
      %p61 = scmp.eq.s32.totalorder %s39, 1
      %p62 = por %p60, %p61
      %p64 = scmp.ne.s32.totalorder %s47, %s63
      %p65 = scmp.eq.s32.totalorder %s39, 0
      %p66 = por %p64, %p65
      %s68 = sadd.s32 %s67, 1
      %p71 = scmp.eq.s32.totalorder %s33, 1
      %p72 = scmp.ne.s32.totalorder %s67, %s69
      %p73 = scmp.eq.s32.totalorder %s33, 0
      %p74 = por %p72, %p73
      %p75 = scmp.ne.s32.totalorder %s67, %s69
      %p76 = scmp.eq.s32.totalorder %s38, 1
      %p77 = por %p75, %p76
      %p78 = scmp.ne.s32.totalorder %s69, %s70
      %p79 = scmp.eq.s32.totalorder %s38, 0
      %p80 = por %p78, %p79
      %p81 = scmp.ne.s32.totalorder %s69, %s70
      %p82 = scmp.eq.s32.totalorder %s39, 1
      %p83 = por %p81, %p82
      %p85 = scmp.ne.s32.totalorder %s70, %s84
      %p86 = scmp.eq.s32.totalorder %s39, 0
      %p87 = por %p85, %p86
      %s89 = sadd.s32 %s88, 1
      %p92 = scmp.eq.s32.totalorder %s33, 1
      %p93 = scmp.ne.s32.totalorder %s88, %s90
      %p94 = scmp.eq.s32.totalorder %s33, 0
      %p95 = por %p93, %p94
      %p96 = scmp.ne.s32.totalorder %s88, %s90
      %p97 = scmp.eq.s32.totalorder %s38, 1
      %p98 = por %p96, %p97
      %p99 = scmp.ne.s32.totalorder %s90, %s91
      %p100 = scmp.eq.s32.totalorder %s38, 0
      %p101 = por %p99, %p100
      %p102 = scmp.ne.s32.totalorder %s90, %s91
      %p103 = scmp.eq.s32.totalorder %s39, 1
      %p104 = por %p102, %p103
      %p106 = scmp.ne.s32.totalorder %s91, %s105
      %p107 = scmp.eq.s32.totalorder %s39, 0
      %p108 = por %p106, %p107
      %s110 = sadd.s32 %s109, 1
      %p113 = scmp.eq.s32.totalorder %s33, 1
      %p114 = scmp.ne.s32.totalorder %s109, %s111
      %p115 = scmp.eq.s32.totalorder %s33, 0
      %p116 = por %p114, %p115
      %p117 = scmp.ne.s32.totalorder %s109, %s111
      %p118 = scmp.eq.s32.totalorder %s38, 1
      %p119 = por %p117, %p118
      %p120 = scmp.ne.s32.totalorder %s111, %s112
      %p121 = scmp.eq.s32.totalorder %s38, 0
      %p122 = por %p120, %p121
      %p123 = scmp.ne.s32.totalorder %s111, %s112
      %p124 = scmp.eq.s32.totalorder %s39, 1
      %p125 = por %p123, %p124
      %p127 = scmp.ne.s32.totalorder %s112, %s126
      %p128 = scmp.eq.s32.totalorder %s39, 0
      %p129 = por %p127, %p128
      %s131 = sadd.s32 %s130, 1
      %p134 = scmp.eq.s32.totalorder %s33, 1
      %p135 = scmp.ne.s32.totalorder %s130, %s132
      %p136 = scmp.eq.s32.totalorder %s33, 0
      %p137 = por %p135, %p136
      %p138 = scmp.ne.s32.totalorder %s130, %s132
      %p139 = scmp.eq.s32.totalorder %s38, 1
      %p140 = por %p138, %p139
      %p141 = scmp.ne.s32.totalorder %s132, %s133
      %p142 = scmp.eq.s32.totalorder %s38, 0
      %p143 = por %p141, %p142
      %p144 = scmp.ne.s32.totalorder %s132, %s133
      %p145 = scmp.eq.s32.totalorder %s39, 1
      %p146 = por %p144, %p145
      %p148 = scmp.ne.s32.totalorder %s133, %s147
      %p149 = scmp.eq.s32.totalorder %s39, 0
      %p150 = por %p148, %p149
      %s152 = sadd.s32 %s151, 1
      %p155 = scmp.eq.s32.totalorder %s33, 1
      %p156 = scmp.ne.s32.totalorder %s151, %s153
      %p157 = scmp.eq.s32.totalorder %s33, 0
      %p158 = por %p156, %p157
      %p159 = scmp.ne.s32.totalorder %s151, %s153
      %p160 = scmp.eq.s32.totalorder %s38, 1
      %p161 = por %p159, %p160
      %p162 = scmp.ne.s32.totalorder %s153, %s154
      %p163 = scmp.eq.s32.totalorder %s38, 0
      %p164 = por %p162, %p163
      %p165 = scmp.ne.s32.totalorder %s153, %s154
      %p166 = scmp.eq.s32.totalorder %s39, 1
      %p167 = por %p165, %p166
      %p169 = scmp.ne.s32.totalorder %s154, %s168
      %p170 = scmp.eq.s32.totalorder %s39, 0
      %p171 = por %p169, %p170
      %s173 = sadd.s32 %s172, 1
      %p176 = scmp.eq.s32.totalorder %s33, 1
      %p177 = scmp.ne.s32.totalorder %s172, %s174
      %p178 = scmp.eq.s32.totalorder %s33, 0
      %p179 = por %p177, %p178
      %p180 = scmp.ne.s32.totalorder %s172, %s174
      %p181 = scmp.eq.s32.totalorder %s38, 1
      %p182 = por %p180, %p181
      %p183 = scmp.ne.s32.totalorder %s174, %s175
      %p184 = scmp.eq.s32.totalorder %s38, 0
      %p185 = por %p183, %p184
      %p186 = scmp.ne.s32.totalorder %s174, %s175
      %p187 = scmp.eq.s32.totalorder %s39, 1
      %p188 = por %p186, %p187
      %p190 = scmp.ne.s32.totalorder %s175, %s189
      %p191 = scmp.eq.s32.totalorder %s39, 0
      %p192 = por %p190, %p191
      %s194 = sadd.s32 %s193, 1
      %p197 = scmp.eq.s32.totalorder %s33, 1
      %p198 = scmp.ne.s32.totalorder %s193, %s195
      %p199 = scmp.eq.s32.totalorder %s33, 0
      %p200 = por %p198, %p199
      %p201 = scmp.ne.s32.totalorder %s193, %s195
      %p202 = scmp.eq.s32.totalorder %s38, 1
      %p203 = por %p201, %p202
      %p204 = scmp.ne.s32.totalorder %s195, %s196
      %p205 = scmp.eq.s32.totalorder %s38, 0
      %p206 = por %p204, %p205
      %p207 = scmp.ne.s32.totalorder %s195, %s196
      %p208 = scmp.eq.s32.totalorder %s39, 1
      %p209 = por %p207, %p208
      %p211 = scmp.ne.s32.totalorder %s196, %s210
      %p212 = scmp.eq.s32.totalorder %s39, 0
      %p213 = por %p211, %p212
      %s215 = sadd.s32 %s214, 1
      %p218 = scmp.eq.s32.totalorder %s33, 1
      %p219 = scmp.ne.s32.totalorder %s214, %s216
      %p220 = scmp.eq.s32.totalorder %s33, 0
      %p221 = por %p219, %p220
      %p222 = scmp.ne.s32.totalorder %s214, %s216
      %p223 = scmp.eq.s32.totalorder %s38, 1
      %p224 = por %p222, %p223
      %p225 = scmp.ne.s32.totalorder %s216, %s217
      %p226 = scmp.eq.s32.totalorder %s38, 0
      %p227 = por %p225, %p226
      %p228 = scmp.ne.s32.totalorder %s216, %s217
      %p229 = scmp.eq.s32.totalorder %s39, 1
      %p230 = por %p228, %p229
      %p232 = scmp.ne.s32.totalorder %s217, %s231
      %p233 = scmp.eq.s32.totalorder %s39, 0
      %p234 = por %p232, %p233
      %s236 = sadd.s32 %s235, 1
      %p239 = scmp.eq.s32.totalorder %s33, 1
      %p240 = scmp.ne.s32.totalorder %s235, %s237
      %p241 = scmp.eq.s32.totalorder %s33, 0
      %p242 = por %p240, %p241
      %p243 = scmp.ne.s32.totalorder %s235, %s237
      %p244 = scmp.eq.s32.totalorder %s38, 1
      %p245 = por %p243, %p244
      %p246 = scmp.ne.s32.totalorder %s237, %s238
      %p247 = scmp.eq.s32.totalorder %s38, 0
      %p248 = por %p246, %p247
      %p249 = scmp.ne.s32.totalorder %s237, %s238
      %p250 = scmp.eq.s32.totalorder %s39, 1
      %p251 = por %p249, %p250
      %p253 = scmp.ne.s32.totalorder %s238, %s252
      %p254 = scmp.eq.s32.totalorder %s39, 0
      %p255 = por %p253, %p254
      %s257 = sadd.s32 %s256, 1
      %p260 = scmp.eq.s32.totalorder %s33, 1
      %p261 = scmp.ne.s32.totalorder %s256, %s258
      %p262 = scmp.eq.s32.totalorder %s33, 0
      %p263 = por %p261, %p262
      %p264 = scmp.ne.s32.totalorder %s256, %s258
      %p265 = scmp.eq.s32.totalorder %s38, 1
      %p266 = por %p264, %p265
      %p267 = scmp.ne.s32.totalorder %s258, %s259
      %p268 = scmp.eq.s32.totalorder %s38, 0
      %p269 = por %p267, %p268
      %p270 = scmp.ne.s32.totalorder %s258, %s259
      %p271 = scmp.eq.s32.totalorder %s39, 1
      %p272 = por %p270, %p271
      %p274 = scmp.ne.s32.totalorder %s259, %s273
      %p275 = scmp.eq.s32.totalorder %s39, 0
      %p276 = por %p274, %p275
      %s277 = ssub.s32 %s33, %s40
      %p278 = scmp.eq.s32.totalorder %s277, 0
      %s280 = sadd.s32 %s279, 1
      %s281 = scalar_select %p278, %s279, %s280
      %p284 = pneg %p278
      %p285 = scmp.eq.s32.totalorder %s33, 1
      %p286 = por %p284, %p285
      %p287 = scmp.ne.s32.totalorder %s279, %s282
      %p288 = scmp.eq.s32.totalorder %s33, 0
      %p289 = por %p287, %p288
      %p290 = scmp.ne.s32.totalorder %s279, %s282
      %p291 = scmp.eq.s32.totalorder %s38, 1
      %p292 = por %p290, %p291
      %p293 = scmp.ne.s32.totalorder %s282, %s283
      %p294 = scmp.eq.s32.totalorder %s38, 0
      %p295 = por %p293, %p294
      %p296 = scmp.ne.s32.totalorder %s282, %s283
      %p297 = scmp.eq.s32.totalorder %s39, 1
      %p298 = por %p296, %p297
      %p300 = scmp.ne.s32.totalorder %s283, %s299
      %p301 = scmp.eq.s32.totalorder %s39, 0
      %p302 = por %p300, %p301
      %s304 = sadd.s32 %s303, 1
      %p307 = scmp.eq.s32.totalorder %s33, 1
      %p308 = scmp.ne.s32.totalorder %s303, %s305
      %p309 = scmp.eq.s32.totalorder %s33, 0
      %p310 = por %p308, %p309
      %p311 = scmp.ne.s32.totalorder %s303, %s305
      %p312 = scmp.eq.s32.totalorder %s38, 1
      %p313 = por %p311, %p312
      %p314 = scmp.ne.s32.totalorder %s305, %s306
      %p315 = scmp.eq.s32.totalorder %s38, 0
      %p316 = por %p314, %p315
      %p317 = scmp.ne.s32.totalorder %s305, %s306
      %p318 = scmp.eq.s32.totalorder %s39, 1
      %p319 = por %p317, %p318
      %p321 = scmp.ne.s32.totalorder %s306, %s320
      %p322 = scmp.eq.s32.totalorder %s39, 0
      %p323 = por %p321, %p322
      %s325 = sadd.s32 %s324, 1
      %p328 = scmp.eq.s32.totalorder %s33, 1
      %p329 = scmp.ne.s32.totalorder %s324, %s326
      %p330 = scmp.eq.s32.totalorder %s33, 0
      %p331 = por %p329, %p330
      %p332 = scmp.ne.s32.totalorder %s324, %s326
      %p333 = scmp.eq.s32.totalorder %s38, 1
      %p334 = por %p332, %p333
      %p335 = scmp.ne.s32.totalorder %s326, %s327
      %p336 = scmp.eq.s32.totalorder %s38, 0
      %p337 = por %p335, %p336
      %p338 = scmp.ne.s32.totalorder %s326, %s327
      %p339 = scmp.eq.s32.totalorder %s39, 1
      %p340 = por %p338, %p339
      %p342 = scmp.ne.s32.totalorder %s327, %s341
      %p343 = scmp.eq.s32.totalorder %s39, 0
      %p344 = por %p342, %p343
      %p345 = scmp.le.s32.totalorder 1, %s33
      %p346 = scmp.lt.s32.totalorder %s33, 3
      %p347 = pnand %p345, %p346
      %p348 = pneg %p347
      // Predicated region
      $region9: #{tpu_custom_call.1} parent=5 // pred_check
        _
      $region10: #{tpu_custom_call.1} parent=5 // pred_check_branch
        %350 = sbr.rel (%p347) target = $region12
      $region11: #{tpu_custom_call.1} parent=5 // pred_region
        %s351 = ssub.s32 %s33, 1
        // Predicated region
        $region13: #{tpu_custom_call.1} parent=11 // pred_check
          %p352 = pneg %p80
        $region14: #{tpu_custom_call.1} parent=11 // pred_check_branch
          %354 = sbr.rel (%p352) target = $region16
        $region15: #{tpu_custom_call.1} parent=11 // pred_region
          %s356 = ssub.s32 4096, 4096
          %357 = vsyncadd [#allocation12], %s356
          %s358 = sshll.u32 [#allocation11], 4
          %s359 = int_to_ptr.vmem [resolvable:$true] %s358
          %364 = dma.hbm_to_vmem [thread:$0]  %s2, 4096, %s359, [#allocation12], 128, 128, 8
        $region16: #{tpu_custom_call.1} parent=11 // pred_fallthru
          _
        // Predicated region
        $region17: #{tpu_custom_call.1} parent=11 // pred_check
          %p365 = pneg %p101
        $region18: #{tpu_custom_call.1} parent=11 // pred_check_branch
          %367 = sbr.rel (%p365) target = $region20
        $region19: #{tpu_custom_call.1} parent=11 // pred_region
          _
        $region20: #{tpu_custom_call.1} parent=11 // pred_fallthru
          _
        // Predicated region
        $region21: #{tpu_custom_call.1} parent=11 // pred_check
          %p368 = pneg %p122
        $region22: #{tpu_custom_call.1} parent=11 // pred_check_branch
          %370 = sbr.rel (%p368) target = $region24
        $region23: #{tpu_custom_call.1} parent=11 // pred_region
          %s372 = ssub.s32 4096, 4096
          %373 = vsyncadd [#allocation12], %s372
          %s374 = sshll.u32 [#allocation13], 4
          %s375 = int_to_ptr.vmem [resolvable:$true] %s374
          %380 = dma.hbm_to_vmem [thread:$0]  %s4, 4096, %s375, [#allocation12], 128, 128, 8
        $region24: #{tpu_custom_call.1} parent=11 // pred_fallthru
          _
        // Predicated region
        $region25: #{tpu_custom_call.1} parent=11 // pred_check
          %p381 = pneg %p143
        $region26: #{tpu_custom_call.1} parent=11 // pred_check_branch
          %383 = sbr.rel (%p381) target = $region28
        $region27: #{tpu_custom_call.1} parent=11 // pred_region
          _
        $region28: #{tpu_custom_call.1} parent=11 // pred_fallthru
          _
        // Predicated region
        $region29: #{tpu_custom_call.1} parent=11 // pred_check
          %p384 = pneg %p164
        $region30: #{tpu_custom_call.1} parent=11 // pred_check_branch
          %386 = sbr.rel (%p384) target = $region32
        $region31: #{tpu_custom_call.1} parent=11 // pred_region
          %s388 = ssub.s32 4096, 4096
          %389 = vsyncadd [#allocation15], %s388
          %s390 = sshll.u32 [#allocation14], 4
          %s391 = int_to_ptr.vmem [resolvable:$true] %s390
          %396 = dma.hbm_to_vmem [thread:$0]  %s6, 4096, %s391, [#allocation15], 128, 128, 8
        $region32: #{tpu_custom_call.1} parent=11 // pred_fallthru
          _
        // Predicated region
        $region33: #{tpu_custom_call.1} parent=11 // pred_check
          %p397 = pneg %p185
        $region34: #{tpu_custom_call.1} parent=11 // pred_check_branch
          %399 = sbr.rel (%p397) target = $region36
        $region35: #{tpu_custom_call.1} parent=11 // pred_region
          _
        $region36: #{tpu_custom_call.1} parent=11 // pred_fallthru
          _
        // Predicated region
        $region37: #{tpu_custom_call.1} parent=11 // pred_check
          %p400 = pneg %p206
        $region38: #{tpu_custom_call.1} parent=11 // pred_check_branch
          %402 = sbr.rel (%p400) target = $region40
        $region39: #{tpu_custom_call.1} parent=11 // pred_region
          _
        $region40: #{tpu_custom_call.1} parent=11 // pred_fallthru
          _
        // Predicated region
        $region41: #{tpu_custom_call.1} parent=11 // pred_check
          %p403 = pneg %p227
        $region42: #{tpu_custom_call.1} parent=11 // pred_check_branch
          %405 = sbr.rel (%p403) target = $region44
        $region43: #{tpu_custom_call.1} parent=11 // pred_region
          _
        $region44: #{tpu_custom_call.1} parent=11 // pred_fallthru
          _
        // Predicated region
        $region45: #{tpu_custom_call.1} parent=11 // pred_check
          %p406 = pneg %p248
        $region46: #{tpu_custom_call.1} parent=11 // pred_check_branch
          %408 = sbr.rel (%p406) target = $region48
        $region47: #{tpu_custom_call.1} parent=11 // pred_region
          _
        $region48: #{tpu_custom_call.1} parent=11 // pred_fallthru
          _
        // Predicated region
        $region49: #{tpu_custom_call.1} parent=11 // pred_check
          %p409 = pneg %p269
        $region50: #{tpu_custom_call.1} parent=11 // pred_check_branch
          %411 = sbr.rel (%p409) target = $region52
        $region51: #{tpu_custom_call.1} parent=11 // pred_region
          _
        $region52: #{tpu_custom_call.1} parent=11 // pred_fallthru
          _
      $region12: #{tpu_custom_call.1} parent=5 // pred_fallthru
        _
      %p412 = scmp.lt.s32.totalorder %s33, 2
      // Predicated region
      $region53: #{tpu_custom_call.1} parent=5 // pred_check
        %p413 = pneg %p412
      $region54: #{tpu_custom_call.1} parent=5 // pred_check_branch
        %415 = sbr.rel (%p413) target = $region56
      $region55: #{tpu_custom_call.1} parent=5 // pred_region
        // Predicated region
        $region57: #{tpu_custom_call.1} parent=55 // pred_check
          %p416 = pneg %p53
        $region58: #{tpu_custom_call.1} parent=55 // pred_check_branch
          %418 = sbr.rel (%p416) target = $region60
        $region59: #{tpu_custom_call.1} parent=55 // pred_region
          %s419 = sand.u32 %s43, 1
          %s420 = scalar_lea.sflag [#allocation9], %s419
          %s421 = sand.u32 %s43, 1
          %s422 = smul.addr %s421, 512
          %s423 = scalar_lea.vmem [#allocation8], %s422
          %s424 = smul.u32 64, %s33
          %s426 = ssub.s32 8192, 8192
          %427 = vsyncadd %s420, %s426
          %s428 = smul.addr %s424, 2
          %s429 = smul.addr %s428, 64
          %s430 = scalar_lea.hbm %s1, %s429
          %s431 = sshll.u32 %s423, 4
          %s432 = int_to_ptr.vmem [resolvable:$true] %s431
          %437 = dma.hbm_to_vmem [thread:$0]  %s430, 8192, %s432, %s420, 128, 128, 8
        $region60: #{tpu_custom_call.1} parent=55 // pred_fallthru
          _
      $region56: #{tpu_custom_call.1} parent=5 // pred_fallthru
        _
      %p438 = scmp.le.s32.totalorder 1, %s33
      %p439 = scmp.lt.s32.totalorder %s33, 3
      %p440 = pnand %p438, %p439
      %p441 = pneg %p440
      // Predicated region
      $region61: #{tpu_custom_call.1} parent=5 // pred_check
        _
      $region62: #{tpu_custom_call.1} parent=5 // pred_check_branch
        %443 = sbr.rel (%p440) target = $region64
      $region63: #{tpu_custom_call.1} parent=5 // pred_region
        %s444 = ssub.s32 %s33, 1
        %s445 = sand.u32 %s46, 1
        %s446 = scalar_lea.sflag [#allocation9], %s445
        %s447 = sand.u32 %s46, 1
        %s448 = smul.addr %s447, 512
        %s449 = scalar_lea.vmem [#allocation8], %s448
        // Predicated region
        $region65: #{tpu_custom_call.1} parent=63 // pred_check
          %p450 = pneg %p59
        $region66: #{tpu_custom_call.1} parent=63 // pred_check_branch
          %452 = sbr.rel (%p450) target = $region68
        $region67: #{tpu_custom_call.1} parent=63 // pred_region
          %453 = dma.done %s446, 8192
        $region68: #{tpu_custom_call.1} parent=63 // pred_fallthru
          _
        // Predicated region
        $region69: #{tpu_custom_call.1} parent=63 // pred_check
          %p454 = pneg %p80
        $region70: #{tpu_custom_call.1} parent=63 // pred_check_branch
          %456 = sbr.rel (%p454) target = $region72
        $region71: #{tpu_custom_call.1} parent=63 // pred_region
          %457 = dma.done [#allocation12], 4096
        $region72: #{tpu_custom_call.1} parent=63 // pred_fallthru
          _
        // Predicated region
        $region73: #{tpu_custom_call.1} parent=63 // pred_check
          %p458 = pneg %p122
        $region74: #{tpu_custom_call.1} parent=63 // pred_check_branch
          %460 = sbr.rel (%p458) target = $region76
        $region75: #{tpu_custom_call.1} parent=63 // pred_region
          %461 = dma.done [#allocation12], 4096
        $region76: #{tpu_custom_call.1} parent=63 // pred_fallthru
          _
        // Predicated region
        $region77: #{tpu_custom_call.1} parent=63 // pred_check
          %p462 = pneg %p164
        $region78: #{tpu_custom_call.1} parent=63 // pred_check_branch
          %464 = sbr.rel (%p462) target = $region80
        $region79: #{tpu_custom_call.1} parent=63 // pred_region
          %465 = dma.done [#allocation15], 4096
        $region80: #{tpu_custom_call.1} parent=63 // pred_fallthru
          _
        %s466 = sand.u32 %s46, 1
        %s467 = scalar_lea.sflag [#allocation9], %s466
        %s468 = sand.u32 %s46, 1
        %s469 = smul.addr %s468, 512
        %s470 = scalar_lea.vmem [#allocation8], %s469
        %p471 = pneg %p59
        %p472 = pneg %p56
        %p473 = pneg %p80
        %p474 = pneg %p77
        %p475 = pneg %p101
        %p476 = pneg %p98
        %p477 = pneg %p122
        %p478 = pneg %p119
        %p479 = pneg %p143
        %p480 = pneg %p140
        %p481 = pneg %p164
        %p482 = pneg %p161
        %p483 = pneg %p185
        %p484 = pneg %p182
        %p485 = pneg %p206
        %p486 = pneg %p203
        %p487 = pneg %p227
        %p488 = pneg %p224
        %p489 = pneg %p248
        %p490 = pneg %p245
        %p491 = pneg %p269
        %p492 = pneg %p266
        %p493 = pneg %p295
        %p494 = pneg %p292
        %s495 = sand.u32 %s282, 1
        %s496 = scalar_lea.sflag [#allocation10], %s495
        %s497 = sand.u32 %s282, 1
        %s498 = smul.addr %s497, 4
        %s499 = scalar_lea.vmem [#allocation16], %s498
        %p500 = pneg %p316
        %p501 = pneg %p313
        %p502 = pneg %p337
        %p503 = pneg %p334
        %s504 = smul.u32 64, %s38
        %s505 = smul.u32 4, %s38
        %p507 = scmp.eq.s32.totalorder %s38, 0
        // Predicated region
        $region81: #{tpu_custom_call.1} parent=63 // pred_check
          %p508 = pneg %p507
        $region82: #{tpu_custom_call.1} parent=63 // pred_check_branch
          %510 = sbr.rel (%p508) target = $region84
        $region83: #{tpu_custom_call.1} parent=63 // pred_region
          %vm511 = vcmask 0
          %512 = vst.msk [vmem:[#allocation2] sm:$0x1] %vm511, -1e+30
          %513 = vst.msk [vmem:[#allocation3] sm:$0x1] %vm511, 0.0
          %v514 = vlaneseq
          %vm515 = vcmp.ge.s32.totalorder %v514, 0
          %vm516 = vcmp.lt.s32.totalorder %v514, 256
          %vm517 = vmand %vm515, %vm516
          %518 = vst.msk [vmem:[#allocation4] sm:$0x3] %vm517, 0.0
        $region84: #{tpu_custom_call.1} parent=63 // pred_fallthru
          _
        %v519 = vld [vmem:[%s449] sm:$0xff]
        %v520 = vld [vmem:[%s449 + $0x8] sm:$0xff]
        %v521 = vld [vmem:[%s449 + $0x10] sm:$0xff]
        %v522 = vld [vmem:[%s449 + $0x18] sm:$0xff]
        %v523 = vld [vmem:[%s449 + $0x20] sm:$0xff]
        %v524 = vld [vmem:[%s449 + $0x28] sm:$0xff]
        %v525 = vld [vmem:[%s449 + $0x30] sm:$0xff]
        %v526 = vld [vmem:[%s449 + $0x38] sm:$0xff]
        %v527 = vld [vmem:[%s449 + $0x40] sm:$0xff]
        %v528 = vld [vmem:[%s449 + $0x48] sm:$0xff]
        %v529 = vld [vmem:[%s449 + $0x50] sm:$0xff]
        %v530 = vld [vmem:[%s449 + $0x58] sm:$0xff]
        %v531 = vld [vmem:[%s449 + $0x60] sm:$0xff]
        %v532 = vld [vmem:[%s449 + $0x68] sm:$0xff]
        %v533 = vld [vmem:[%s449 + $0x70] sm:$0xff]
        %v534 = vld [vmem:[%s449 + $0x78] sm:$0xff]
        %v535 = vld [vmem:[%s449 + $0x80] sm:$0xff]
        %v536 = vld [vmem:[%s449 + $0x88] sm:$0xff]
        %v537 = vld [vmem:[%s449 + $0x90] sm:$0xff]
        %v538 = vld [vmem:[%s449 + $0x98] sm:$0xff]
        %v539 = vld [vmem:[%s449 + $0xa0] sm:$0xff]
        %v540 = vld [vmem:[%s449 + $0xa8] sm:$0xff]
        %v541 = vld [vmem:[%s449 + $0xb0] sm:$0xff]
        %v542 = vld [vmem:[%s449 + $0xb8] sm:$0xff]
        %v543 = vld [vmem:[%s449 + $0xc0] sm:$0xff]
        %v544 = vld [vmem:[%s449 + $0xc8] sm:$0xff]
        %v545 = vld [vmem:[%s449 + $0xd0] sm:$0xff]
        %v546 = vld [vmem:[%s449 + $0xd8] sm:$0xff]
        %v547 = vld [vmem:[%s449 + $0xe0] sm:$0xff]
        %v548 = vld [vmem:[%s449 + $0xe8] sm:$0xff]
        %v549 = vld [vmem:[%s449 + $0xf0] sm:$0xff]
        %v550 = vld [vmem:[%s449 + $0xf8] sm:$0xff]
        %v551 = vld [vmem:[%s449 + $0x100] sm:$0xff]
        %v552 = vld [vmem:[%s449 + $0x108] sm:$0xff]
        %v553 = vld [vmem:[%s449 + $0x110] sm:$0xff]
        %v554 = vld [vmem:[%s449 + $0x118] sm:$0xff]
        %v555 = vld [vmem:[%s449 + $0x120] sm:$0xff]
        %v556 = vld [vmem:[%s449 + $0x128] sm:$0xff]
        %v557 = vld [vmem:[%s449 + $0x130] sm:$0xff]
        %v558 = vld [vmem:[%s449 + $0x138] sm:$0xff]
        %v559 = vld [vmem:[%s449 + $0x140] sm:$0xff]
        %v560 = vld [vmem:[%s449 + $0x148] sm:$0xff]
        %v561 = vld [vmem:[%s449 + $0x150] sm:$0xff]
        %v562 = vld [vmem:[%s449 + $0x158] sm:$0xff]
        %v563 = vld [vmem:[%s449 + $0x160] sm:$0xff]
        %v564 = vld [vmem:[%s449 + $0x168] sm:$0xff]
        %v565 = vld [vmem:[%s449 + $0x170] sm:$0xff]
        %v566 = vld [vmem:[%s449 + $0x178] sm:$0xff]
        %v567 = vld [vmem:[%s449 + $0x180] sm:$0xff]
        %v568 = vld [vmem:[%s449 + $0x188] sm:$0xff]
        %v569 = vld [vmem:[%s449 + $0x190] sm:$0xff]
        %v570 = vld [vmem:[%s449 + $0x198] sm:$0xff]
        %v571 = vld [vmem:[%s449 + $0x1a0] sm:$0xff]
        %v572 = vld [vmem:[%s449 + $0x1a8] sm:$0xff]
        %v573 = vld [vmem:[%s449 + $0x1b0] sm:$0xff]
        %v574 = vld [vmem:[%s449 + $0x1b8] sm:$0xff]
        %v575 = vld [vmem:[%s449 + $0x1c0] sm:$0xff]
        %v576 = vld [vmem:[%s449 + $0x1c8] sm:$0xff]
        %v577 = vld [vmem:[%s449 + $0x1d0] sm:$0xff]
        %v578 = vld [vmem:[%s449 + $0x1d8] sm:$0xff]
        %v579 = vld [vmem:[%s449 + $0x1e0] sm:$0xff]
        %v580 = vld [vmem:[%s449 + $0x1e8] sm:$0xff]
        %v581 = vld [vmem:[%s449 + $0x1f0] sm:$0xff]
        %v582 = vld [vmem:[%s449 + $0x1f8] sm:$0xff]
        %v583 = vld [vmem:[#allocation11] sm:$0xff]
        %v584 = vld [vmem:[#allocation11 + $0x8] sm:$0xff]
        %v585 = vld [vmem:[#allocation11 + $0x10] sm:$0xff]
        %v586 = vld [vmem:[#allocation11 + $0x18] sm:$0xff]
        %v587 = vld [vmem:[#allocation11 + $0x20] sm:$0xff]
        %v588 = vld [vmem:[#allocation11 + $0x28] sm:$0xff]
        %v589 = vld [vmem:[#allocation11 + $0x30] sm:$0xff]
        %v590 = vld [vmem:[#allocation11 + $0x38] sm:$0xff]
        %v591 = vld [vmem:[#allocation11 + $0x40] sm:$0xff]
        %v592 = vld [vmem:[#allocation11 + $0x48] sm:$0xff]
        %v593 = vld [vmem:[#allocation11 + $0x50] sm:$0xff]
        %v594 = vld [vmem:[#allocation11 + $0x58] sm:$0xff]
        %v595 = vld [vmem:[#allocation11 + $0x60] sm:$0xff]
        %v596 = vld [vmem:[#allocation11 + $0x68] sm:$0xff]
        %v597 = vld [vmem:[#allocation11 + $0x70] sm:$0xff]
        %v598 = vld [vmem:[#allocation11 + $0x78] sm:$0xff]
        %v599 = vld [vmem:[#allocation11 + $0x80] sm:$0xff]
        %v600 = vld [vmem:[#allocation11 + $0x88] sm:$0xff]
        %v601 = vld [vmem:[#allocation11 + $0x90] sm:$0xff]
        %v602 = vld [vmem:[#allocation11 + $0x98] sm:$0xff]
        %v603 = vld [vmem:[#allocation11 + $0xa0] sm:$0xff]
        %v604 = vld [vmem:[#allocation11 + $0xa8] sm:$0xff]
        %v605 = vld [vmem:[#allocation11 + $0xb0] sm:$0xff]
        %v606 = vld [vmem:[#allocation11 + $0xb8] sm:$0xff]
        %v607 = vld [vmem:[#allocation11 + $0xc0] sm:$0xff]
        %v608 = vld [vmem:[#allocation11 + $0xc8] sm:$0xff]
        %v609 = vld [vmem:[#allocation11 + $0xd0] sm:$0xff]
        %v610 = vld [vmem:[#allocation11 + $0xd8] sm:$0xff]
        %v611 = vld [vmem:[#allocation11 + $0xe0] sm:$0xff]
        %v612 = vld [vmem:[#allocation11 + $0xe8] sm:$0xff]
        %v613 = vld [vmem:[#allocation11 + $0xf0] sm:$0xff]
        %v614 = vld [vmem:[#allocation11 + $0xf8] sm:$0xff]
        %v615 = vld [vmem:[%s3] sm:$0x3]
        %v617 = vlaneseq
        %v618 = vshrl.u32 %v617, 7
        %v619 = vsub.s32 0, %v618
        %v620 = vrot.slane %v615, %v619
        %v621 = vlaneseq
        %v622 = vshrl.u32 %v621, 7
        %v623 = vsub.s32 1, %v622
        %v624 = vrot.slane %v615, %v623
        %v691 = vunpack.c.l.b16 %v519
        %v692 = vunpack.c.h.b16 %v519
        %v693 = vunpack.c.l.b16 %v520
        %v694 = vunpack.c.h.b16 %v520
        %v695 = vunpack.c.l.b16 %v521
        %v696 = vunpack.c.h.b16 %v521
        %v697 = vunpack.c.l.b16 %v522
        %v698 = vunpack.c.h.b16 %v522
        %v699 = vunpack.c.l.b16 %v523
        %v700 = vunpack.c.h.b16 %v523
        %v701 = vunpack.c.l.b16 %v524
        %v702 = vunpack.c.h.b16 %v524
        %v703 = vunpack.c.l.b16 %v525
        %v704 = vunpack.c.h.b16 %v525
        %v705 = vunpack.c.l.b16 %v526
        %v706 = vunpack.c.h.b16 %v526
        %v707 = vunpack.c.l.b16 %v527
        %v708 = vunpack.c.h.b16 %v527
        %v709 = vunpack.c.l.b16 %v528
        %v710 = vunpack.c.h.b16 %v528
        %v711 = vunpack.c.l.b16 %v529
        %v712 = vunpack.c.h.b16 %v529
        %v713 = vunpack.c.l.b16 %v530
        %v714 = vunpack.c.h.b16 %v530
        %v715 = vunpack.c.l.b16 %v531
        %v716 = vunpack.c.h.b16 %v531
        %v717 = vunpack.c.l.b16 %v532
        %v718 = vunpack.c.h.b16 %v532
        %v719 = vunpack.c.l.b16 %v533
        %v720 = vunpack.c.h.b16 %v533
        %v721 = vunpack.c.l.b16 %v534
        %v722 = vunpack.c.h.b16 %v534
        %v723 = vunpack.c.l.b16 %v535
        %v724 = vunpack.c.h.b16 %v535
        %v725 = vunpack.c.l.b16 %v536
        %v726 = vunpack.c.h.b16 %v536
        %v727 = vunpack.c.l.b16 %v537
        %v728 = vunpack.c.h.b16 %v537
        %v729 = vunpack.c.l.b16 %v538
        %v730 = vunpack.c.h.b16 %v538
        %v731 = vunpack.c.l.b16 %v539
        %v732 = vunpack.c.h.b16 %v539
        %v733 = vunpack.c.l.b16 %v540
        %v734 = vunpack.c.h.b16 %v540
        %v735 = vunpack.c.l.b16 %v541
        %v736 = vunpack.c.h.b16 %v541
        %v737 = vunpack.c.l.b16 %v542
        %v738 = vunpack.c.h.b16 %v542
        %v739 = vunpack.c.l.b16 %v543
        %v740 = vunpack.c.h.b16 %v543
        %v741 = vunpack.c.l.b16 %v544
        %v742 = vunpack.c.h.b16 %v544
        %v743 = vunpack.c.l.b16 %v545
        %v744 = vunpack.c.h.b16 %v545
        %v745 = vunpack.c.l.b16 %v546
        %v746 = vunpack.c.h.b16 %v546
        %v747 = vunpack.c.l.b16 %v547
        %v748 = vunpack.c.h.b16 %v547
        %v749 = vunpack.c.l.b16 %v548
        %v750 = vunpack.c.h.b16 %v548
        %v751 = vunpack.c.l.b16 %v549
        %v752 = vunpack.c.h.b16 %v549
        %v753 = vunpack.c.l.b16 %v550
        %v754 = vunpack.c.h.b16 %v550
        %v755 = vunpack.c.l.b16 %v551
        %v756 = vunpack.c.h.b16 %v551
        %v757 = vunpack.c.l.b16 %v552
        %v758 = vunpack.c.h.b16 %v552
        %v759 = vunpack.c.l.b16 %v553
        %v760 = vunpack.c.h.b16 %v553
        %v761 = vunpack.c.l.b16 %v554
        %v762 = vunpack.c.h.b16 %v554
        %v763 = vunpack.c.l.b16 %v555
        %v764 = vunpack.c.h.b16 %v555
        %v765 = vunpack.c.l.b16 %v556
        %v766 = vunpack.c.h.b16 %v556
        %v767 = vunpack.c.l.b16 %v557
        %v768 = vunpack.c.h.b16 %v557
        %v769 = vunpack.c.l.b16 %v558
        %v770 = vunpack.c.h.b16 %v558
        %v771 = vunpack.c.l.b16 %v559
        %v772 = vunpack.c.h.b16 %v559
        %v773 = vunpack.c.l.b16 %v560
        %v774 = vunpack.c.h.b16 %v560
        %v775 = vunpack.c.l.b16 %v561
        %v776 = vunpack.c.h.b16 %v561
        %v777 = vunpack.c.l.b16 %v562
        %v778 = vunpack.c.h.b16 %v562
        %v779 = vunpack.c.l.b16 %v563
        %v780 = vunpack.c.h.b16 %v563
        %v781 = vunpack.c.l.b16 %v564
        %v782 = vunpack.c.h.b16 %v564
        %v783 = vunpack.c.l.b16 %v565
        %v784 = vunpack.c.h.b16 %v565
        %v785 = vunpack.c.l.b16 %v566
        %v786 = vunpack.c.h.b16 %v566
        %v787 = vunpack.c.l.b16 %v567
        %v788 = vunpack.c.h.b16 %v567
        %v789 = vunpack.c.l.b16 %v568
        %v790 = vunpack.c.h.b16 %v568
        %v791 = vunpack.c.l.b16 %v569
        %v792 = vunpack.c.h.b16 %v569
        %v793 = vunpack.c.l.b16 %v570
        %v794 = vunpack.c.h.b16 %v570
        %v795 = vunpack.c.l.b16 %v571
        %v796 = vunpack.c.h.b16 %v571
        %v797 = vunpack.c.l.b16 %v572
        %v798 = vunpack.c.h.b16 %v572
        %v799 = vunpack.c.l.b16 %v573
        %v800 = vunpack.c.h.b16 %v573
        %v801 = vunpack.c.l.b16 %v574
        %v802 = vunpack.c.h.b16 %v574
        %v803 = vunpack.c.l.b16 %v575
        %v804 = vunpack.c.h.b16 %v575
        %v805 = vunpack.c.l.b16 %v576
        %v806 = vunpack.c.h.b16 %v576
        %v807 = vunpack.c.l.b16 %v577
        %v808 = vunpack.c.h.b16 %v577
        %v809 = vunpack.c.l.b16 %v578
        %v810 = vunpack.c.h.b16 %v578
        %v811 = vunpack.c.l.b16 %v579
        %v812 = vunpack.c.h.b16 %v579
        %v813 = vunpack.c.l.b16 %v580
        %v814 = vunpack.c.h.b16 %v580
        %v815 = vunpack.c.l.b16 %v581
        %v816 = vunpack.c.h.b16 %v581
        %v817 = vunpack.c.l.b16 %v582
        %v818 = vunpack.c.h.b16 %v582
        %v819 = vpack.c.b16 %v693, %v691
        %v820 = vpack.c.b16 %v694, %v692
        %v821 = vpack.c.b16 %v697, %v695
        %v822 = vpack.c.b16 %v698, %v696
        %v823 = vpack.c.b16 %v701, %v699
        %v824 = vpack.c.b16 %v702, %v700
        %v825 = vpack.c.b16 %v705, %v703
        %v826 = vpack.c.b16 %v706, %v704
        %v827 = vpack.c.b16 %v709, %v707
        %v828 = vpack.c.b16 %v710, %v708
        %v829 = vpack.c.b16 %v713, %v711
        %v830 = vpack.c.b16 %v714, %v712
        %v831 = vpack.c.b16 %v717, %v715
        %v832 = vpack.c.b16 %v718, %v716
        %v833 = vpack.c.b16 %v721, %v719
        %v834 = vpack.c.b16 %v722, %v720
        %v835 = vpack.c.b16 %v725, %v723
        %v836 = vpack.c.b16 %v726, %v724
        %v837 = vpack.c.b16 %v729, %v727
        %v838 = vpack.c.b16 %v730, %v728
        %v839 = vpack.c.b16 %v733, %v731
        %v840 = vpack.c.b16 %v734, %v732
        %v841 = vpack.c.b16 %v737, %v735
        %v842 = vpack.c.b16 %v738, %v736
        %v843 = vpack.c.b16 %v741, %v739
        %v844 = vpack.c.b16 %v742, %v740
        %v845 = vpack.c.b16 %v745, %v743
        %v846 = vpack.c.b16 %v746, %v744
        %v847 = vpack.c.b16 %v749, %v747
        %v848 = vpack.c.b16 %v750, %v748
        %v849 = vpack.c.b16 %v753, %v751
        %v850 = vpack.c.b16 %v754, %v752
        %v851 = vpack.c.b16 %v757, %v755
        %v852 = vpack.c.b16 %v758, %v756
        %v853 = vpack.c.b16 %v761, %v759
        %v854 = vpack.c.b16 %v762, %v760
        %v855 = vpack.c.b16 %v765, %v763
        %v856 = vpack.c.b16 %v766, %v764
        %v857 = vpack.c.b16 %v769, %v767
        %v858 = vpack.c.b16 %v770, %v768
        %v859 = vpack.c.b16 %v773, %v771
        %v860 = vpack.c.b16 %v774, %v772
        %v861 = vpack.c.b16 %v777, %v775
        %v862 = vpack.c.b16 %v778, %v776
        %v863 = vpack.c.b16 %v781, %v779
        %v864 = vpack.c.b16 %v782, %v780
        %v865 = vpack.c.b16 %v785, %v783
        %v866 = vpack.c.b16 %v786, %v784
        %v867 = vpack.c.b16 %v789, %v787
        %v868 = vpack.c.b16 %v790, %v788
        %v869 = vpack.c.b16 %v793, %v791
        %v870 = vpack.c.b16 %v794, %v792
        %v871 = vpack.c.b16 %v797, %v795
        %v872 = vpack.c.b16 %v798, %v796
        %v873 = vpack.c.b16 %v801, %v799
        %v874 = vpack.c.b16 %v802, %v800
        %v875 = vpack.c.b16 %v805, %v803
        %v876 = vpack.c.b16 %v806, %v804
        %v877 = vpack.c.b16 %v809, %v807
        %v878 = vpack.c.b16 %v810, %v808
        %v879 = vpack.c.b16 %v813, %v811
        %v880 = vpack.c.b16 %v814, %v812
        %v881 = vpack.c.b16 %v817, %v815
        %v882 = vpack.c.b16 %v818, %v816
        %v979 = vunpack.c.l.b16 %v583
        %v980 = vunpack.c.h.b16 %v583
        %v981 = vunpack.c.l.b16 %v584
        %v982 = vunpack.c.h.b16 %v584
        %v983 = vunpack.c.l.b16 %v585
        %v984 = vunpack.c.h.b16 %v585
        %v985 = vunpack.c.l.b16 %v586
        %v986 = vunpack.c.h.b16 %v586
        %v987 = vunpack.c.l.b16 %v587
        %v988 = vunpack.c.h.b16 %v587
        %v989 = vunpack.c.l.b16 %v588
        %v990 = vunpack.c.h.b16 %v588
        %v991 = vunpack.c.l.b16 %v589
        %v992 = vunpack.c.h.b16 %v589
        %v993 = vunpack.c.l.b16 %v590
        %v994 = vunpack.c.h.b16 %v590
        %v995 = vunpack.c.l.b16 %v591
        %v996 = vunpack.c.h.b16 %v591
        %v997 = vunpack.c.l.b16 %v592
        %v998 = vunpack.c.h.b16 %v592
        %v999 = vunpack.c.l.b16 %v593
        %v1000 = vunpack.c.h.b16 %v593
        %v1001 = vunpack.c.l.b16 %v594
        %v1002 = vunpack.c.h.b16 %v594
        %v1003 = vunpack.c.l.b16 %v595
        %v1004 = vunpack.c.h.b16 %v595
        %v1005 = vunpack.c.l.b16 %v596
        %v1006 = vunpack.c.h.b16 %v596
        %v1007 = vunpack.c.l.b16 %v597
        %v1008 = vunpack.c.h.b16 %v597
        %v1009 = vunpack.c.l.b16 %v598
        %v1010 = vunpack.c.h.b16 %v598
        %v1011 = vunpack.c.l.b16 %v599
        %v1012 = vunpack.c.h.b16 %v599
        %v1013 = vunpack.c.l.b16 %v600
        %v1014 = vunpack.c.h.b16 %v600
        %v1015 = vunpack.c.l.b16 %v601
        %v1016 = vunpack.c.h.b16 %v601
        %v1017 = vunpack.c.l.b16 %v602
        %v1018 = vunpack.c.h.b16 %v602
        %v1019 = vunpack.c.l.b16 %v603
        %v1020 = vunpack.c.h.b16 %v603
        %v1021 = vunpack.c.l.b16 %v604
        %v1022 = vunpack.c.h.b16 %v604
        %v1023 = vunpack.c.l.b16 %v605
        %v1024 = vunpack.c.h.b16 %v605
        %v1025 = vunpack.c.l.b16 %v606
        %v1026 = vunpack.c.h.b16 %v606
        %v1027 = vunpack.c.l.b16 %v607
        %v1028 = vunpack.c.h.b16 %v607
        %v1029 = vunpack.c.l.b16 %v608
        %v1030 = vunpack.c.h.b16 %v608
        %v1031 = vunpack.c.l.b16 %v609
        %v1032 = vunpack.c.h.b16 %v609
        %v1033 = vunpack.c.l.b16 %v610
        %v1034 = vunpack.c.h.b16 %v610
        %v1035 = vunpack.c.l.b16 %v611
        %v1036 = vunpack.c.h.b16 %v611
        %v1037 = vunpack.c.l.b16 %v612
        %v1038 = vunpack.c.h.b16 %v612
        %v1039 = vunpack.c.l.b16 %v613
        %v1040 = vunpack.c.h.b16 %v613
        %v1041 = vunpack.c.l.b16 %v614
        %v1042 = vunpack.c.h.b16 %v614
        %v1043 = vpack.c.b16 %v981, %v979
        %v1044 = vpack.c.b16 %v982, %v980
        %v1045 = vpack.c.b16 %v985, %v983
        %v1046 = vpack.c.b16 %v986, %v984
        %v1047 = vpack.c.b16 %v989, %v987
        %v1048 = vpack.c.b16 %v990, %v988
        %v1049 = vpack.c.b16 %v993, %v991
        %v1050 = vpack.c.b16 %v994, %v992
        %v1051 = vpack.c.b16 %v997, %v995
        %v1052 = vpack.c.b16 %v998, %v996
        %v1053 = vpack.c.b16 %v1001, %v999
        %v1054 = vpack.c.b16 %v1002, %v1000
        %v1055 = vpack.c.b16 %v1005, %v1003
        %v1056 = vpack.c.b16 %v1006, %v1004
        %v1057 = vpack.c.b16 %v1009, %v1007
        %v1058 = vpack.c.b16 %v1010, %v1008
        %v1059 = vpack.c.b16 %v1013, %v1011
        %v1060 = vpack.c.b16 %v1014, %v1012
        %v1061 = vpack.c.b16 %v1017, %v1015
        %v1062 = vpack.c.b16 %v1018, %v1016
        %v1063 = vpack.c.b16 %v1021, %v1019
        %v1064 = vpack.c.b16 %v1022, %v1020
        %v1065 = vpack.c.b16 %v1025, %v1023
        %v1066 = vpack.c.b16 %v1026, %v1024
        %v1067 = vpack.c.b16 %v1029, %v1027
        %v1068 = vpack.c.b16 %v1030, %v1028
        %v1069 = vpack.c.b16 %v1033, %v1031
        %v1070 = vpack.c.b16 %v1034, %v1032
        %v1071 = vpack.c.b16 %v1037, %v1035
        %v1072 = vpack.c.b16 %v1038, %v1036
        %v1073 = vpack.c.b16 %v1041, %v1039
        %v1074 = vpack.c.b16 %v1042, %v1040
        %1107 = vmatprep.subr.bf16.mxu0 %v1058
        %1108 = vmatpush1.bf16.msra.mxu0 %v1057
        %1109 = vmatprep.subr.bf16.mxu0 %v1056
        %1110 = vmatpush1.bf16.msra.mxu0 %v1055
        %1111 = vmatprep.subr.bf16.mxu0 %v1054
        %1112 = vmatpush1.bf16.msra.mxu0 %v1053
        %1113 = vmatprep.subr.bf16.mxu0 %v1052
        %1114 = vmatpush1.bf16.msra.mxu0 %v1051
        %1115 = vmatprep.subr.bf16.mxu0 %v1050
        %1116 = vmatpush1.bf16.msra.mxu0 %v1049
        %1117 = vmatprep.subr.bf16.mxu0 %v1048
        %1118 = vmatpush1.bf16.msra.mxu0 %v1047
        %1119 = vmatprep.subr.bf16.mxu0 %v1046
        %1120 = vmatpush1.bf16.msra.mxu0 %v1045
        %1121 = vmatprep.subr.bf16.mxu0 %v1044
        %1122 = vmatpush1.bf16.msra.mxu0 %v1043
        %1123 = vmatprep.subr.bf16.mxu0 %v1074
        %1124 = vmatpush2.bf16.msra.mxu0 %v1073
        %1125 = vmatprep.subr.bf16.mxu0 %v1072
        %1126 = vmatpush2.bf16.msra.mxu0 %v1071
        %1127 = vmatprep.subr.bf16.mxu0 %v1070
        %1128 = vmatpush2.bf16.msra.mxu0 %v1069
        %1129 = vmatprep.subr.bf16.mxu0 %v1068
        %1130 = vmatpush2.bf16.msra.mxu0 %v1067
        %1131 = vmatprep.subr.bf16.mxu0 %v1066
        %1132 = vmatpush2.bf16.msra.mxu0 %v1065
        %1133 = vmatprep.subr.bf16.mxu0 %v1064
        %1134 = vmatpush2.bf16.msra.mxu0 %v1063
        %1135 = vmatprep.subr.bf16.mxu0 %v1062
        %1136 = vmatpush2.bf16.msra.mxu0 %v1061
        %1137 = vmatprep.subr.bf16.mxu0 %v1060
        %1138 = vmatpush2.bf16.msra.mxu0 %v1059
        %1139 = vmatprep.mubr.bf16.mxu0 %v820
        %1140 = vmatmul.mubr.bf16.gmra.mxu0 %v819
        %v1141 = vpop.f32.mrf.mxu0
        %v1142 = vadd.f32 %v620, %v1141
        %v1143 = vpop.f32.mrf.mxu0
        %v1144 = vadd.f32 %v624, %v1143
        %v1145 = vpop.f32.mrf.mxu0
        %v1146 = vadd.f32 %v620, %v1145
        %v1147 = vpop.f32.mrf.mxu0
        %v1148 = vadd.f32 %v624, %v1147
        %1149 = vmatprep.mubr.bf16.mxu0 %v822
        %1150 = vmatmul.mubr.bf16.gmra.mxu0 %v821
        %v1151 = vpop.f32.mrf.mxu0
        %v1152 = vadd.f32 %v620, %v1151
        %v1153 = vpop.f32.mrf.mxu0
        %v1154 = vadd.f32 %v624, %v1153
        %v1155 = vpop.f32.mrf.mxu0
        %v1156 = vadd.f32 %v620, %v1155
        %v1157 = vpop.f32.mrf.mxu0
        %v1158 = vadd.f32 %v624, %v1157
        %1159 = vmatprep.mubr.bf16.mxu0 %v824
        %1160 = vmatmul.mubr.bf16.gmra.mxu0 %v823
        %v1161 = vpop.f32.mrf.mxu0
        %v1162 = vadd.f32 %v620, %v1161
        %v1163 = vpop.f32.mrf.mxu0
        %v1164 = vadd.f32 %v624, %v1163
        %v1165 = vpop.f32.mrf.mxu0
        %v1166 = vadd.f32 %v620, %v1165
        %v1167 = vpop.f32.mrf.mxu0
        %v1168 = vadd.f32 %v624, %v1167
        %1169 = vmatprep.mubr.bf16.mxu0 %v826
        %1170 = vmatmul.mubr.bf16.gmra.mxu0 %v825
        %v1171 = vpop.f32.mrf.mxu0
        %v1172 = vadd.f32 %v620, %v1171
        %v1173 = vpop.f32.mrf.mxu0
        %v1174 = vadd.f32 %v624, %v1173
        %v1175 = vpop.f32.mrf.mxu0
        %v1176 = vadd.f32 %v620, %v1175
        %v1177 = vpop.f32.mrf.mxu0
        %v1178 = vadd.f32 %v624, %v1177
        %1179 = vmatprep.mubr.bf16.mxu0 %v828
        %1180 = vmatmul.mubr.bf16.gmra.mxu0 %v827
        %v1181 = vpop.f32.mrf.mxu0
        %v1182 = vadd.f32 %v620, %v1181
        %v1183 = vpop.f32.mrf.mxu0
        %v1184 = vadd.f32 %v624, %v1183
        %v1185 = vpop.f32.mrf.mxu0
        %v1186 = vadd.f32 %v620, %v1185
        %v1187 = vpop.f32.mrf.mxu0
        %v1188 = vadd.f32 %v624, %v1187
        %1189 = vmatprep.mubr.bf16.mxu0 %v830
        %1190 = vmatmul.mubr.bf16.gmra.mxu0 %v829
        %v1191 = vpop.f32.mrf.mxu0
        %v1192 = vadd.f32 %v620, %v1191
        %v1193 = vpop.f32.mrf.mxu0
        %v1194 = vadd.f32 %v624, %v1193
        %v1195 = vpop.f32.mrf.mxu0
        %v1196 = vadd.f32 %v620, %v1195
        %v1197 = vpop.f32.mrf.mxu0
        %v1198 = vadd.f32 %v624, %v1197
        %1199 = vmatprep.mubr.bf16.mxu0 %v832
        %1200 = vmatmul.mubr.bf16.gmra.mxu0 %v831
        %v1201 = vpop.f32.mrf.mxu0
        %v1202 = vadd.f32 %v620, %v1201
        %v1203 = vpop.f32.mrf.mxu0
        %v1204 = vadd.f32 %v624, %v1203
        %v1205 = vpop.f32.mrf.mxu0
        %v1206 = vadd.f32 %v620, %v1205
        %v1207 = vpop.f32.mrf.mxu0
        %v1208 = vadd.f32 %v624, %v1207
        %1209 = vmatprep.mubr.bf16.mxu0 %v834
        %1210 = vmatmul.mubr.bf16.gmra.mxu0 %v833
        %v1211 = vpop.f32.mrf.mxu0
        %v1212 = vadd.f32 %v620, %v1211
        %v1213 = vpop.f32.mrf.mxu0
        %v1214 = vadd.f32 %v624, %v1213
        %v1215 = vpop.f32.mrf.mxu0
        %v1216 = vadd.f32 %v620, %v1215
        %v1217 = vpop.f32.mrf.mxu0
        %v1218 = vadd.f32 %v624, %v1217
        %1219 = vmatprep.mubr.bf16.mxu0 %v836
        %1220 = vmatmul.mubr.bf16.gmra.mxu0 %v835
        %v1221 = vpop.f32.mrf.mxu0
        %v1222 = vadd.f32 %v620, %v1221
        %v1223 = vpop.f32.mrf.mxu0
        %v1224 = vadd.f32 %v624, %v1223
        %v1225 = vpop.f32.mrf.mxu0
        %v1226 = vadd.f32 %v620, %v1225
        %v1227 = vpop.f32.mrf.mxu0
        %v1228 = vadd.f32 %v624, %v1227
        %1229 = vmatprep.mubr.bf16.mxu0 %v838
        %1230 = vmatmul.mubr.bf16.gmra.mxu0 %v837
        %v1231 = vpop.f32.mrf.mxu0
        %v1232 = vadd.f32 %v620, %v1231
        %v1233 = vpop.f32.mrf.mxu0
        %v1234 = vadd.f32 %v624, %v1233
        %v1235 = vpop.f32.mrf.mxu0
        %v1236 = vadd.f32 %v620, %v1235
        %v1237 = vpop.f32.mrf.mxu0
        %v1238 = vadd.f32 %v624, %v1237
        %1239 = vmatprep.mubr.bf16.mxu0 %v840
        %1240 = vmatmul.mubr.bf16.gmra.mxu0 %v839
        %v1241 = vpop.f32.mrf.mxu0
        %v1242 = vadd.f32 %v620, %v1241
        %v1243 = vpop.f32.mrf.mxu0
        %v1244 = vadd.f32 %v624, %v1243
        %v1245 = vpop.f32.mrf.mxu0
        %v1246 = vadd.f32 %v620, %v1245
        %v1247 = vpop.f32.mrf.mxu0
        %v1248 = vadd.f32 %v624, %v1247
        %1249 = vmatprep.mubr.bf16.mxu0 %v842
        %1250 = vmatmul.mubr.bf16.gmra.mxu0 %v841
        %v1251 = vpop.f32.mrf.mxu0
        %v1252 = vadd.f32 %v620, %v1251
        %v1253 = vpop.f32.mrf.mxu0
        %v1254 = vadd.f32 %v624, %v1253
        %v1255 = vpop.f32.mrf.mxu0
        %v1256 = vadd.f32 %v620, %v1255
        %v1257 = vpop.f32.mrf.mxu0
        %v1258 = vadd.f32 %v624, %v1257
        %1259 = vmatprep.mubr.bf16.mxu0 %v844
        %1260 = vmatmul.mubr.bf16.gmra.mxu0 %v843
        %v1261 = vpop.f32.mrf.mxu0
        %v1262 = vadd.f32 %v620, %v1261
        %v1263 = vpop.f32.mrf.mxu0
        %v1264 = vadd.f32 %v624, %v1263
        %v1265 = vpop.f32.mrf.mxu0
        %v1266 = vadd.f32 %v620, %v1265
        %v1267 = vpop.f32.mrf.mxu0
        %v1268 = vadd.f32 %v624, %v1267
        %1269 = vmatprep.mubr.bf16.mxu0 %v846
        %1270 = vmatmul.mubr.bf16.gmra.mxu0 %v845
        %v1271 = vpop.f32.mrf.mxu0
        %v1272 = vadd.f32 %v620, %v1271
        %v1273 = vpop.f32.mrf.mxu0
        %v1274 = vadd.f32 %v624, %v1273
        %v1275 = vpop.f32.mrf.mxu0
        %v1276 = vadd.f32 %v620, %v1275
        %v1277 = vpop.f32.mrf.mxu0
        %v1278 = vadd.f32 %v624, %v1277
        %1279 = vmatprep.mubr.bf16.mxu0 %v848
        %1280 = vmatmul.mubr.bf16.gmra.mxu0 %v847
        %v1281 = vpop.f32.mrf.mxu0
        %v1282 = vadd.f32 %v620, %v1281
        %v1283 = vpop.f32.mrf.mxu0
        %v1284 = vadd.f32 %v624, %v1283
        %v1285 = vpop.f32.mrf.mxu0
        %v1286 = vadd.f32 %v620, %v1285
        %v1287 = vpop.f32.mrf.mxu0
        %v1288 = vadd.f32 %v624, %v1287
        %1289 = vmatprep.mubr.bf16.mxu0 %v850
        %1290 = vmatmul.mubr.bf16.gmra.mxu0 %v849
        %v1291 = vpop.f32.mrf.mxu0
        %v1292 = vadd.f32 %v620, %v1291
        %v1293 = vpop.f32.mrf.mxu0
        %v1294 = vadd.f32 %v624, %v1293
        %v1295 = vpop.f32.mrf.mxu0
        %v1296 = vadd.f32 %v620, %v1295
        %v1297 = vpop.f32.mrf.mxu0
        %v1298 = vadd.f32 %v624, %v1297
        %1299 = vmatprep.mubr.bf16.mxu0 %v852
        %1300 = vmatmul.mubr.bf16.gmra.mxu0 %v851
        %v1301 = vpop.f32.mrf.mxu0
        %v1302 = vadd.f32 %v620, %v1301
        %v1303 = vpop.f32.mrf.mxu0
        %v1304 = vadd.f32 %v624, %v1303
        %v1305 = vpop.f32.mrf.mxu0
        %v1306 = vadd.f32 %v620, %v1305
        %v1307 = vpop.f32.mrf.mxu0
        %v1308 = vadd.f32 %v624, %v1307
        %1309 = vmatprep.mubr.bf16.mxu0 %v854
        %1310 = vmatmul.mubr.bf16.gmra.mxu0 %v853
        %v1311 = vpop.f32.mrf.mxu0
        %v1312 = vadd.f32 %v620, %v1311
        %v1313 = vpop.f32.mrf.mxu0
        %v1314 = vadd.f32 %v624, %v1313
        %v1315 = vpop.f32.mrf.mxu0
        %v1316 = vadd.f32 %v620, %v1315
        %v1317 = vpop.f32.mrf.mxu0
        %v1318 = vadd.f32 %v624, %v1317
        %1319 = vmatprep.mubr.bf16.mxu0 %v856
        %1320 = vmatmul.mubr.bf16.gmra.mxu0 %v855
        %v1321 = vpop.f32.mrf.mxu0
        %v1322 = vadd.f32 %v620, %v1321
        %v1323 = vpop.f32.mrf.mxu0
        %v1324 = vadd.f32 %v624, %v1323
        %v1325 = vpop.f32.mrf.mxu0
        %v1326 = vadd.f32 %v620, %v1325
        %v1327 = vpop.f32.mrf.mxu0
        %v1328 = vadd.f32 %v624, %v1327
        %1329 = vmatprep.mubr.bf16.mxu0 %v858
        %1330 = vmatmul.mubr.bf16.gmra.mxu0 %v857
        %v1331 = vpop.f32.mrf.mxu0
        %v1332 = vadd.f32 %v620, %v1331
        %v1333 = vpop.f32.mrf.mxu0
        %v1334 = vadd.f32 %v624, %v1333
        %v1335 = vpop.f32.mrf.mxu0
        %v1336 = vadd.f32 %v620, %v1335
        %v1337 = vpop.f32.mrf.mxu0
        %v1338 = vadd.f32 %v624, %v1337
        %1339 = vmatprep.mubr.bf16.mxu0 %v860
        %1340 = vmatmul.mubr.bf16.gmra.mxu0 %v859
        %v1341 = vpop.f32.mrf.mxu0
        %v1342 = vadd.f32 %v620, %v1341
        %v1343 = vpop.f32.mrf.mxu0
        %v1344 = vadd.f32 %v624, %v1343
        %v1345 = vpop.f32.mrf.mxu0
        %v1346 = vadd.f32 %v620, %v1345
        %v1347 = vpop.f32.mrf.mxu0
        %v1348 = vadd.f32 %v624, %v1347
        %1349 = vmatprep.mubr.bf16.mxu0 %v862
        %1350 = vmatmul.mubr.bf16.gmra.mxu0 %v861
        %v1351 = vpop.f32.mrf.mxu0
        %v1352 = vadd.f32 %v620, %v1351
        %v1353 = vpop.f32.mrf.mxu0
        %v1354 = vadd.f32 %v624, %v1353
        %v1355 = vpop.f32.mrf.mxu0
        %v1356 = vadd.f32 %v620, %v1355
        %v1357 = vpop.f32.mrf.mxu0
        %v1358 = vadd.f32 %v624, %v1357
        %1359 = vmatprep.mubr.bf16.mxu0 %v864
        %1360 = vmatmul.mubr.bf16.gmra.mxu0 %v863
        %v1361 = vpop.f32.mrf.mxu0
        %v1362 = vadd.f32 %v620, %v1361
        %v1363 = vpop.f32.mrf.mxu0
        %v1364 = vadd.f32 %v624, %v1363
        %v1365 = vpop.f32.mrf.mxu0
        %v1366 = vadd.f32 %v620, %v1365
        %v1367 = vpop.f32.mrf.mxu0
        %v1368 = vadd.f32 %v624, %v1367
        %1369 = vmatprep.mubr.bf16.mxu0 %v866
        %1370 = vmatmul.mubr.bf16.gmra.mxu0 %v865
        %v1371 = vpop.f32.mrf.mxu0
        %v1372 = vadd.f32 %v620, %v1371
        %v1373 = vpop.f32.mrf.mxu0
        %v1374 = vadd.f32 %v624, %v1373
        %v1375 = vpop.f32.mrf.mxu0
        %v1376 = vadd.f32 %v620, %v1375
        %v1377 = vpop.f32.mrf.mxu0
        %v1378 = vadd.f32 %v624, %v1377
        %1379 = vmatprep.mubr.bf16.mxu0 %v868
        %1380 = vmatmul.mubr.bf16.gmra.mxu0 %v867
        %v1381 = vpop.f32.mrf.mxu0
        %v1382 = vadd.f32 %v620, %v1381
        %v1383 = vpop.f32.mrf.mxu0
        %v1384 = vadd.f32 %v624, %v1383
        %v1385 = vpop.f32.mrf.mxu0
        %v1386 = vadd.f32 %v620, %v1385
        %v1387 = vpop.f32.mrf.mxu0
        %v1388 = vadd.f32 %v624, %v1387
        %1389 = vmatprep.mubr.bf16.mxu0 %v870
        %1390 = vmatmul.mubr.bf16.gmra.mxu0 %v869
        %v1391 = vpop.f32.mrf.mxu0
        %v1392 = vadd.f32 %v620, %v1391
        %v1393 = vpop.f32.mrf.mxu0
        %v1394 = vadd.f32 %v624, %v1393
        %v1395 = vpop.f32.mrf.mxu0
        %v1396 = vadd.f32 %v620, %v1395
        %v1397 = vpop.f32.mrf.mxu0
        %v1398 = vadd.f32 %v624, %v1397
        %1399 = vmatprep.mubr.bf16.mxu0 %v872
        %1400 = vmatmul.mubr.bf16.gmra.mxu0 %v871
        %v1401 = vpop.f32.mrf.mxu0
        %v1402 = vadd.f32 %v620, %v1401
        %v1403 = vpop.f32.mrf.mxu0
        %v1404 = vadd.f32 %v624, %v1403
        %v1405 = vpop.f32.mrf.mxu0
        %v1406 = vadd.f32 %v620, %v1405
        %v1407 = vpop.f32.mrf.mxu0
        %v1408 = vadd.f32 %v624, %v1407
        %1409 = vmatprep.mubr.bf16.mxu0 %v874
        %1410 = vmatmul.mubr.bf16.gmra.mxu0 %v873
        %v1411 = vpop.f32.mrf.mxu0
        %v1412 = vadd.f32 %v620, %v1411
        %v1413 = vpop.f32.mrf.mxu0
        %v1414 = vadd.f32 %v624, %v1413
        %v1415 = vpop.f32.mrf.mxu0
        %v1416 = vadd.f32 %v620, %v1415
        %v1417 = vpop.f32.mrf.mxu0
        %v1418 = vadd.f32 %v624, %v1417
        %1419 = vmatprep.mubr.bf16.mxu0 %v876
        %1420 = vmatmul.mubr.bf16.gmra.mxu0 %v875
        %v1421 = vpop.f32.mrf.mxu0
        %v1422 = vadd.f32 %v620, %v1421
        %v1423 = vpop.f32.mrf.mxu0
        %v1424 = vadd.f32 %v624, %v1423
        %v1425 = vpop.f32.mrf.mxu0
        %v1426 = vadd.f32 %v620, %v1425
        %v1427 = vpop.f32.mrf.mxu0
        %v1428 = vadd.f32 %v624, %v1427
        %1429 = vmatprep.mubr.bf16.mxu0 %v878
        %1430 = vmatmul.mubr.bf16.gmra.mxu0 %v877
        %v1431 = vpop.f32.mrf.mxu0
        %v1432 = vadd.f32 %v620, %v1431
        %v1433 = vpop.f32.mrf.mxu0
        %v1434 = vadd.f32 %v624, %v1433
        %v1435 = vpop.f32.mrf.mxu0
        %v1436 = vadd.f32 %v620, %v1435
        %v1437 = vpop.f32.mrf.mxu0
        %v1438 = vadd.f32 %v624, %v1437
        %1439 = vmatprep.mubr.bf16.mxu0 %v880
        %1440 = vmatmul.mubr.bf16.gmra.mxu0 %v879
        %v1441 = vpop.f32.mrf.mxu0
        %v1442 = vadd.f32 %v620, %v1441
        %v1443 = vpop.f32.mrf.mxu0
        %v1444 = vadd.f32 %v624, %v1443
        %v1445 = vpop.f32.mrf.mxu0
        %v1446 = vadd.f32 %v620, %v1445
        %v1447 = vpop.f32.mrf.mxu0
        %v1448 = vadd.f32 %v624, %v1447
        %1449 = vmatprep.mubr.bf16.mxu0 %v882
        %1450 = vmatmul.mubr.bf16.gmra.mxu0 %v881
        %v1451 = vpop.f32.mrf.mxu0
        %v1452 = vadd.f32 %v620, %v1451
        %v1453 = vpop.f32.mrf.mxu0
        %v1454 = vadd.f32 %v624, %v1453
        %v1455 = vpop.f32.mrf.mxu0
        %v1456 = vadd.f32 %v620, %v1455
        %v1457 = vpop.f32.mrf.mxu0
        %v1458 = vadd.f32 %v624, %v1457
        %1459 = vdwg.mxu0
        %v1460 = vmax.f32 %v1142, 0.0
        %v1461 = vmax.f32 %v1144, 0.0
        %v1462 = vmax.f32 %v1146, 0.0
        %v1463 = vmax.f32 %v1148, 0.0
        %v1464 = vmax.f32 %v1152, 0.0
        %v1465 = vmax.f32 %v1154, 0.0
        %v1466 = vmax.f32 %v1156, 0.0
        %v1467 = vmax.f32 %v1158, 0.0
        %v1468 = vmax.f32 %v1162, 0.0
        %v1469 = vmax.f32 %v1164, 0.0
        %v1470 = vmax.f32 %v1166, 0.0
        %v1471 = vmax.f32 %v1168, 0.0
        %v1472 = vmax.f32 %v1172, 0.0
        %v1473 = vmax.f32 %v1174, 0.0
        %v1474 = vmax.f32 %v1176, 0.0
        %v1475 = vmax.f32 %v1178, 0.0
        %v1476 = vmax.f32 %v1182, 0.0
        %v1477 = vmax.f32 %v1184, 0.0
        %v1478 = vmax.f32 %v1186, 0.0
        %v1479 = vmax.f32 %v1188, 0.0
        %v1480 = vmax.f32 %v1192, 0.0
        %v1481 = vmax.f32 %v1194, 0.0
        %v1482 = vmax.f32 %v1196, 0.0
        %v1483 = vmax.f32 %v1198, 0.0
        %v1484 = vmax.f32 %v1202, 0.0
        %v1485 = vmax.f32 %v1204, 0.0
        %v1486 = vmax.f32 %v1206, 0.0
        %v1487 = vmax.f32 %v1208, 0.0
        %v1488 = vmax.f32 %v1212, 0.0
        %v1489 = vmax.f32 %v1214, 0.0
        %v1490 = vmax.f32 %v1216, 0.0
        %v1491 = vmax.f32 %v1218, 0.0
        %v1492 = vmax.f32 %v1222, 0.0
        %v1493 = vmax.f32 %v1224, 0.0
        %v1494 = vmax.f32 %v1226, 0.0
        %v1495 = vmax.f32 %v1228, 0.0
        %v1496 = vmax.f32 %v1232, 0.0
        %v1497 = vmax.f32 %v1234, 0.0
        %v1498 = vmax.f32 %v1236, 0.0
        %v1499 = vmax.f32 %v1238, 0.0
        %v1500 = vmax.f32 %v1242, 0.0
        %v1501 = vmax.f32 %v1244, 0.0
        %v1502 = vmax.f32 %v1246, 0.0
        %v1503 = vmax.f32 %v1248, 0.0
        %v1504 = vmax.f32 %v1252, 0.0
        %v1505 = vmax.f32 %v1254, 0.0
        %v1506 = vmax.f32 %v1256, 0.0
        %v1507 = vmax.f32 %v1258, 0.0
        %v1508 = vmax.f32 %v1262, 0.0
        %v1509 = vmax.f32 %v1264, 0.0
        %v1510 = vmax.f32 %v1266, 0.0
        %v1511 = vmax.f32 %v1268, 0.0
        %v1512 = vmax.f32 %v1272, 0.0
        %v1513 = vmax.f32 %v1274, 0.0
        %v1514 = vmax.f32 %v1276, 0.0
        %v1515 = vmax.f32 %v1278, 0.0
        %v1516 = vmax.f32 %v1282, 0.0
        %v1517 = vmax.f32 %v1284, 0.0
        %v1518 = vmax.f32 %v1286, 0.0
        %v1519 = vmax.f32 %v1288, 0.0
        %v1520 = vmax.f32 %v1292, 0.0
        %v1521 = vmax.f32 %v1294, 0.0
        %v1522 = vmax.f32 %v1296, 0.0
        %v1523 = vmax.f32 %v1298, 0.0
        %v1524 = vmax.f32 %v1302, 0.0
        %v1525 = vmax.f32 %v1304, 0.0
        %v1526 = vmax.f32 %v1306, 0.0
        %v1527 = vmax.f32 %v1308, 0.0
        %v1528 = vmax.f32 %v1312, 0.0
        %v1529 = vmax.f32 %v1314, 0.0
        %v1530 = vmax.f32 %v1316, 0.0
        %v1531 = vmax.f32 %v1318, 0.0
        %v1532 = vmax.f32 %v1322, 0.0
        %v1533 = vmax.f32 %v1324, 0.0
        %v1534 = vmax.f32 %v1326, 0.0
        %v1535 = vmax.f32 %v1328, 0.0
        %v1536 = vmax.f32 %v1332, 0.0
        %v1537 = vmax.f32 %v1334, 0.0
        %v1538 = vmax.f32 %v1336, 0.0
        %v1539 = vmax.f32 %v1338, 0.0
        %v1540 = vmax.f32 %v1342, 0.0
        %v1541 = vmax.f32 %v1344, 0.0
        %v1542 = vmax.f32 %v1346, 0.0
        %v1543 = vmax.f32 %v1348, 0.0
        %v1544 = vmax.f32 %v1352, 0.0
        %v1545 = vmax.f32 %v1354, 0.0
        %v1546 = vmax.f32 %v1356, 0.0
        %v1547 = vmax.f32 %v1358, 0.0
        %v1548 = vmax.f32 %v1362, 0.0
        %v1549 = vmax.f32 %v1364, 0.0
        %v1550 = vmax.f32 %v1366, 0.0
        %v1551 = vmax.f32 %v1368, 0.0
        %v1552 = vmax.f32 %v1372, 0.0
        %v1553 = vmax.f32 %v1374, 0.0
        %v1554 = vmax.f32 %v1376, 0.0
        %v1555 = vmax.f32 %v1378, 0.0
        %v1556 = vmax.f32 %v1382, 0.0
        %v1557 = vmax.f32 %v1384, 0.0
        %v1558 = vmax.f32 %v1386, 0.0
        %v1559 = vmax.f32 %v1388, 0.0
        %v1560 = vmax.f32 %v1392, 0.0
        %v1561 = vmax.f32 %v1394, 0.0
        %v1562 = vmax.f32 %v1396, 0.0
        %v1563 = vmax.f32 %v1398, 0.0
        %v1564 = vmax.f32 %v1402, 0.0
        %v1565 = vmax.f32 %v1404, 0.0
        %v1566 = vmax.f32 %v1406, 0.0
        %v1567 = vmax.f32 %v1408, 0.0
        %v1568 = vmax.f32 %v1412, 0.0
        %v1569 = vmax.f32 %v1414, 0.0
        %v1570 = vmax.f32 %v1416, 0.0
        %v1571 = vmax.f32 %v1418, 0.0
        %v1572 = vmax.f32 %v1422, 0.0
        %v1573 = vmax.f32 %v1424, 0.0
        %v1574 = vmax.f32 %v1426, 0.0
        %v1575 = vmax.f32 %v1428, 0.0
        %v1576 = vmax.f32 %v1432, 0.0
        %v1577 = vmax.f32 %v1434, 0.0
        %v1578 = vmax.f32 %v1436, 0.0
        %v1579 = vmax.f32 %v1438, 0.0
        %v1580 = vmax.f32 %v1442, 0.0
        %v1581 = vmax.f32 %v1444, 0.0
        %v1582 = vmax.f32 %v1446, 0.0
        %v1583 = vmax.f32 %v1448, 0.0
        %v1584 = vmax.f32 %v1452, 0.0
        %v1585 = vmax.f32 %v1454, 0.0
        %v1586 = vmax.f32 %v1456, 0.0
        %v1587 = vmax.f32 %v1458, 0.0
        %v1588 = vpack.c.bf16 %v1462, %v1460
        %v1589 = vpack.c.bf16 %v1463, %v1461
        %v1590 = vpack.c.bf16 %v1466, %v1464
        %v1591 = vpack.c.bf16 %v1467, %v1465
        %v1592 = vpack.c.bf16 %v1470, %v1468
        %v1593 = vpack.c.bf16 %v1471, %v1469
        %v1594 = vpack.c.bf16 %v1474, %v1472
        %v1595 = vpack.c.bf16 %v1475, %v1473
        %v1596 = vpack.c.bf16 %v1478, %v1476
        %v1597 = vpack.c.bf16 %v1479, %v1477
        %v1598 = vpack.c.bf16 %v1482, %v1480
        %v1599 = vpack.c.bf16 %v1483, %v1481
        %v1600 = vpack.c.bf16 %v1486, %v1484
        %v1601 = vpack.c.bf16 %v1487, %v1485
        %v1602 = vpack.c.bf16 %v1490, %v1488
        %v1603 = vpack.c.bf16 %v1491, %v1489
        %v1604 = vpack.c.bf16 %v1494, %v1492
        %v1605 = vpack.c.bf16 %v1495, %v1493
        %v1606 = vpack.c.bf16 %v1498, %v1496
        %v1607 = vpack.c.bf16 %v1499, %v1497
        %v1608 = vpack.c.bf16 %v1502, %v1500
        %v1609 = vpack.c.bf16 %v1503, %v1501
        %v1610 = vpack.c.bf16 %v1506, %v1504
        %v1611 = vpack.c.bf16 %v1507, %v1505
        %v1612 = vpack.c.bf16 %v1510, %v1508
        %v1613 = vpack.c.bf16 %v1511, %v1509
        %v1614 = vpack.c.bf16 %v1514, %v1512
        %v1615 = vpack.c.bf16 %v1515, %v1513
        %v1616 = vpack.c.bf16 %v1518, %v1516
        %v1617 = vpack.c.bf16 %v1519, %v1517
        %v1618 = vpack.c.bf16 %v1522, %v1520
        %v1619 = vpack.c.bf16 %v1523, %v1521
        %v1620 = vpack.c.bf16 %v1526, %v1524
        %v1621 = vpack.c.bf16 %v1527, %v1525
        %v1622 = vpack.c.bf16 %v1530, %v1528
        %v1623 = vpack.c.bf16 %v1531, %v1529
        %v1624 = vpack.c.bf16 %v1534, %v1532
        %v1625 = vpack.c.bf16 %v1535, %v1533
        %v1626 = vpack.c.bf16 %v1538, %v1536
        %v1627 = vpack.c.bf16 %v1539, %v1537
        %v1628 = vpack.c.bf16 %v1542, %v1540
        %v1629 = vpack.c.bf16 %v1543, %v1541
        %v1630 = vpack.c.bf16 %v1546, %v1544
        %v1631 = vpack.c.bf16 %v1547, %v1545
        %v1632 = vpack.c.bf16 %v1550, %v1548
        %v1633 = vpack.c.bf16 %v1551, %v1549
        %v1634 = vpack.c.bf16 %v1554, %v1552
        %v1635 = vpack.c.bf16 %v1555, %v1553
        %v1636 = vpack.c.bf16 %v1558, %v1556
        %v1637 = vpack.c.bf16 %v1559, %v1557
        %v1638 = vpack.c.bf16 %v1562, %v1560
        %v1639 = vpack.c.bf16 %v1563, %v1561
        %v1640 = vpack.c.bf16 %v1566, %v1564
        %v1641 = vpack.c.bf16 %v1567, %v1565
        %v1642 = vpack.c.bf16 %v1570, %v1568
        %v1643 = vpack.c.bf16 %v1571, %v1569
        %v1644 = vpack.c.bf16 %v1574, %v1572
        %v1645 = vpack.c.bf16 %v1575, %v1573
        %v1646 = vpack.c.bf16 %v1578, %v1576
        %v1647 = vpack.c.bf16 %v1579, %v1577
        %v1648 = vpack.c.bf16 %v1582, %v1580
        %v1649 = vpack.c.bf16 %v1583, %v1581
        %v1650 = vpack.c.bf16 %v1586, %v1584
        %v1651 = vpack.c.bf16 %v1587, %v1585
        %v1652 = vld [vmem:[#allocation13] sm:$0xff]
        %v1653 = vld [vmem:[#allocation13 + $0x8] sm:$0xff]
        %v1654 = vld [vmem:[#allocation13 + $0x10] sm:$0xff]
        %v1655 = vld [vmem:[#allocation13 + $0x18] sm:$0xff]
        %v1656 = vld [vmem:[#allocation13 + $0x20] sm:$0xff]
        %v1657 = vld [vmem:[#allocation13 + $0x28] sm:$0xff]
        %v1658 = vld [vmem:[#allocation13 + $0x30] sm:$0xff]
        %v1659 = vld [vmem:[#allocation13 + $0x38] sm:$0xff]
        %v1660 = vld [vmem:[#allocation13 + $0x40] sm:$0xff]
        %v1661 = vld [vmem:[#allocation13 + $0x48] sm:$0xff]
        %v1662 = vld [vmem:[#allocation13 + $0x50] sm:$0xff]
        %v1663 = vld [vmem:[#allocation13 + $0x58] sm:$0xff]
        %v1664 = vld [vmem:[#allocation13 + $0x60] sm:$0xff]
        %v1665 = vld [vmem:[#allocation13 + $0x68] sm:$0xff]
        %v1666 = vld [vmem:[#allocation13 + $0x70] sm:$0xff]
        %v1667 = vld [vmem:[#allocation13 + $0x78] sm:$0xff]
        %v1668 = vld [vmem:[#allocation13 + $0x80] sm:$0xff]
        %v1669 = vld [vmem:[#allocation13 + $0x88] sm:$0xff]
        %v1670 = vld [vmem:[#allocation13 + $0x90] sm:$0xff]
        %v1671 = vld [vmem:[#allocation13 + $0x98] sm:$0xff]
        %v1672 = vld [vmem:[#allocation13 + $0xa0] sm:$0xff]
        %v1673 = vld [vmem:[#allocation13 + $0xa8] sm:$0xff]
        %v1674 = vld [vmem:[#allocation13 + $0xb0] sm:$0xff]
        %v1675 = vld [vmem:[#allocation13 + $0xb8] sm:$0xff]
        %v1676 = vld [vmem:[#allocation13 + $0xc0] sm:$0xff]
        %v1677 = vld [vmem:[#allocation13 + $0xc8] sm:$0xff]
        %v1678 = vld [vmem:[#allocation13 + $0xd0] sm:$0xff]
        %v1679 = vld [vmem:[#allocation13 + $0xd8] sm:$0xff]
        %v1680 = vld [vmem:[#allocation13 + $0xe0] sm:$0xff]
        %v1681 = vld [vmem:[#allocation13 + $0xe8] sm:$0xff]
        %v1682 = vld [vmem:[#allocation13 + $0xf0] sm:$0xff]
        %v1683 = vld [vmem:[#allocation13 + $0xf8] sm:$0xff]
        %v1684 = vld [vmem:[%s5] sm:$0x3]
        %v1686 = vlaneseq
        %v1687 = vshrl.u32 %v1686, 7
        %v1688 = vsub.s32 0, %v1687
        %v1689 = vrot.slane %v1684, %v1688
        %v1690 = vlaneseq
        %v1691 = vshrl.u32 %v1690, 7
        %v1692 = vsub.s32 1, %v1691
        %v1693 = vrot.slane %v1684, %v1692
        %v1728 = vunpack.c.l.b16 %v1652
        %v1729 = vunpack.c.h.b16 %v1652
        %v1730 = vunpack.c.l.b16 %v1653
        %v1731 = vunpack.c.h.b16 %v1653
        %v1732 = vunpack.c.l.b16 %v1654
        %v1733 = vunpack.c.h.b16 %v1654
        %v1734 = vunpack.c.l.b16 %v1655
        %v1735 = vunpack.c.h.b16 %v1655
        %v1736 = vunpack.c.l.b16 %v1656
        %v1737 = vunpack.c.h.b16 %v1656
        %v1738 = vunpack.c.l.b16 %v1657
        %v1739 = vunpack.c.h.b16 %v1657
        %v1740 = vunpack.c.l.b16 %v1658
        %v1741 = vunpack.c.h.b16 %v1658
        %v1742 = vunpack.c.l.b16 %v1659
        %v1743 = vunpack.c.h.b16 %v1659
        %v1744 = vunpack.c.l.b16 %v1660
        %v1745 = vunpack.c.h.b16 %v1660
        %v1746 = vunpack.c.l.b16 %v1661
        %v1747 = vunpack.c.h.b16 %v1661
        %v1748 = vunpack.c.l.b16 %v1662
        %v1749 = vunpack.c.h.b16 %v1662
        %v1750 = vunpack.c.l.b16 %v1663
        %v1751 = vunpack.c.h.b16 %v1663
        %v1752 = vunpack.c.l.b16 %v1664
        %v1753 = vunpack.c.h.b16 %v1664
        %v1754 = vunpack.c.l.b16 %v1665
        %v1755 = vunpack.c.h.b16 %v1665
        %v1756 = vunpack.c.l.b16 %v1666
        %v1757 = vunpack.c.h.b16 %v1666
        %v1758 = vunpack.c.l.b16 %v1667
        %v1759 = vunpack.c.h.b16 %v1667
        %v1760 = vunpack.c.l.b16 %v1668
        %v1761 = vunpack.c.h.b16 %v1668
        %v1762 = vunpack.c.l.b16 %v1669
        %v1763 = vunpack.c.h.b16 %v1669
        %v1764 = vunpack.c.l.b16 %v1670
        %v1765 = vunpack.c.h.b16 %v1670
        %v1766 = vunpack.c.l.b16 %v1671
        %v1767 = vunpack.c.h.b16 %v1671
        %v1768 = vunpack.c.l.b16 %v1672
        %v1769 = vunpack.c.h.b16 %v1672
        %v1770 = vunpack.c.l.b16 %v1673
        %v1771 = vunpack.c.h.b16 %v1673
        %v1772 = vunpack.c.l.b16 %v1674
        %v1773 = vunpack.c.h.b16 %v1674
        %v1774 = vunpack.c.l.b16 %v1675
        %v1775 = vunpack.c.h.b16 %v1675
        %v1776 = vunpack.c.l.b16 %v1676
        %v1777 = vunpack.c.h.b16 %v1676
        %v1778 = vunpack.c.l.b16 %v1677
        %v1779 = vunpack.c.h.b16 %v1677
        %v1780 = vunpack.c.l.b16 %v1678
        %v1781 = vunpack.c.h.b16 %v1678
        %v1782 = vunpack.c.l.b16 %v1679
        %v1783 = vunpack.c.h.b16 %v1679
        %v1784 = vunpack.c.l.b16 %v1680
        %v1785 = vunpack.c.h.b16 %v1680
        %v1786 = vunpack.c.l.b16 %v1681
        %v1787 = vunpack.c.h.b16 %v1681
        %v1788 = vunpack.c.l.b16 %v1682
        %v1789 = vunpack.c.h.b16 %v1682
        %v1790 = vunpack.c.l.b16 %v1683
        %v1791 = vunpack.c.h.b16 %v1683
        %v1792 = vpack.c.b16 %v1730, %v1728
        %v1793 = vpack.c.b16 %v1731, %v1729
        %v1794 = vpack.c.b16 %v1734, %v1732
        %v1795 = vpack.c.b16 %v1735, %v1733
        %v1796 = vpack.c.b16 %v1738, %v1736
        %v1797 = vpack.c.b16 %v1739, %v1737
        %v1798 = vpack.c.b16 %v1742, %v1740
        %v1799 = vpack.c.b16 %v1743, %v1741
        %v1800 = vpack.c.b16 %v1746, %v1744
        %v1801 = vpack.c.b16 %v1747, %v1745
        %v1802 = vpack.c.b16 %v1750, %v1748
        %v1803 = vpack.c.b16 %v1751, %v1749
        %v1804 = vpack.c.b16 %v1754, %v1752
        %v1805 = vpack.c.b16 %v1755, %v1753
        %v1806 = vpack.c.b16 %v1758, %v1756
        %v1807 = vpack.c.b16 %v1759, %v1757
        %v1808 = vpack.c.b16 %v1762, %v1760
        %v1809 = vpack.c.b16 %v1763, %v1761
        %v1810 = vpack.c.b16 %v1766, %v1764
        %v1811 = vpack.c.b16 %v1767, %v1765
        %v1812 = vpack.c.b16 %v1770, %v1768
        %v1813 = vpack.c.b16 %v1771, %v1769
        %v1814 = vpack.c.b16 %v1774, %v1772
        %v1815 = vpack.c.b16 %v1775, %v1773
        %v1816 = vpack.c.b16 %v1778, %v1776
        %v1817 = vpack.c.b16 %v1779, %v1777
        %v1818 = vpack.c.b16 %v1782, %v1780
        %v1819 = vpack.c.b16 %v1783, %v1781
        %v1820 = vpack.c.b16 %v1786, %v1784
        %v1821 = vpack.c.b16 %v1787, %v1785
        %v1822 = vpack.c.b16 %v1790, %v1788
        %v1823 = vpack.c.b16 %v1791, %v1789
        %1856 = vmatprep.subr.bf16.mxu0 %v1807
        %1857 = vmatpush1.bf16.msra.mxu0 %v1806
        %1858 = vmatprep.subr.bf16.mxu0 %v1805
        %1859 = vmatpush1.bf16.msra.mxu0 %v1804
        %1860 = vmatprep.subr.bf16.mxu0 %v1803
        %1861 = vmatpush1.bf16.msra.mxu0 %v1802
        %1862 = vmatprep.subr.bf16.mxu0 %v1801
        %1863 = vmatpush1.bf16.msra.mxu0 %v1800
        %1864 = vmatprep.subr.bf16.mxu0 %v1799
        %1865 = vmatpush1.bf16.msra.mxu0 %v1798
        %1866 = vmatprep.subr.bf16.mxu0 %v1797
        %1867 = vmatpush1.bf16.msra.mxu0 %v1796
        %1868 = vmatprep.subr.bf16.mxu0 %v1795
        %1869 = vmatpush1.bf16.msra.mxu0 %v1794
        %1870 = vmatprep.subr.bf16.mxu0 %v1793
        %1871 = vmatpush1.bf16.msra.mxu0 %v1792
        %1872 = vmatprep.subr.bf16.mxu0 %v1823
        %1873 = vmatpush2.bf16.msra.mxu0 %v1822
        %1874 = vmatprep.subr.bf16.mxu0 %v1821
        %1875 = vmatpush2.bf16.msra.mxu0 %v1820
        %1876 = vmatprep.subr.bf16.mxu0 %v1819
        %1877 = vmatpush2.bf16.msra.mxu0 %v1818
        %1878 = vmatprep.subr.bf16.mxu0 %v1817
        %1879 = vmatpush2.bf16.msra.mxu0 %v1816
        %1880 = vmatprep.subr.bf16.mxu0 %v1815
        %1881 = vmatpush2.bf16.msra.mxu0 %v1814
        %1882 = vmatprep.subr.bf16.mxu0 %v1813
        %1883 = vmatpush2.bf16.msra.mxu0 %v1812
        %1884 = vmatprep.subr.bf16.mxu0 %v1811
        %1885 = vmatpush2.bf16.msra.mxu0 %v1810
        %1886 = vmatprep.subr.bf16.mxu0 %v1809
        %1887 = vmatpush2.bf16.msra.mxu0 %v1808
        %1888 = vmatprep.mubr.bf16.mxu0 %v1589
        %1889 = vmatmul.mubr.bf16.gmra.mxu0 %v1588
        %v1890 = vpop.f32.mrf.mxu0
        %v1891 = vadd.f32 %v1689, %v1890
        %v1892 = vpop.f32.mrf.mxu0
        %v1893 = vadd.f32 %v1693, %v1892
        %v1894 = vpop.f32.mrf.mxu0
        %v1895 = vadd.f32 %v1689, %v1894
        %v1896 = vpop.f32.mrf.mxu0
        %v1897 = vadd.f32 %v1693, %v1896
        %1898 = vmatprep.mubr.bf16.mxu0 %v1591
        %1899 = vmatmul.mubr.bf16.gmra.mxu0 %v1590
        %v1900 = vpop.f32.mrf.mxu0
        %v1901 = vadd.f32 %v1689, %v1900
        %v1902 = vpop.f32.mrf.mxu0
        %v1903 = vadd.f32 %v1693, %v1902
        %v1904 = vpop.f32.mrf.mxu0
        %v1905 = vadd.f32 %v1689, %v1904
        %v1906 = vpop.f32.mrf.mxu0
        %v1907 = vadd.f32 %v1693, %v1906
        %1908 = vmatprep.mubr.bf16.mxu0 %v1593
        %1909 = vmatmul.mubr.bf16.gmra.mxu0 %v1592
        %v1910 = vpop.f32.mrf.mxu0
        %v1911 = vadd.f32 %v1689, %v1910
        %v1912 = vpop.f32.mrf.mxu0
        %v1913 = vadd.f32 %v1693, %v1912
        %v1914 = vpop.f32.mrf.mxu0
        %v1915 = vadd.f32 %v1689, %v1914
        %v1916 = vpop.f32.mrf.mxu0
        %v1917 = vadd.f32 %v1693, %v1916
        %1918 = vmatprep.mubr.bf16.mxu0 %v1595
        %1919 = vmatmul.mubr.bf16.gmra.mxu0 %v1594
        %v1920 = vpop.f32.mrf.mxu0
        %v1921 = vadd.f32 %v1689, %v1920
        %v1922 = vpop.f32.mrf.mxu0
        %v1923 = vadd.f32 %v1693, %v1922
        %v1924 = vpop.f32.mrf.mxu0
        %v1925 = vadd.f32 %v1689, %v1924
        %v1926 = vpop.f32.mrf.mxu0
        %v1927 = vadd.f32 %v1693, %v1926
        %1928 = vmatprep.mubr.bf16.mxu0 %v1597
        %1929 = vmatmul.mubr.bf16.gmra.mxu0 %v1596
        %v1930 = vpop.f32.mrf.mxu0
        %v1931 = vadd.f32 %v1689, %v1930
        %v1932 = vpop.f32.mrf.mxu0
        %v1933 = vadd.f32 %v1693, %v1932
        %v1934 = vpop.f32.mrf.mxu0
        %v1935 = vadd.f32 %v1689, %v1934
        %v1936 = vpop.f32.mrf.mxu0
        %v1937 = vadd.f32 %v1693, %v1936
        %1938 = vmatprep.mubr.bf16.mxu0 %v1599
        %1939 = vmatmul.mubr.bf16.gmra.mxu0 %v1598
        %v1940 = vpop.f32.mrf.mxu0
        %v1941 = vadd.f32 %v1689, %v1940
        %v1942 = vpop.f32.mrf.mxu0
        %v1943 = vadd.f32 %v1693, %v1942
        %v1944 = vpop.f32.mrf.mxu0
        %v1945 = vadd.f32 %v1689, %v1944
        %v1946 = vpop.f32.mrf.mxu0
        %v1947 = vadd.f32 %v1693, %v1946
        %1948 = vmatprep.mubr.bf16.mxu0 %v1601
        %1949 = vmatmul.mubr.bf16.gmra.mxu0 %v1600
        %v1950 = vpop.f32.mrf.mxu0
        %v1951 = vadd.f32 %v1689, %v1950
        %v1952 = vpop.f32.mrf.mxu0
        %v1953 = vadd.f32 %v1693, %v1952
        %v1954 = vpop.f32.mrf.mxu0
        %v1955 = vadd.f32 %v1689, %v1954
        %v1956 = vpop.f32.mrf.mxu0
        %v1957 = vadd.f32 %v1693, %v1956
        %1958 = vmatprep.mubr.bf16.mxu0 %v1603
        %1959 = vmatmul.mubr.bf16.gmra.mxu0 %v1602
        %v1960 = vpop.f32.mrf.mxu0
        %v1961 = vadd.f32 %v1689, %v1960
        %v1962 = vpop.f32.mrf.mxu0
        %v1963 = vadd.f32 %v1693, %v1962
        %v1964 = vpop.f32.mrf.mxu0
        %v1965 = vadd.f32 %v1689, %v1964
        %v1966 = vpop.f32.mrf.mxu0
        %v1967 = vadd.f32 %v1693, %v1966
        %1968 = vmatprep.mubr.bf16.mxu0 %v1605
        %1969 = vmatmul.mubr.bf16.gmra.mxu0 %v1604
        %v1970 = vpop.f32.mrf.mxu0
        %v1971 = vadd.f32 %v1689, %v1970
        %v1972 = vpop.f32.mrf.mxu0
        %v1973 = vadd.f32 %v1693, %v1972
        %v1974 = vpop.f32.mrf.mxu0
        %v1975 = vadd.f32 %v1689, %v1974
        %v1976 = vpop.f32.mrf.mxu0
        %v1977 = vadd.f32 %v1693, %v1976
        %1978 = vmatprep.mubr.bf16.mxu0 %v1607
        %1979 = vmatmul.mubr.bf16.gmra.mxu0 %v1606
        %v1980 = vpop.f32.mrf.mxu0
        %v1981 = vadd.f32 %v1689, %v1980
        %v1982 = vpop.f32.mrf.mxu0
        %v1983 = vadd.f32 %v1693, %v1982
        %v1984 = vpop.f32.mrf.mxu0
        %v1985 = vadd.f32 %v1689, %v1984
        %v1986 = vpop.f32.mrf.mxu0
        %v1987 = vadd.f32 %v1693, %v1986
        %1988 = vmatprep.mubr.bf16.mxu0 %v1609
        %1989 = vmatmul.mubr.bf16.gmra.mxu0 %v1608
        %v1990 = vpop.f32.mrf.mxu0
        %v1991 = vadd.f32 %v1689, %v1990
        %v1992 = vpop.f32.mrf.mxu0
        %v1993 = vadd.f32 %v1693, %v1992
        %v1994 = vpop.f32.mrf.mxu0
        %v1995 = vadd.f32 %v1689, %v1994
        %v1996 = vpop.f32.mrf.mxu0
        %v1997 = vadd.f32 %v1693, %v1996
        %1998 = vmatprep.mubr.bf16.mxu0 %v1611
        %1999 = vmatmul.mubr.bf16.gmra.mxu0 %v1610
        %v2000 = vpop.f32.mrf.mxu0
        %v2001 = vadd.f32 %v1689, %v2000
        %v2002 = vpop.f32.mrf.mxu0
        %v2003 = vadd.f32 %v1693, %v2002
        %v2004 = vpop.f32.mrf.mxu0
        %v2005 = vadd.f32 %v1689, %v2004
        %v2006 = vpop.f32.mrf.mxu0
        %v2007 = vadd.f32 %v1693, %v2006
        %2008 = vmatprep.mubr.bf16.mxu0 %v1613
        %2009 = vmatmul.mubr.bf16.gmra.mxu0 %v1612
        %v2010 = vpop.f32.mrf.mxu0
        %v2011 = vadd.f32 %v1689, %v2010
        %v2012 = vpop.f32.mrf.mxu0
        %v2013 = vadd.f32 %v1693, %v2012
        %v2014 = vpop.f32.mrf.mxu0
        %v2015 = vadd.f32 %v1689, %v2014
        %v2016 = vpop.f32.mrf.mxu0
        %v2017 = vadd.f32 %v1693, %v2016
        %2018 = vmatprep.mubr.bf16.mxu0 %v1615
        %2019 = vmatmul.mubr.bf16.gmra.mxu0 %v1614
        %v2020 = vpop.f32.mrf.mxu0
        %v2021 = vadd.f32 %v1689, %v2020
        %v2022 = vpop.f32.mrf.mxu0
        %v2023 = vadd.f32 %v1693, %v2022
        %v2024 = vpop.f32.mrf.mxu0
        %v2025 = vadd.f32 %v1689, %v2024
        %v2026 = vpop.f32.mrf.mxu0
        %v2027 = vadd.f32 %v1693, %v2026
        %2028 = vmatprep.mubr.bf16.mxu0 %v1617
        %2029 = vmatmul.mubr.bf16.gmra.mxu0 %v1616
        %v2030 = vpop.f32.mrf.mxu0
        %v2031 = vadd.f32 %v1689, %v2030
        %v2032 = vpop.f32.mrf.mxu0
        %v2033 = vadd.f32 %v1693, %v2032
        %v2034 = vpop.f32.mrf.mxu0
        %v2035 = vadd.f32 %v1689, %v2034
        %v2036 = vpop.f32.mrf.mxu0
        %v2037 = vadd.f32 %v1693, %v2036
        %2038 = vmatprep.mubr.bf16.mxu0 %v1619
        %2039 = vmatmul.mubr.bf16.gmra.mxu0 %v1618
        %v2040 = vpop.f32.mrf.mxu0
        %v2041 = vadd.f32 %v1689, %v2040
        %v2042 = vpop.f32.mrf.mxu0
        %v2043 = vadd.f32 %v1693, %v2042
        %v2044 = vpop.f32.mrf.mxu0
        %v2045 = vadd.f32 %v1689, %v2044
        %v2046 = vpop.f32.mrf.mxu0
        %v2047 = vadd.f32 %v1693, %v2046
        %2048 = vmatprep.mubr.bf16.mxu0 %v1621
        %2049 = vmatmul.mubr.bf16.gmra.mxu0 %v1620
        %v2050 = vpop.f32.mrf.mxu0
        %v2051 = vadd.f32 %v1689, %v2050
        %v2052 = vpop.f32.mrf.mxu0
        %v2053 = vadd.f32 %v1693, %v2052
        %v2054 = vpop.f32.mrf.mxu0
        %v2055 = vadd.f32 %v1689, %v2054
        %v2056 = vpop.f32.mrf.mxu0
        %v2057 = vadd.f32 %v1693, %v2056
        %2058 = vmatprep.mubr.bf16.mxu0 %v1623
        %2059 = vmatmul.mubr.bf16.gmra.mxu0 %v1622
        %v2060 = vpop.f32.mrf.mxu0
        %v2061 = vadd.f32 %v1689, %v2060
        %v2062 = vpop.f32.mrf.mxu0
        %v2063 = vadd.f32 %v1693, %v2062
        %v2064 = vpop.f32.mrf.mxu0
        %v2065 = vadd.f32 %v1689, %v2064
        %v2066 = vpop.f32.mrf.mxu0
        %v2067 = vadd.f32 %v1693, %v2066
        %2068 = vmatprep.mubr.bf16.mxu0 %v1625
        %2069 = vmatmul.mubr.bf16.gmra.mxu0 %v1624
        %v2070 = vpop.f32.mrf.mxu0
        %v2071 = vadd.f32 %v1689, %v2070
        %v2072 = vpop.f32.mrf.mxu0
        %v2073 = vadd.f32 %v1693, %v2072
        %v2074 = vpop.f32.mrf.mxu0
        %v2075 = vadd.f32 %v1689, %v2074
        %v2076 = vpop.f32.mrf.mxu0
        %v2077 = vadd.f32 %v1693, %v2076
        %2078 = vmatprep.mubr.bf16.mxu0 %v1627
        %2079 = vmatmul.mubr.bf16.gmra.mxu0 %v1626
        %v2080 = vpop.f32.mrf.mxu0
        %v2081 = vadd.f32 %v1689, %v2080
        %v2082 = vpop.f32.mrf.mxu0
        %v2083 = vadd.f32 %v1693, %v2082
        %v2084 = vpop.f32.mrf.mxu0
        %v2085 = vadd.f32 %v1689, %v2084
        %v2086 = vpop.f32.mrf.mxu0
        %v2087 = vadd.f32 %v1693, %v2086
        %2088 = vmatprep.mubr.bf16.mxu0 %v1629
        %2089 = vmatmul.mubr.bf16.gmra.mxu0 %v1628
        %v2090 = vpop.f32.mrf.mxu0
        %v2091 = vadd.f32 %v1689, %v2090
        %v2092 = vpop.f32.mrf.mxu0
        %v2093 = vadd.f32 %v1693, %v2092
        %v2094 = vpop.f32.mrf.mxu0
        %v2095 = vadd.f32 %v1689, %v2094
        %v2096 = vpop.f32.mrf.mxu0
        %v2097 = vadd.f32 %v1693, %v2096
        %2098 = vmatprep.mubr.bf16.mxu0 %v1631
        %2099 = vmatmul.mubr.bf16.gmra.mxu0 %v1630
        %v2100 = vpop.f32.mrf.mxu0
        %v2101 = vadd.f32 %v1689, %v2100
        %v2102 = vpop.f32.mrf.mxu0
        %v2103 = vadd.f32 %v1693, %v2102
        %v2104 = vpop.f32.mrf.mxu0
        %v2105 = vadd.f32 %v1689, %v2104
        %v2106 = vpop.f32.mrf.mxu0
        %v2107 = vadd.f32 %v1693, %v2106
        %2108 = vmatprep.mubr.bf16.mxu0 %v1633
        %2109 = vmatmul.mubr.bf16.gmra.mxu0 %v1632
        %v2110 = vpop.f32.mrf.mxu0
        %v2111 = vadd.f32 %v1689, %v2110
        %v2112 = vpop.f32.mrf.mxu0
        %v2113 = vadd.f32 %v1693, %v2112
        %v2114 = vpop.f32.mrf.mxu0
        %v2115 = vadd.f32 %v1689, %v2114
        %v2116 = vpop.f32.mrf.mxu0
        %v2117 = vadd.f32 %v1693, %v2116
        %2118 = vmatprep.mubr.bf16.mxu0 %v1635
        %2119 = vmatmul.mubr.bf16.gmra.mxu0 %v1634
        %v2120 = vpop.f32.mrf.mxu0
        %v2121 = vadd.f32 %v1689, %v2120
        %v2122 = vpop.f32.mrf.mxu0
        %v2123 = vadd.f32 %v1693, %v2122
        %v2124 = vpop.f32.mrf.mxu0
        %v2125 = vadd.f32 %v1689, %v2124
        %v2126 = vpop.f32.mrf.mxu0
        %v2127 = vadd.f32 %v1693, %v2126
        %2128 = vmatprep.mubr.bf16.mxu0 %v1637
        %2129 = vmatmul.mubr.bf16.gmra.mxu0 %v1636
        %v2130 = vpop.f32.mrf.mxu0
        %v2131 = vadd.f32 %v1689, %v2130
        %v2132 = vpop.f32.mrf.mxu0
        %v2133 = vadd.f32 %v1693, %v2132
        %v2134 = vpop.f32.mrf.mxu0
        %v2135 = vadd.f32 %v1689, %v2134
        %v2136 = vpop.f32.mrf.mxu0
        %v2137 = vadd.f32 %v1693, %v2136
        %2138 = vmatprep.mubr.bf16.mxu0 %v1639
        %2139 = vmatmul.mubr.bf16.gmra.mxu0 %v1638
        %v2140 = vpop.f32.mrf.mxu0
        %v2141 = vadd.f32 %v1689, %v2140
        %v2142 = vpop.f32.mrf.mxu0
        %v2143 = vadd.f32 %v1693, %v2142
        %v2144 = vpop.f32.mrf.mxu0
        %v2145 = vadd.f32 %v1689, %v2144
        %v2146 = vpop.f32.mrf.mxu0
        %v2147 = vadd.f32 %v1693, %v2146
        %2148 = vmatprep.mubr.bf16.mxu0 %v1641
        %2149 = vmatmul.mubr.bf16.gmra.mxu0 %v1640
        %v2150 = vpop.f32.mrf.mxu0
        %v2151 = vadd.f32 %v1689, %v2150
        %v2152 = vpop.f32.mrf.mxu0
        %v2153 = vadd.f32 %v1693, %v2152
        %v2154 = vpop.f32.mrf.mxu0
        %v2155 = vadd.f32 %v1689, %v2154
        %v2156 = vpop.f32.mrf.mxu0
        %v2157 = vadd.f32 %v1693, %v2156
        %2158 = vmatprep.mubr.bf16.mxu0 %v1643
        %2159 = vmatmul.mubr.bf16.gmra.mxu0 %v1642
        %v2160 = vpop.f32.mrf.mxu0
        %v2161 = vadd.f32 %v1689, %v2160
        %v2162 = vpop.f32.mrf.mxu0
        %v2163 = vadd.f32 %v1693, %v2162
        %v2164 = vpop.f32.mrf.mxu0
        %v2165 = vadd.f32 %v1689, %v2164
        %v2166 = vpop.f32.mrf.mxu0
        %v2167 = vadd.f32 %v1693, %v2166
        %2168 = vmatprep.mubr.bf16.mxu0 %v1645
        %2169 = vmatmul.mubr.bf16.gmra.mxu0 %v1644
        %v2170 = vpop.f32.mrf.mxu0
        %v2171 = vadd.f32 %v1689, %v2170
        %v2172 = vpop.f32.mrf.mxu0
        %v2173 = vadd.f32 %v1693, %v2172
        %v2174 = vpop.f32.mrf.mxu0
        %v2175 = vadd.f32 %v1689, %v2174
        %v2176 = vpop.f32.mrf.mxu0
        %v2177 = vadd.f32 %v1693, %v2176
        %2178 = vmatprep.mubr.bf16.mxu0 %v1647
        %2179 = vmatmul.mubr.bf16.gmra.mxu0 %v1646
        %v2180 = vpop.f32.mrf.mxu0
        %v2181 = vadd.f32 %v1689, %v2180
        %v2182 = vpop.f32.mrf.mxu0
        %v2183 = vadd.f32 %v1693, %v2182
        %v2184 = vpop.f32.mrf.mxu0
        %v2185 = vadd.f32 %v1689, %v2184
        %v2186 = vpop.f32.mrf.mxu0
        %v2187 = vadd.f32 %v1693, %v2186
        %2188 = vmatprep.mubr.bf16.mxu0 %v1649
        %2189 = vmatmul.mubr.bf16.gmra.mxu0 %v1648
        %v2190 = vpop.f32.mrf.mxu0
        %v2191 = vadd.f32 %v1689, %v2190
        %v2192 = vpop.f32.mrf.mxu0
        %v2193 = vadd.f32 %v1693, %v2192
        %v2194 = vpop.f32.mrf.mxu0
        %v2195 = vadd.f32 %v1689, %v2194
        %v2196 = vpop.f32.mrf.mxu0
        %v2197 = vadd.f32 %v1693, %v2196
        %2198 = vmatprep.mubr.bf16.mxu0 %v1651
        %2199 = vmatmul.mubr.bf16.gmra.mxu0 %v1650
        %v2200 = vpop.f32.mrf.mxu0
        %v2201 = vadd.f32 %v1689, %v2200
        %v2202 = vpop.f32.mrf.mxu0
        %v2203 = vadd.f32 %v1693, %v2202
        %v2204 = vpop.f32.mrf.mxu0
        %v2205 = vadd.f32 %v1689, %v2204
        %v2206 = vpop.f32.mrf.mxu0
        %v2207 = vadd.f32 %v1693, %v2206
        %2208 = vdwg.mxu0
        %v2209 = vmax.f32 %v1891, 0.0
        %v2210 = vmax.f32 %v1893, 0.0
        %v2211 = vmax.f32 %v1895, 0.0
        %v2212 = vmax.f32 %v1897, 0.0
        %v2213 = vmax.f32 %v1901, 0.0
        %v2214 = vmax.f32 %v1903, 0.0
        %v2215 = vmax.f32 %v1905, 0.0
        %v2216 = vmax.f32 %v1907, 0.0
        %v2217 = vmax.f32 %v1911, 0.0
        %v2218 = vmax.f32 %v1913, 0.0
        %v2219 = vmax.f32 %v1915, 0.0
        %v2220 = vmax.f32 %v1917, 0.0
        %v2221 = vmax.f32 %v1921, 0.0
        %v2222 = vmax.f32 %v1923, 0.0
        %v2223 = vmax.f32 %v1925, 0.0
        %v2224 = vmax.f32 %v1927, 0.0
        %v2225 = vmax.f32 %v1931, 0.0
        %v2226 = vmax.f32 %v1933, 0.0
        %v2227 = vmax.f32 %v1935, 0.0
        %v2228 = vmax.f32 %v1937, 0.0
        %v2229 = vmax.f32 %v1941, 0.0
        %v2230 = vmax.f32 %v1943, 0.0
        %v2231 = vmax.f32 %v1945, 0.0
        %v2232 = vmax.f32 %v1947, 0.0
        %v2233 = vmax.f32 %v1951, 0.0
        %v2234 = vmax.f32 %v1953, 0.0
        %v2235 = vmax.f32 %v1955, 0.0
        %v2236 = vmax.f32 %v1957, 0.0
        %v2237 = vmax.f32 %v1961, 0.0
        %v2238 = vmax.f32 %v1963, 0.0
        %v2239 = vmax.f32 %v1965, 0.0
        %v2240 = vmax.f32 %v1967, 0.0
        %v2241 = vmax.f32 %v1971, 0.0
        %v2242 = vmax.f32 %v1973, 0.0
        %v2243 = vmax.f32 %v1975, 0.0
        %v2244 = vmax.f32 %v1977, 0.0
        %v2245 = vmax.f32 %v1981, 0.0
        %v2246 = vmax.f32 %v1983, 0.0
        %v2247 = vmax.f32 %v1985, 0.0
        %v2248 = vmax.f32 %v1987, 0.0
        %v2249 = vmax.f32 %v1991, 0.0
        %v2250 = vmax.f32 %v1993, 0.0
        %v2251 = vmax.f32 %v1995, 0.0
        %v2252 = vmax.f32 %v1997, 0.0
        %v2253 = vmax.f32 %v2001, 0.0
        %v2254 = vmax.f32 %v2003, 0.0
        %v2255 = vmax.f32 %v2005, 0.0
        %v2256 = vmax.f32 %v2007, 0.0
        %v2257 = vmax.f32 %v2011, 0.0
        %v2258 = vmax.f32 %v2013, 0.0
        %v2259 = vmax.f32 %v2015, 0.0
        %v2260 = vmax.f32 %v2017, 0.0
        %v2261 = vmax.f32 %v2021, 0.0
        %v2262 = vmax.f32 %v2023, 0.0
        %v2263 = vmax.f32 %v2025, 0.0
        %v2264 = vmax.f32 %v2027, 0.0
        %v2265 = vmax.f32 %v2031, 0.0
        %v2266 = vmax.f32 %v2033, 0.0
        %v2267 = vmax.f32 %v2035, 0.0
        %v2268 = vmax.f32 %v2037, 0.0
        %v2269 = vmax.f32 %v2041, 0.0
        %v2270 = vmax.f32 %v2043, 0.0
        %v2271 = vmax.f32 %v2045, 0.0
        %v2272 = vmax.f32 %v2047, 0.0
        %v2273 = vmax.f32 %v2051, 0.0
        %v2274 = vmax.f32 %v2053, 0.0
        %v2275 = vmax.f32 %v2055, 0.0
        %v2276 = vmax.f32 %v2057, 0.0
        %v2277 = vmax.f32 %v2061, 0.0
        %v2278 = vmax.f32 %v2063, 0.0
        %v2279 = vmax.f32 %v2065, 0.0
        %v2280 = vmax.f32 %v2067, 0.0
        %v2281 = vmax.f32 %v2071, 0.0
        %v2282 = vmax.f32 %v2073, 0.0
        %v2283 = vmax.f32 %v2075, 0.0
        %v2284 = vmax.f32 %v2077, 0.0
        %v2285 = vmax.f32 %v2081, 0.0
        %v2286 = vmax.f32 %v2083, 0.0
        %v2287 = vmax.f32 %v2085, 0.0
        %v2288 = vmax.f32 %v2087, 0.0
        %v2289 = vmax.f32 %v2091, 0.0
        %v2290 = vmax.f32 %v2093, 0.0
        %v2291 = vmax.f32 %v2095, 0.0
        %v2292 = vmax.f32 %v2097, 0.0
        %v2293 = vmax.f32 %v2101, 0.0
        %v2294 = vmax.f32 %v2103, 0.0
        %v2295 = vmax.f32 %v2105, 0.0
        %v2296 = vmax.f32 %v2107, 0.0
        %v2297 = vmax.f32 %v2111, 0.0
        %v2298 = vmax.f32 %v2113, 0.0
        %v2299 = vmax.f32 %v2115, 0.0
        %v2300 = vmax.f32 %v2117, 0.0
        %v2301 = vmax.f32 %v2121, 0.0
        %v2302 = vmax.f32 %v2123, 0.0
        %v2303 = vmax.f32 %v2125, 0.0
        %v2304 = vmax.f32 %v2127, 0.0
        %v2305 = vmax.f32 %v2131, 0.0
        %v2306 = vmax.f32 %v2133, 0.0
        %v2307 = vmax.f32 %v2135, 0.0
        %v2308 = vmax.f32 %v2137, 0.0
        %v2309 = vmax.f32 %v2141, 0.0
        %v2310 = vmax.f32 %v2143, 0.0
        %v2311 = vmax.f32 %v2145, 0.0
        %v2312 = vmax.f32 %v2147, 0.0
        %v2313 = vmax.f32 %v2151, 0.0
        %v2314 = vmax.f32 %v2153, 0.0
        %v2315 = vmax.f32 %v2155, 0.0
        %v2316 = vmax.f32 %v2157, 0.0
        %v2317 = vmax.f32 %v2161, 0.0
        %v2318 = vmax.f32 %v2163, 0.0
        %v2319 = vmax.f32 %v2165, 0.0
        %v2320 = vmax.f32 %v2167, 0.0
        %v2321 = vmax.f32 %v2171, 0.0
        %v2322 = vmax.f32 %v2173, 0.0
        %v2323 = vmax.f32 %v2175, 0.0
        %v2324 = vmax.f32 %v2177, 0.0
        %v2325 = vmax.f32 %v2181, 0.0
        %v2326 = vmax.f32 %v2183, 0.0
        %v2327 = vmax.f32 %v2185, 0.0
        %v2328 = vmax.f32 %v2187, 0.0
        %v2329 = vmax.f32 %v2191, 0.0
        %v2330 = vmax.f32 %v2193, 0.0
        %v2331 = vmax.f32 %v2195, 0.0
        %v2332 = vmax.f32 %v2197, 0.0
        %v2333 = vmax.f32 %v2201, 0.0
        %v2334 = vmax.f32 %v2203, 0.0
        %v2335 = vmax.f32 %v2205, 0.0
        %v2336 = vmax.f32 %v2207, 0.0
        %v2337 = vpack.c.bf16 %v2211, %v2209
        %v2338 = vpack.c.bf16 %v2212, %v2210
        %v2339 = vpack.c.bf16 %v2215, %v2213
        %v2340 = vpack.c.bf16 %v2216, %v2214
        %v2341 = vpack.c.bf16 %v2219, %v2217
        %v2342 = vpack.c.bf16 %v2220, %v2218
        %v2343 = vpack.c.bf16 %v2223, %v2221
        %v2344 = vpack.c.bf16 %v2224, %v2222
        %v2345 = vpack.c.bf16 %v2227, %v2225
        %v2346 = vpack.c.bf16 %v2228, %v2226
        %v2347 = vpack.c.bf16 %v2231, %v2229
        %v2348 = vpack.c.bf16 %v2232, %v2230
        %v2349 = vpack.c.bf16 %v2235, %v2233
        %v2350 = vpack.c.bf16 %v2236, %v2234
        %v2351 = vpack.c.bf16 %v2239, %v2237
        %v2352 = vpack.c.bf16 %v2240, %v2238
        %v2353 = vpack.c.bf16 %v2243, %v2241
        %v2354 = vpack.c.bf16 %v2244, %v2242
        %v2355 = vpack.c.bf16 %v2247, %v2245
        %v2356 = vpack.c.bf16 %v2248, %v2246
        %v2357 = vpack.c.bf16 %v2251, %v2249
        %v2358 = vpack.c.bf16 %v2252, %v2250
        %v2359 = vpack.c.bf16 %v2255, %v2253
        %v2360 = vpack.c.bf16 %v2256, %v2254
        %v2361 = vpack.c.bf16 %v2259, %v2257
        %v2362 = vpack.c.bf16 %v2260, %v2258
        %v2363 = vpack.c.bf16 %v2263, %v2261
        %v2364 = vpack.c.bf16 %v2264, %v2262
        %v2365 = vpack.c.bf16 %v2267, %v2265
        %v2366 = vpack.c.bf16 %v2268, %v2266
        %v2367 = vpack.c.bf16 %v2271, %v2269
        %v2368 = vpack.c.bf16 %v2272, %v2270
        %v2369 = vpack.c.bf16 %v2275, %v2273
        %v2370 = vpack.c.bf16 %v2276, %v2274
        %v2371 = vpack.c.bf16 %v2279, %v2277
        %v2372 = vpack.c.bf16 %v2280, %v2278
        %v2373 = vpack.c.bf16 %v2283, %v2281
        %v2374 = vpack.c.bf16 %v2284, %v2282
        %v2375 = vpack.c.bf16 %v2287, %v2285
        %v2376 = vpack.c.bf16 %v2288, %v2286
        %v2377 = vpack.c.bf16 %v2291, %v2289
        %v2378 = vpack.c.bf16 %v2292, %v2290
        %v2379 = vpack.c.bf16 %v2295, %v2293
        %v2380 = vpack.c.bf16 %v2296, %v2294
        %v2381 = vpack.c.bf16 %v2299, %v2297
        %v2382 = vpack.c.bf16 %v2300, %v2298
        %v2383 = vpack.c.bf16 %v2303, %v2301
        %v2384 = vpack.c.bf16 %v2304, %v2302
        %v2385 = vpack.c.bf16 %v2307, %v2305
        %v2386 = vpack.c.bf16 %v2308, %v2306
        %v2387 = vpack.c.bf16 %v2311, %v2309
        %v2388 = vpack.c.bf16 %v2312, %v2310
        %v2389 = vpack.c.bf16 %v2315, %v2313
        %v2390 = vpack.c.bf16 %v2316, %v2314
        %v2391 = vpack.c.bf16 %v2319, %v2317
        %v2392 = vpack.c.bf16 %v2320, %v2318
        %v2393 = vpack.c.bf16 %v2323, %v2321
        %v2394 = vpack.c.bf16 %v2324, %v2322
        %v2395 = vpack.c.bf16 %v2327, %v2325
        %v2396 = vpack.c.bf16 %v2328, %v2326
        %v2397 = vpack.c.bf16 %v2331, %v2329
        %v2398 = vpack.c.bf16 %v2332, %v2330
        %v2399 = vpack.c.bf16 %v2335, %v2333
        %v2400 = vpack.c.bf16 %v2336, %v2334
        %v2401 = vld [vmem:[#allocation14] sm:$0xff]
        %v2402 = vld [vmem:[#allocation14 + $0x8] sm:$0xff]
        %v2403 = vld [vmem:[#allocation14 + $0x10] sm:$0xff]
        %v2404 = vld [vmem:[#allocation14 + $0x18] sm:$0xff]
        %v2405 = vld [vmem:[#allocation14 + $0x20] sm:$0xff]
        %v2406 = vld [vmem:[#allocation14 + $0x28] sm:$0xff]
        %v2407 = vld [vmem:[#allocation14 + $0x30] sm:$0xff]
        %v2408 = vld [vmem:[#allocation14 + $0x38] sm:$0xff]
        %v2409 = vld [vmem:[#allocation14 + $0x40] sm:$0xff]
        %v2410 = vld [vmem:[#allocation14 + $0x48] sm:$0xff]
        %v2411 = vld [vmem:[#allocation14 + $0x50] sm:$0xff]
        %v2412 = vld [vmem:[#allocation14 + $0x58] sm:$0xff]
        %v2413 = vld [vmem:[#allocation14 + $0x60] sm:$0xff]
        %v2414 = vld [vmem:[#allocation14 + $0x68] sm:$0xff]
        %v2415 = vld [vmem:[#allocation14 + $0x70] sm:$0xff]
        %v2416 = vld [vmem:[#allocation14 + $0x78] sm:$0xff]
        %v2417 = vld [vmem:[#allocation14 + $0x80] sm:$0xff]
        %v2418 = vld [vmem:[#allocation14 + $0x88] sm:$0xff]
        %v2419 = vld [vmem:[#allocation14 + $0x90] sm:$0xff]
        %v2420 = vld [vmem:[#allocation14 + $0x98] sm:$0xff]
        %v2421 = vld [vmem:[#allocation14 + $0xa0] sm:$0xff]
        %v2422 = vld [vmem:[#allocation14 + $0xa8] sm:$0xff]
        %v2423 = vld [vmem:[#allocation14 + $0xb0] sm:$0xff]
        %v2424 = vld [vmem:[#allocation14 + $0xb8] sm:$0xff]
        %v2425 = vld [vmem:[#allocation14 + $0xc0] sm:$0xff]
        %v2426 = vld [vmem:[#allocation14 + $0xc8] sm:$0xff]
        %v2427 = vld [vmem:[#allocation14 + $0xd0] sm:$0xff]
        %v2428 = vld [vmem:[#allocation14 + $0xd8] sm:$0xff]
        %v2429 = vld [vmem:[#allocation14 + $0xe0] sm:$0xff]
        %v2430 = vld [vmem:[#allocation14 + $0xe8] sm:$0xff]
        %v2431 = vld [vmem:[#allocation14 + $0xf0] sm:$0xff]
        %v2432 = vld [vmem:[#allocation14 + $0xf8] sm:$0xff]
        %v2433 = vld [vmem:[%s7] sm:$0x3]
        %v2435 = vlaneseq
        %v2436 = vshrl.u32 %v2435, 7
        %v2437 = vsub.s32 0, %v2436
        %v2438 = vrot.slane %v2433, %v2437
        %v2439 = vlaneseq
        %v2440 = vshrl.u32 %v2439, 7
        %v2441 = vsub.s32 1, %v2440
        %v2442 = vrot.slane %v2433, %v2441
        %v2477 = vunpack.c.l.b16 %v2401
        %v2478 = vunpack.c.h.b16 %v2401
        %v2479 = vunpack.c.l.b16 %v2402
        %v2480 = vunpack.c.h.b16 %v2402
        %v2481 = vunpack.c.l.b16 %v2403
        %v2482 = vunpack.c.h.b16 %v2403
        %v2483 = vunpack.c.l.b16 %v2404
        %v2484 = vunpack.c.h.b16 %v2404
        %v2485 = vunpack.c.l.b16 %v2405
        %v2486 = vunpack.c.h.b16 %v2405
        %v2487 = vunpack.c.l.b16 %v2406
        %v2488 = vunpack.c.h.b16 %v2406
        %v2489 = vunpack.c.l.b16 %v2407
        %v2490 = vunpack.c.h.b16 %v2407
        %v2491 = vunpack.c.l.b16 %v2408
        %v2492 = vunpack.c.h.b16 %v2408
        %v2493 = vunpack.c.l.b16 %v2409
        %v2494 = vunpack.c.h.b16 %v2409
        %v2495 = vunpack.c.l.b16 %v2410
        %v2496 = vunpack.c.h.b16 %v2410
        %v2497 = vunpack.c.l.b16 %v2411
        %v2498 = vunpack.c.h.b16 %v2411
        %v2499 = vunpack.c.l.b16 %v2412
        %v2500 = vunpack.c.h.b16 %v2412
        %v2501 = vunpack.c.l.b16 %v2413
        %v2502 = vunpack.c.h.b16 %v2413
        %v2503 = vunpack.c.l.b16 %v2414
        %v2504 = vunpack.c.h.b16 %v2414
        %v2505 = vunpack.c.l.b16 %v2415
        %v2506 = vunpack.c.h.b16 %v2415
        %v2507 = vunpack.c.l.b16 %v2416
        %v2508 = vunpack.c.h.b16 %v2416
        %v2509 = vunpack.c.l.b16 %v2417
        %v2510 = vunpack.c.h.b16 %v2417
        %v2511 = vunpack.c.l.b16 %v2418
        %v2512 = vunpack.c.h.b16 %v2418
        %v2513 = vunpack.c.l.b16 %v2419
        %v2514 = vunpack.c.h.b16 %v2419
        %v2515 = vunpack.c.l.b16 %v2420
        %v2516 = vunpack.c.h.b16 %v2420
        %v2517 = vunpack.c.l.b16 %v2421
        %v2518 = vunpack.c.h.b16 %v2421
        %v2519 = vunpack.c.l.b16 %v2422
        %v2520 = vunpack.c.h.b16 %v2422
        %v2521 = vunpack.c.l.b16 %v2423
        %v2522 = vunpack.c.h.b16 %v2423
        %v2523 = vunpack.c.l.b16 %v2424
        %v2524 = vunpack.c.h.b16 %v2424
        %v2525 = vunpack.c.l.b16 %v2425
        %v2526 = vunpack.c.h.b16 %v2425
        %v2527 = vunpack.c.l.b16 %v2426
        %v2528 = vunpack.c.h.b16 %v2426
        %v2529 = vunpack.c.l.b16 %v2427
        %v2530 = vunpack.c.h.b16 %v2427
        %v2531 = vunpack.c.l.b16 %v2428
        %v2532 = vunpack.c.h.b16 %v2428
        %v2533 = vunpack.c.l.b16 %v2429
        %v2534 = vunpack.c.h.b16 %v2429
        %v2535 = vunpack.c.l.b16 %v2430
        %v2536 = vunpack.c.h.b16 %v2430
        %v2537 = vunpack.c.l.b16 %v2431
        %v2538 = vunpack.c.h.b16 %v2431
        %v2539 = vunpack.c.l.b16 %v2432
        %v2540 = vunpack.c.h.b16 %v2432
        %v2541 = vpack.c.b16 %v2479, %v2477
        %v2542 = vpack.c.b16 %v2480, %v2478
        %v2543 = vpack.c.b16 %v2483, %v2481
        %v2544 = vpack.c.b16 %v2484, %v2482
        %v2545 = vpack.c.b16 %v2487, %v2485
        %v2546 = vpack.c.b16 %v2488, %v2486
        %v2547 = vpack.c.b16 %v2491, %v2489
        %v2548 = vpack.c.b16 %v2492, %v2490
        %v2549 = vpack.c.b16 %v2495, %v2493
        %v2550 = vpack.c.b16 %v2496, %v2494
        %v2551 = vpack.c.b16 %v2499, %v2497
        %v2552 = vpack.c.b16 %v2500, %v2498
        %v2553 = vpack.c.b16 %v2503, %v2501
        %v2554 = vpack.c.b16 %v2504, %v2502
        %v2555 = vpack.c.b16 %v2507, %v2505
        %v2556 = vpack.c.b16 %v2508, %v2506
        %v2557 = vpack.c.b16 %v2511, %v2509
        %v2558 = vpack.c.b16 %v2512, %v2510
        %v2559 = vpack.c.b16 %v2515, %v2513
        %v2560 = vpack.c.b16 %v2516, %v2514
        %v2561 = vpack.c.b16 %v2519, %v2517
        %v2562 = vpack.c.b16 %v2520, %v2518
        %v2563 = vpack.c.b16 %v2523, %v2521
        %v2564 = vpack.c.b16 %v2524, %v2522
        %v2565 = vpack.c.b16 %v2527, %v2525
        %v2566 = vpack.c.b16 %v2528, %v2526
        %v2567 = vpack.c.b16 %v2531, %v2529
        %v2568 = vpack.c.b16 %v2532, %v2530
        %v2569 = vpack.c.b16 %v2535, %v2533
        %v2570 = vpack.c.b16 %v2536, %v2534
        %v2571 = vpack.c.b16 %v2539, %v2537
        %v2572 = vpack.c.b16 %v2540, %v2538
        %2605 = vmatprep.subr.bf16.mxu0 %v2556
        %2606 = vmatpush1.bf16.msra.mxu0 %v2555
        %2607 = vmatprep.subr.bf16.mxu0 %v2554
        %2608 = vmatpush1.bf16.msra.mxu0 %v2553
        %2609 = vmatprep.subr.bf16.mxu0 %v2552
        %2610 = vmatpush1.bf16.msra.mxu0 %v2551
        %2611 = vmatprep.subr.bf16.mxu0 %v2550
        %2612 = vmatpush1.bf16.msra.mxu0 %v2549
        %2613 = vmatprep.subr.bf16.mxu0 %v2548
        %2614 = vmatpush1.bf16.msra.mxu0 %v2547
        %2615 = vmatprep.subr.bf16.mxu0 %v2546
        %2616 = vmatpush1.bf16.msra.mxu0 %v2545
        %2617 = vmatprep.subr.bf16.mxu0 %v2544
        %2618 = vmatpush1.bf16.msra.mxu0 %v2543
        %2619 = vmatprep.subr.bf16.mxu0 %v2542
        %2620 = vmatpush1.bf16.msra.mxu0 %v2541
        %2621 = vmatprep.subr.bf16.mxu0 %v2572
        %2622 = vmatpush2.bf16.msra.mxu0 %v2571
        %2623 = vmatprep.subr.bf16.mxu0 %v2570
        %2624 = vmatpush2.bf16.msra.mxu0 %v2569
        %2625 = vmatprep.subr.bf16.mxu0 %v2568
        %2626 = vmatpush2.bf16.msra.mxu0 %v2567
        %2627 = vmatprep.subr.bf16.mxu0 %v2566
        %2628 = vmatpush2.bf16.msra.mxu0 %v2565
        %2629 = vmatprep.subr.bf16.mxu0 %v2564
        %2630 = vmatpush2.bf16.msra.mxu0 %v2563
        %2631 = vmatprep.subr.bf16.mxu0 %v2562
        %2632 = vmatpush2.bf16.msra.mxu0 %v2561
        %2633 = vmatprep.subr.bf16.mxu0 %v2560
        %2634 = vmatpush2.bf16.msra.mxu0 %v2559
        %2635 = vmatprep.subr.bf16.mxu0 %v2558
        %2636 = vmatpush2.bf16.msra.mxu0 %v2557
        %2637 = vmatprep.mubr.bf16.mxu0 %v2338
        %2638 = vmatmul.mubr.bf16.gmra.mxu0 %v2337
        %v2639 = vpop.f32.mrf.mxu0
        %v2640 = vadd.f32 %v2438, %v2639
        %v2641 = vpop.f32.mrf.mxu0
        %v2642 = vadd.f32 %v2442, %v2641
        %v2643 = vpop.f32.mrf.mxu0
        %v2644 = vadd.f32 %v2438, %v2643
        %v2645 = vpop.f32.mrf.mxu0
        %v2646 = vadd.f32 %v2442, %v2645
        %2647 = vmatprep.mubr.bf16.mxu0 %v2340
        %2648 = vmatmul.mubr.bf16.gmra.mxu0 %v2339
        %v2649 = vpop.f32.mrf.mxu0
        %v2650 = vadd.f32 %v2438, %v2649
        %v2651 = vpop.f32.mrf.mxu0
        %v2652 = vadd.f32 %v2442, %v2651
        %v2653 = vpop.f32.mrf.mxu0
        %v2654 = vadd.f32 %v2438, %v2653
        %v2655 = vpop.f32.mrf.mxu0
        %v2656 = vadd.f32 %v2442, %v2655
        %2657 = vmatprep.mubr.bf16.mxu0 %v2342
        %2658 = vmatmul.mubr.bf16.gmra.mxu0 %v2341
        %v2659 = vpop.f32.mrf.mxu0
        %v2660 = vadd.f32 %v2438, %v2659
        %v2661 = vpop.f32.mrf.mxu0
        %v2662 = vadd.f32 %v2442, %v2661
        %v2663 = vpop.f32.mrf.mxu0
        %v2664 = vadd.f32 %v2438, %v2663
        %v2665 = vpop.f32.mrf.mxu0
        %v2666 = vadd.f32 %v2442, %v2665
        %2667 = vmatprep.mubr.bf16.mxu0 %v2344
        %2668 = vmatmul.mubr.bf16.gmra.mxu0 %v2343
        %v2669 = vpop.f32.mrf.mxu0
        %v2670 = vadd.f32 %v2438, %v2669
        %v2671 = vpop.f32.mrf.mxu0
        %v2672 = vadd.f32 %v2442, %v2671
        %v2673 = vpop.f32.mrf.mxu0
        %v2674 = vadd.f32 %v2438, %v2673
        %v2675 = vpop.f32.mrf.mxu0
        %v2676 = vadd.f32 %v2442, %v2675
        %2677 = vmatprep.mubr.bf16.mxu0 %v2346
        %2678 = vmatmul.mubr.bf16.gmra.mxu0 %v2345
        %v2679 = vpop.f32.mrf.mxu0
        %v2680 = vadd.f32 %v2438, %v2679
        %v2681 = vpop.f32.mrf.mxu0
        %v2682 = vadd.f32 %v2442, %v2681
        %v2683 = vpop.f32.mrf.mxu0
        %v2684 = vadd.f32 %v2438, %v2683
        %v2685 = vpop.f32.mrf.mxu0
        %v2686 = vadd.f32 %v2442, %v2685
        %2687 = vmatprep.mubr.bf16.mxu0 %v2348
        %2688 = vmatmul.mubr.bf16.gmra.mxu0 %v2347
        %v2689 = vpop.f32.mrf.mxu0
        %v2690 = vadd.f32 %v2438, %v2689
        %v2691 = vpop.f32.mrf.mxu0
        %v2692 = vadd.f32 %v2442, %v2691
        %v2693 = vpop.f32.mrf.mxu0
        %v2694 = vadd.f32 %v2438, %v2693
        %v2695 = vpop.f32.mrf.mxu0
        %v2696 = vadd.f32 %v2442, %v2695
        %2697 = vmatprep.mubr.bf16.mxu0 %v2350
        %2698 = vmatmul.mubr.bf16.gmra.mxu0 %v2349
        %v2699 = vpop.f32.mrf.mxu0
        %v2700 = vadd.f32 %v2438, %v2699
        %v2701 = vpop.f32.mrf.mxu0
        %v2702 = vadd.f32 %v2442, %v2701
        %v2703 = vpop.f32.mrf.mxu0
        %v2704 = vadd.f32 %v2438, %v2703
        %v2705 = vpop.f32.mrf.mxu0
        %v2706 = vadd.f32 %v2442, %v2705
        %2707 = vmatprep.mubr.bf16.mxu0 %v2352
        %2708 = vmatmul.mubr.bf16.gmra.mxu0 %v2351
        %v2709 = vpop.f32.mrf.mxu0
        %v2710 = vadd.f32 %v2438, %v2709
        %v2711 = vpop.f32.mrf.mxu0
        %v2712 = vadd.f32 %v2442, %v2711
        %v2713 = vpop.f32.mrf.mxu0
        %v2714 = vadd.f32 %v2438, %v2713
        %v2715 = vpop.f32.mrf.mxu0
        %v2716 = vadd.f32 %v2442, %v2715
        %2717 = vmatprep.mubr.bf16.mxu0 %v2354
        %2718 = vmatmul.mubr.bf16.gmra.mxu0 %v2353
        %v2719 = vpop.f32.mrf.mxu0
        %v2720 = vadd.f32 %v2438, %v2719
        %v2721 = vpop.f32.mrf.mxu0
        %v2722 = vadd.f32 %v2442, %v2721
        %v2723 = vpop.f32.mrf.mxu0
        %v2724 = vadd.f32 %v2438, %v2723
        %v2725 = vpop.f32.mrf.mxu0
        %v2726 = vadd.f32 %v2442, %v2725
        %2727 = vmatprep.mubr.bf16.mxu0 %v2356
        %2728 = vmatmul.mubr.bf16.gmra.mxu0 %v2355
        %v2729 = vpop.f32.mrf.mxu0
        %v2730 = vadd.f32 %v2438, %v2729
        %v2731 = vpop.f32.mrf.mxu0
        %v2732 = vadd.f32 %v2442, %v2731
        %v2733 = vpop.f32.mrf.mxu0
        %v2734 = vadd.f32 %v2438, %v2733
        %v2735 = vpop.f32.mrf.mxu0
        %v2736 = vadd.f32 %v2442, %v2735
        %2737 = vmatprep.mubr.bf16.mxu0 %v2358
        %2738 = vmatmul.mubr.bf16.gmra.mxu0 %v2357
        %v2739 = vpop.f32.mrf.mxu0
        %v2740 = vadd.f32 %v2438, %v2739
        %v2741 = vpop.f32.mrf.mxu0
        %v2742 = vadd.f32 %v2442, %v2741
        %v2743 = vpop.f32.mrf.mxu0
        %v2744 = vadd.f32 %v2438, %v2743
        %v2745 = vpop.f32.mrf.mxu0
        %v2746 = vadd.f32 %v2442, %v2745
        %2747 = vmatprep.mubr.bf16.mxu0 %v2360
        %2748 = vmatmul.mubr.bf16.gmra.mxu0 %v2359
        %v2749 = vpop.f32.mrf.mxu0
        %v2750 = vadd.f32 %v2438, %v2749
        %v2751 = vpop.f32.mrf.mxu0
        %v2752 = vadd.f32 %v2442, %v2751
        %v2753 = vpop.f32.mrf.mxu0
        %v2754 = vadd.f32 %v2438, %v2753
        %v2755 = vpop.f32.mrf.mxu0
        %v2756 = vadd.f32 %v2442, %v2755
        %2757 = vmatprep.mubr.bf16.mxu0 %v2362
        %2758 = vmatmul.mubr.bf16.gmra.mxu0 %v2361
        %v2759 = vpop.f32.mrf.mxu0
        %v2760 = vadd.f32 %v2438, %v2759
        %v2761 = vpop.f32.mrf.mxu0
        %v2762 = vadd.f32 %v2442, %v2761
        %v2763 = vpop.f32.mrf.mxu0
        %v2764 = vadd.f32 %v2438, %v2763
        %v2765 = vpop.f32.mrf.mxu0
        %v2766 = vadd.f32 %v2442, %v2765
        %2767 = vmatprep.mubr.bf16.mxu0 %v2364
        %2768 = vmatmul.mubr.bf16.gmra.mxu0 %v2363
        %v2769 = vpop.f32.mrf.mxu0
        %v2770 = vadd.f32 %v2438, %v2769
        %v2771 = vpop.f32.mrf.mxu0
        %v2772 = vadd.f32 %v2442, %v2771
        %v2773 = vpop.f32.mrf.mxu0
        %v2774 = vadd.f32 %v2438, %v2773
        %v2775 = vpop.f32.mrf.mxu0
        %v2776 = vadd.f32 %v2442, %v2775
        %2777 = vmatprep.mubr.bf16.mxu0 %v2366
        %2778 = vmatmul.mubr.bf16.gmra.mxu0 %v2365
        %v2779 = vpop.f32.mrf.mxu0
        %v2780 = vadd.f32 %v2438, %v2779
        %v2781 = vpop.f32.mrf.mxu0
        %v2782 = vadd.f32 %v2442, %v2781
        %v2783 = vpop.f32.mrf.mxu0
        %v2784 = vadd.f32 %v2438, %v2783
        %v2785 = vpop.f32.mrf.mxu0
        %v2786 = vadd.f32 %v2442, %v2785
        %2787 = vmatprep.mubr.bf16.mxu0 %v2368
        %2788 = vmatmul.mubr.bf16.gmra.mxu0 %v2367
        %v2789 = vpop.f32.mrf.mxu0
        %v2790 = vadd.f32 %v2438, %v2789
        %v2791 = vpop.f32.mrf.mxu0
        %v2792 = vadd.f32 %v2442, %v2791
        %v2793 = vpop.f32.mrf.mxu0
        %v2794 = vadd.f32 %v2438, %v2793
        %v2795 = vpop.f32.mrf.mxu0
        %v2796 = vadd.f32 %v2442, %v2795
        %2797 = vmatprep.mubr.bf16.mxu0 %v2370
        %2798 = vmatmul.mubr.bf16.gmra.mxu0 %v2369
        %v2799 = vpop.f32.mrf.mxu0
        %v2800 = vadd.f32 %v2438, %v2799
        %v2801 = vpop.f32.mrf.mxu0
        %v2802 = vadd.f32 %v2442, %v2801
        %v2803 = vpop.f32.mrf.mxu0
        %v2804 = vadd.f32 %v2438, %v2803
        %v2805 = vpop.f32.mrf.mxu0
        %v2806 = vadd.f32 %v2442, %v2805
        %2807 = vmatprep.mubr.bf16.mxu0 %v2372
        %2808 = vmatmul.mubr.bf16.gmra.mxu0 %v2371
        %v2809 = vpop.f32.mrf.mxu0
        %v2810 = vadd.f32 %v2438, %v2809
        %v2811 = vpop.f32.mrf.mxu0
        %v2812 = vadd.f32 %v2442, %v2811
        %v2813 = vpop.f32.mrf.mxu0
        %v2814 = vadd.f32 %v2438, %v2813
        %v2815 = vpop.f32.mrf.mxu0
        %v2816 = vadd.f32 %v2442, %v2815
        %2817 = vmatprep.mubr.bf16.mxu0 %v2374
        %2818 = vmatmul.mubr.bf16.gmra.mxu0 %v2373
        %v2819 = vpop.f32.mrf.mxu0
        %v2820 = vadd.f32 %v2438, %v2819
        %v2821 = vpop.f32.mrf.mxu0
        %v2822 = vadd.f32 %v2442, %v2821
        %v2823 = vpop.f32.mrf.mxu0
        %v2824 = vadd.f32 %v2438, %v2823
        %v2825 = vpop.f32.mrf.mxu0
        %v2826 = vadd.f32 %v2442, %v2825
        %2827 = vmatprep.mubr.bf16.mxu0 %v2376
        %2828 = vmatmul.mubr.bf16.gmra.mxu0 %v2375
        %v2829 = vpop.f32.mrf.mxu0
        %v2830 = vadd.f32 %v2438, %v2829
        %v2831 = vpop.f32.mrf.mxu0
        %v2832 = vadd.f32 %v2442, %v2831
        %v2833 = vpop.f32.mrf.mxu0
        %v2834 = vadd.f32 %v2438, %v2833
        %v2835 = vpop.f32.mrf.mxu0
        %v2836 = vadd.f32 %v2442, %v2835
        %2837 = vmatprep.mubr.bf16.mxu0 %v2378
        %2838 = vmatmul.mubr.bf16.gmra.mxu0 %v2377
        %v2839 = vpop.f32.mrf.mxu0
        %v2840 = vadd.f32 %v2438, %v2839
        %v2841 = vpop.f32.mrf.mxu0
        %v2842 = vadd.f32 %v2442, %v2841
        %v2843 = vpop.f32.mrf.mxu0
        %v2844 = vadd.f32 %v2438, %v2843
        %v2845 = vpop.f32.mrf.mxu0
        %v2846 = vadd.f32 %v2442, %v2845
        %2847 = vmatprep.mubr.bf16.mxu0 %v2380
        %2848 = vmatmul.mubr.bf16.gmra.mxu0 %v2379
        %v2849 = vpop.f32.mrf.mxu0
        %v2850 = vadd.f32 %v2438, %v2849
        %v2851 = vpop.f32.mrf.mxu0
        %v2852 = vadd.f32 %v2442, %v2851
        %v2853 = vpop.f32.mrf.mxu0
        %v2854 = vadd.f32 %v2438, %v2853
        %v2855 = vpop.f32.mrf.mxu0
        %v2856 = vadd.f32 %v2442, %v2855
        %2857 = vmatprep.mubr.bf16.mxu0 %v2382
        %2858 = vmatmul.mubr.bf16.gmra.mxu0 %v2381
        %v2859 = vpop.f32.mrf.mxu0
        %v2860 = vadd.f32 %v2438, %v2859
        %v2861 = vpop.f32.mrf.mxu0
        %v2862 = vadd.f32 %v2442, %v2861
        %v2863 = vpop.f32.mrf.mxu0
        %v2864 = vadd.f32 %v2438, %v2863
        %v2865 = vpop.f32.mrf.mxu0
        %v2866 = vadd.f32 %v2442, %v2865
        %2867 = vmatprep.mubr.bf16.mxu0 %v2384
        %2868 = vmatmul.mubr.bf16.gmra.mxu0 %v2383
        %v2869 = vpop.f32.mrf.mxu0
        %v2870 = vadd.f32 %v2438, %v2869
        %v2871 = vpop.f32.mrf.mxu0
        %v2872 = vadd.f32 %v2442, %v2871
        %v2873 = vpop.f32.mrf.mxu0
        %v2874 = vadd.f32 %v2438, %v2873
        %v2875 = vpop.f32.mrf.mxu0
        %v2876 = vadd.f32 %v2442, %v2875
        %2877 = vmatprep.mubr.bf16.mxu0 %v2386
        %2878 = vmatmul.mubr.bf16.gmra.mxu0 %v2385
        %v2879 = vpop.f32.mrf.mxu0
        %v2880 = vadd.f32 %v2438, %v2879
        %v2881 = vpop.f32.mrf.mxu0
        %v2882 = vadd.f32 %v2442, %v2881
        %v2883 = vpop.f32.mrf.mxu0
        %v2884 = vadd.f32 %v2438, %v2883
        %v2885 = vpop.f32.mrf.mxu0
        %v2886 = vadd.f32 %v2442, %v2885
        %2887 = vmatprep.mubr.bf16.mxu0 %v2388
        %2888 = vmatmul.mubr.bf16.gmra.mxu0 %v2387
        %v2889 = vpop.f32.mrf.mxu0
        %v2890 = vadd.f32 %v2438, %v2889
        %v2891 = vpop.f32.mrf.mxu0
        %v2892 = vadd.f32 %v2442, %v2891
        %v2893 = vpop.f32.mrf.mxu0
        %v2894 = vadd.f32 %v2438, %v2893
        %v2895 = vpop.f32.mrf.mxu0
        %v2896 = vadd.f32 %v2442, %v2895
        %2897 = vmatprep.mubr.bf16.mxu0 %v2390
        %2898 = vmatmul.mubr.bf16.gmra.mxu0 %v2389
        %v2899 = vpop.f32.mrf.mxu0
        %v2900 = vadd.f32 %v2438, %v2899
        %v2901 = vpop.f32.mrf.mxu0
        %v2902 = vadd.f32 %v2442, %v2901
        %v2903 = vpop.f32.mrf.mxu0
        %v2904 = vadd.f32 %v2438, %v2903
        %v2905 = vpop.f32.mrf.mxu0
        %v2906 = vadd.f32 %v2442, %v2905
        %2907 = vmatprep.mubr.bf16.mxu0 %v2392
        %2908 = vmatmul.mubr.bf16.gmra.mxu0 %v2391
        %v2909 = vpop.f32.mrf.mxu0
        %v2910 = vadd.f32 %v2438, %v2909
        %v2911 = vpop.f32.mrf.mxu0
        %v2912 = vadd.f32 %v2442, %v2911
        %v2913 = vpop.f32.mrf.mxu0
        %v2914 = vadd.f32 %v2438, %v2913
        %v2915 = vpop.f32.mrf.mxu0
        %v2916 = vadd.f32 %v2442, %v2915
        %2917 = vmatprep.mubr.bf16.mxu0 %v2394
        %2918 = vmatmul.mubr.bf16.gmra.mxu0 %v2393
        %v2919 = vpop.f32.mrf.mxu0
        %v2920 = vadd.f32 %v2438, %v2919
        %v2921 = vpop.f32.mrf.mxu0
        %v2922 = vadd.f32 %v2442, %v2921
        %v2923 = vpop.f32.mrf.mxu0
        %v2924 = vadd.f32 %v2438, %v2923
        %v2925 = vpop.f32.mrf.mxu0
        %v2926 = vadd.f32 %v2442, %v2925
        %2927 = vmatprep.mubr.bf16.mxu0 %v2396
        %2928 = vmatmul.mubr.bf16.gmra.mxu0 %v2395
        %v2929 = vpop.f32.mrf.mxu0
        %v2930 = vadd.f32 %v2438, %v2929
        %v2931 = vpop.f32.mrf.mxu0
        %v2932 = vadd.f32 %v2442, %v2931
        %v2933 = vpop.f32.mrf.mxu0
        %v2934 = vadd.f32 %v2438, %v2933
        %v2935 = vpop.f32.mrf.mxu0
        %v2936 = vadd.f32 %v2442, %v2935
        %2937 = vmatprep.mubr.bf16.mxu0 %v2398
        %2938 = vmatmul.mubr.bf16.gmra.mxu0 %v2397
        %v2939 = vpop.f32.mrf.mxu0
        %v2940 = vadd.f32 %v2438, %v2939
        %v2941 = vpop.f32.mrf.mxu0
        %v2942 = vadd.f32 %v2442, %v2941
        %v2943 = vpop.f32.mrf.mxu0
        %v2944 = vadd.f32 %v2438, %v2943
        %v2945 = vpop.f32.mrf.mxu0
        %v2946 = vadd.f32 %v2442, %v2945
        %2947 = vmatprep.mubr.bf16.mxu0 %v2400
        %2948 = vmatmul.mubr.bf16.gmra.mxu0 %v2399
        %v2949 = vpop.f32.mrf.mxu0
        %v2950 = vadd.f32 %v2438, %v2949
        %v2951 = vpop.f32.mrf.mxu0
        %v2952 = vadd.f32 %v2442, %v2951
        %v2953 = vpop.f32.mrf.mxu0
        %v2954 = vadd.f32 %v2438, %v2953
        %v2955 = vpop.f32.mrf.mxu0
        %v2956 = vadd.f32 %v2442, %v2955
        %2957 = vdwg.mxu0
        %v2958 = vtanh.pop %v2640
        %v2959 = vtanh.pop %v2644
        %v2960 = vtanh.pop %v2650
        %v2961 = vtanh.pop %v2654
        %v2962 = vtanh.pop %v2660
        %v2963 = vtanh.pop %v2664
        %v2964 = vtanh.pop %v2670
        %v2965 = vtanh.pop %v2674
        %v2966 = vtanh.pop %v2680
        %v2967 = vtanh.pop %v2684
        %v2968 = vtanh.pop %v2690
        %v2969 = vtanh.pop %v2694
        %v2970 = vtanh.pop %v2700
        %v2971 = vtanh.pop %v2704
        %v2972 = vtanh.pop %v2710
        %v2973 = vtanh.pop %v2714
        %v2974 = vtanh.pop %v2720
        %v2975 = vtanh.pop %v2724
        %v2976 = vtanh.pop %v2730
        %v2977 = vtanh.pop %v2734
        %v2978 = vtanh.pop %v2740
        %v2979 = vtanh.pop %v2744
        %v2980 = vtanh.pop %v2750
        %v2981 = vtanh.pop %v2754
        %v2982 = vtanh.pop %v2760
        %v2983 = vtanh.pop %v2764
        %v2984 = vtanh.pop %v2770
        %v2985 = vtanh.pop %v2774
        %v2986 = vtanh.pop %v2780
        %v2987 = vtanh.pop %v2784
        %v2988 = vtanh.pop %v2790
        %v2989 = vtanh.pop %v2794
        %v2990 = vtanh.pop %v2800
        %v2991 = vtanh.pop %v2804
        %v2992 = vtanh.pop %v2810
        %v2993 = vtanh.pop %v2814
        %v2994 = vtanh.pop %v2820
        %v2995 = vtanh.pop %v2824
        %v2996 = vtanh.pop %v2830
        %v2997 = vtanh.pop %v2834
        %v2998 = vtanh.pop %v2840
        %v2999 = vtanh.pop %v2844
        %v3000 = vtanh.pop %v2850
        %v3001 = vtanh.pop %v2854
        %v3002 = vtanh.pop %v2860
        %v3003 = vtanh.pop %v2864
        %v3004 = vtanh.pop %v2870
        %v3005 = vtanh.pop %v2874
        %v3006 = vtanh.pop %v2880
        %v3007 = vtanh.pop %v2884
        %v3008 = vtanh.pop %v2890
        %v3009 = vtanh.pop %v2894
        %v3010 = vtanh.pop %v2900
        %v3011 = vtanh.pop %v2904
        %v3012 = vtanh.pop %v2910
        %v3013 = vtanh.pop %v2914
        %v3014 = vtanh.pop %v2920
        %v3015 = vtanh.pop %v2924
        %v3016 = vtanh.pop %v2930
        %v3017 = vtanh.pop %v2934
        %v3018 = vtanh.pop %v2940
        %v3019 = vtanh.pop %v2944
        %v3020 = vtanh.pop %v2950
        %v3021 = vtanh.pop %v2954
        %v3022 = vxor.u32 %v2642, 2147483648
        %v3023 = vxor.u32 %v2646, 2147483648
        %v3024 = vxor.u32 %v2652, 2147483648
        %v3025 = vxor.u32 %v2656, 2147483648
        %v3026 = vxor.u32 %v2662, 2147483648
        %v3027 = vxor.u32 %v2666, 2147483648
        %v3028 = vxor.u32 %v2672, 2147483648
        %v3029 = vxor.u32 %v2676, 2147483648
        %v3030 = vxor.u32 %v2682, 2147483648
        %v3031 = vxor.u32 %v2686, 2147483648
        %v3032 = vxor.u32 %v2692, 2147483648
        %v3033 = vxor.u32 %v2696, 2147483648
        %v3034 = vxor.u32 %v2702, 2147483648
        %v3035 = vxor.u32 %v2706, 2147483648
        %v3036 = vxor.u32 %v2712, 2147483648
        %v3037 = vxor.u32 %v2716, 2147483648
        %v3038 = vxor.u32 %v2722, 2147483648
        %v3039 = vxor.u32 %v2726, 2147483648
        %v3040 = vxor.u32 %v2732, 2147483648
        %v3041 = vxor.u32 %v2736, 2147483648
        %v3042 = vxor.u32 %v2742, 2147483648
        %v3043 = vxor.u32 %v2746, 2147483648
        %v3044 = vxor.u32 %v2752, 2147483648
        %v3045 = vxor.u32 %v2756, 2147483648
        %v3046 = vxor.u32 %v2762, 2147483648
        %v3047 = vxor.u32 %v2766, 2147483648
        %v3048 = vxor.u32 %v2772, 2147483648
        %v3049 = vxor.u32 %v2776, 2147483648
        %v3050 = vxor.u32 %v2782, 2147483648
        %v3051 = vxor.u32 %v2786, 2147483648
        %v3052 = vxor.u32 %v2792, 2147483648
        %v3053 = vxor.u32 %v2796, 2147483648
        %v3054 = vxor.u32 %v2802, 2147483648
        %v3055 = vxor.u32 %v2806, 2147483648
        %v3056 = vxor.u32 %v2812, 2147483648
        %v3057 = vxor.u32 %v2816, 2147483648
        %v3058 = vxor.u32 %v2822, 2147483648
        %v3059 = vxor.u32 %v2826, 2147483648
        %v3060 = vxor.u32 %v2832, 2147483648
        %v3061 = vxor.u32 %v2836, 2147483648
        %v3062 = vxor.u32 %v2842, 2147483648
        %v3063 = vxor.u32 %v2846, 2147483648
        %v3064 = vxor.u32 %v2852, 2147483648
        %v3065 = vxor.u32 %v2856, 2147483648
        %v3066 = vxor.u32 %v2862, 2147483648
        %v3067 = vxor.u32 %v2866, 2147483648
        %v3068 = vxor.u32 %v2872, 2147483648
        %v3069 = vxor.u32 %v2876, 2147483648
        %v3070 = vxor.u32 %v2882, 2147483648
        %v3071 = vxor.u32 %v2886, 2147483648
        %v3072 = vxor.u32 %v2892, 2147483648
        %v3073 = vxor.u32 %v2896, 2147483648
        %v3074 = vxor.u32 %v2902, 2147483648
        %v3075 = vxor.u32 %v2906, 2147483648
        %v3076 = vxor.u32 %v2912, 2147483648
        %v3077 = vxor.u32 %v2916, 2147483648
        %v3078 = vxor.u32 %v2922, 2147483648
        %v3079 = vxor.u32 %v2926, 2147483648
        %v3080 = vxor.u32 %v2932, 2147483648
        %v3081 = vxor.u32 %v2936, 2147483648
        %v3082 = vxor.u32 %v2942, 2147483648
        %v3083 = vxor.u32 %v2946, 2147483648
        %v3084 = vxor.u32 %v2952, 2147483648
        %v3085 = vxor.u32 %v2956, 2147483648
        %v3086 = vmul.f32 %v3022, 1.442695
        %v3087 = vpow.pop %v3086
        %v3088 = vmul.f32 %v3023, 1.442695
        %v3089 = vpow.pop %v3088
        %v3090 = vmul.f32 %v3024, 1.442695
        %v3091 = vpow.pop %v3090
        %v3092 = vmul.f32 %v3025, 1.442695
        %v3093 = vpow.pop %v3092
        %v3094 = vmul.f32 %v3026, 1.442695
        %v3095 = vpow.pop %v3094
        %v3096 = vmul.f32 %v3027, 1.442695
        %v3097 = vpow.pop %v3096
        %v3098 = vmul.f32 %v3028, 1.442695
        %v3099 = vpow.pop %v3098
        %v3100 = vmul.f32 %v3029, 1.442695
        %v3101 = vpow.pop %v3100
        %v3102 = vmul.f32 %v3030, 1.442695
        %v3103 = vpow.pop %v3102
        %v3104 = vmul.f32 %v3031, 1.442695
        %v3105 = vpow.pop %v3104
        %v3106 = vmul.f32 %v3032, 1.442695
        %v3107 = vpow.pop %v3106
        %v3108 = vmul.f32 %v3033, 1.442695
        %v3109 = vpow.pop %v3108
        %v3110 = vmul.f32 %v3034, 1.442695
        %v3111 = vpow.pop %v3110
        %v3112 = vmul.f32 %v3035, 1.442695
        %v3113 = vpow.pop %v3112
        %v3114 = vmul.f32 %v3036, 1.442695
        %v3115 = vpow.pop %v3114
        %v3116 = vmul.f32 %v3037, 1.442695
        %v3117 = vpow.pop %v3116
        %v3118 = vmul.f32 %v3038, 1.442695
        %v3119 = vpow.pop %v3118
        %v3120 = vmul.f32 %v3039, 1.442695
        %v3121 = vpow.pop %v3120
        %v3122 = vmul.f32 %v3040, 1.442695
        %v3123 = vpow.pop %v3122
        %v3124 = vmul.f32 %v3041, 1.442695
        %v3125 = vpow.pop %v3124
        %v3126 = vmul.f32 %v3042, 1.442695
        %v3127 = vpow.pop %v3126
        %v3128 = vmul.f32 %v3043, 1.442695
        %v3129 = vpow.pop %v3128
        %v3130 = vmul.f32 %v3044, 1.442695
        %v3131 = vpow.pop %v3130
        %v3132 = vmul.f32 %v3045, 1.442695
        %v3133 = vpow.pop %v3132
        %v3134 = vmul.f32 %v3046, 1.442695
        %v3135 = vpow.pop %v3134
        %v3136 = vmul.f32 %v3047, 1.442695
        %v3137 = vpow.pop %v3136
        %v3138 = vmul.f32 %v3048, 1.442695
        %v3139 = vpow.pop %v3138
        %v3140 = vmul.f32 %v3049, 1.442695
        %v3141 = vpow.pop %v3140
        %v3142 = vmul.f32 %v3050, 1.442695
        %v3143 = vpow.pop %v3142
        %v3144 = vmul.f32 %v3051, 1.442695
        %v3145 = vpow.pop %v3144
        %v3146 = vmul.f32 %v3052, 1.442695
        %v3147 = vpow.pop %v3146
        %v3148 = vmul.f32 %v3053, 1.442695
        %v3149 = vpow.pop %v3148
        %v3150 = vmul.f32 %v3054, 1.442695
        %v3151 = vpow.pop %v3150
        %v3152 = vmul.f32 %v3055, 1.442695
        %v3153 = vpow.pop %v3152
        %v3154 = vmul.f32 %v3056, 1.442695
        %v3155 = vpow.pop %v3154
        %v3156 = vmul.f32 %v3057, 1.442695
        %v3157 = vpow.pop %v3156
        %v3158 = vmul.f32 %v3058, 1.442695
        %v3159 = vpow.pop %v3158
        %v3160 = vmul.f32 %v3059, 1.442695
        %v3161 = vpow.pop %v3160
        %v3162 = vmul.f32 %v3060, 1.442695
        %v3163 = vpow.pop %v3162
        %v3164 = vmul.f32 %v3061, 1.442695
        %v3165 = vpow.pop %v3164
        %v3166 = vmul.f32 %v3062, 1.442695
        %v3167 = vpow.pop %v3166
        %v3168 = vmul.f32 %v3063, 1.442695
        %v3169 = vpow.pop %v3168
        %v3170 = vmul.f32 %v3064, 1.442695
        %v3171 = vpow.pop %v3170
        %v3172 = vmul.f32 %v3065, 1.442695
        %v3173 = vpow.pop %v3172
        %v3174 = vmul.f32 %v3066, 1.442695
        %v3175 = vpow.pop %v3174
        %v3176 = vmul.f32 %v3067, 1.442695
        %v3177 = vpow.pop %v3176
        %v3178 = vmul.f32 %v3068, 1.442695
        %v3179 = vpow.pop %v3178
        %v3180 = vmul.f32 %v3069, 1.442695
        %v3181 = vpow.pop %v3180
        %v3182 = vmul.f32 %v3070, 1.442695
        %v3183 = vpow.pop %v3182
        %v3184 = vmul.f32 %v3071, 1.442695
        %v3185 = vpow.pop %v3184
        %v3186 = vmul.f32 %v3072, 1.442695
        %v3187 = vpow.pop %v3186
        %v3188 = vmul.f32 %v3073, 1.442695
        %v3189 = vpow.pop %v3188
        %v3190 = vmul.f32 %v3074, 1.442695
        %v3191 = vpow.pop %v3190
        %v3192 = vmul.f32 %v3075, 1.442695
        %v3193 = vpow.pop %v3192
        %v3194 = vmul.f32 %v3076, 1.442695
        %v3195 = vpow.pop %v3194
        %v3196 = vmul.f32 %v3077, 1.442695
        %v3197 = vpow.pop %v3196
        %v3198 = vmul.f32 %v3078, 1.442695
        %v3199 = vpow.pop %v3198
        %v3200 = vmul.f32 %v3079, 1.442695
        %v3201 = vpow.pop %v3200
        %v3202 = vmul.f32 %v3080, 1.442695
        %v3203 = vpow.pop %v3202
        %v3204 = vmul.f32 %v3081, 1.442695
        %v3205 = vpow.pop %v3204
        %v3206 = vmul.f32 %v3082, 1.442695
        %v3207 = vpow.pop %v3206
        %v3208 = vmul.f32 %v3083, 1.442695
        %v3209 = vpow.pop %v3208
        %v3210 = vmul.f32 %v3084, 1.442695
        %v3211 = vpow.pop %v3210
        %v3212 = vmul.f32 %v3085, 1.442695
        %v3213 = vpow.pop %v3212
        %v3214 = vadd.f32 %v3087, 1.0
        %v3215 = vadd.f32 %v3089, 1.0
        %v3216 = vadd.f32 %v3091, 1.0
        %v3217 = vadd.f32 %v3093, 1.0
        %v3218 = vadd.f32 %v3095, 1.0
        %v3219 = vadd.f32 %v3097, 1.0
        %v3220 = vadd.f32 %v3099, 1.0
        %v3221 = vadd.f32 %v3101, 1.0
        %v3222 = vadd.f32 %v3103, 1.0
        %v3223 = vadd.f32 %v3105, 1.0
        %v3224 = vadd.f32 %v3107, 1.0
        %v3225 = vadd.f32 %v3109, 1.0
        %v3226 = vadd.f32 %v3111, 1.0
        %v3227 = vadd.f32 %v3113, 1.0
        %v3228 = vadd.f32 %v3115, 1.0
        %v3229 = vadd.f32 %v3117, 1.0
        %v3230 = vadd.f32 %v3119, 1.0
        %v3231 = vadd.f32 %v3121, 1.0
        %v3232 = vadd.f32 %v3123, 1.0
        %v3233 = vadd.f32 %v3125, 1.0
        %v3234 = vadd.f32 %v3127, 1.0
        %v3235 = vadd.f32 %v3129, 1.0
        %v3236 = vadd.f32 %v3131, 1.0
        %v3237 = vadd.f32 %v3133, 1.0
        %v3238 = vadd.f32 %v3135, 1.0
        %v3239 = vadd.f32 %v3137, 1.0
        %v3240 = vadd.f32 %v3139, 1.0
        %v3241 = vadd.f32 %v3141, 1.0
        %v3242 = vadd.f32 %v3143, 1.0
        %v3243 = vadd.f32 %v3145, 1.0
        %v3244 = vadd.f32 %v3147, 1.0
        %v3245 = vadd.f32 %v3149, 1.0
        %v3246 = vadd.f32 %v3151, 1.0
        %v3247 = vadd.f32 %v3153, 1.0
        %v3248 = vadd.f32 %v3155, 1.0
        %v3249 = vadd.f32 %v3157, 1.0
        %v3250 = vadd.f32 %v3159, 1.0
        %v3251 = vadd.f32 %v3161, 1.0
        %v3252 = vadd.f32 %v3163, 1.0
        %v3253 = vadd.f32 %v3165, 1.0
        %v3254 = vadd.f32 %v3167, 1.0
        %v3255 = vadd.f32 %v3169, 1.0
        %v3256 = vadd.f32 %v3171, 1.0
        %v3257 = vadd.f32 %v3173, 1.0
        %v3258 = vadd.f32 %v3175, 1.0
        %v3259 = vadd.f32 %v3177, 1.0
        %v3260 = vadd.f32 %v3179, 1.0
        %v3261 = vadd.f32 %v3181, 1.0
        %v3262 = vadd.f32 %v3183, 1.0
        %v3263 = vadd.f32 %v3185, 1.0
        %v3264 = vadd.f32 %v3187, 1.0
        %v3265 = vadd.f32 %v3189, 1.0
        %v3266 = vadd.f32 %v3191, 1.0
        %v3267 = vadd.f32 %v3193, 1.0
        %v3268 = vadd.f32 %v3195, 1.0
        %v3269 = vadd.f32 %v3197, 1.0
        %v3270 = vadd.f32 %v3199, 1.0
        %v3271 = vadd.f32 %v3201, 1.0
        %v3272 = vadd.f32 %v3203, 1.0
        %v3273 = vadd.f32 %v3205, 1.0
        %v3274 = vadd.f32 %v3207, 1.0
        %v3275 = vadd.f32 %v3209, 1.0
        %v3276 = vadd.f32 %v3211, 1.0
        %v3277 = vadd.f32 %v3213, 1.0
        %v3278 = vrcp.pop %v3214
        %v3279 = vmul.f32 1.0, %v3278
        %v3280 = vrcp.pop %v3215
        %v3281 = vmul.f32 1.0, %v3280
        %v3282 = vrcp.pop %v3216
        %v3283 = vmul.f32 1.0, %v3282
        %v3284 = vrcp.pop %v3217
        %v3285 = vmul.f32 1.0, %v3284
        %v3286 = vrcp.pop %v3218
        %v3287 = vmul.f32 1.0, %v3286
        %v3288 = vrcp.pop %v3219
        %v3289 = vmul.f32 1.0, %v3288
        %v3290 = vrcp.pop %v3220
        %v3291 = vmul.f32 1.0, %v3290
        %v3292 = vrcp.pop %v3221
        %v3293 = vmul.f32 1.0, %v3292
        %v3294 = vrcp.pop %v3222
        %v3295 = vmul.f32 1.0, %v3294
        %v3296 = vrcp.pop %v3223
        %v3297 = vmul.f32 1.0, %v3296
        %v3298 = vrcp.pop %v3224
        %v3299 = vmul.f32 1.0, %v3298
        %v3300 = vrcp.pop %v3225
        %v3301 = vmul.f32 1.0, %v3300
        %v3302 = vrcp.pop %v3226
        %v3303 = vmul.f32 1.0, %v3302
        %v3304 = vrcp.pop %v3227
        %v3305 = vmul.f32 1.0, %v3304
        %v3306 = vrcp.pop %v3228
        %v3307 = vmul.f32 1.0, %v3306
        %v3308 = vrcp.pop %v3229
        %v3309 = vmul.f32 1.0, %v3308
        %v3310 = vrcp.pop %v3230
        %v3311 = vmul.f32 1.0, %v3310
        %v3312 = vrcp.pop %v3231
        %v3313 = vmul.f32 1.0, %v3312
        %v3314 = vrcp.pop %v3232
        %v3315 = vmul.f32 1.0, %v3314
        %v3316 = vrcp.pop %v3233
        %v3317 = vmul.f32 1.0, %v3316
        %v3318 = vrcp.pop %v3234
        %v3319 = vmul.f32 1.0, %v3318
        %v3320 = vrcp.pop %v3235
        %v3321 = vmul.f32 1.0, %v3320
        %v3322 = vrcp.pop %v3236
        %v3323 = vmul.f32 1.0, %v3322
        %v3324 = vrcp.pop %v3237
        %v3325 = vmul.f32 1.0, %v3324
        %v3326 = vrcp.pop %v3238
        %v3327 = vmul.f32 1.0, %v3326
        %v3328 = vrcp.pop %v3239
        %v3329 = vmul.f32 1.0, %v3328
        %v3330 = vrcp.pop %v3240
        %v3331 = vmul.f32 1.0, %v3330
        %v3332 = vrcp.pop %v3241
        %v3333 = vmul.f32 1.0, %v3332
        %v3334 = vrcp.pop %v3242
        %v3335 = vmul.f32 1.0, %v3334
        %v3336 = vrcp.pop %v3243
        %v3337 = vmul.f32 1.0, %v3336
        %v3338 = vrcp.pop %v3244
        %v3339 = vmul.f32 1.0, %v3338
        %v3340 = vrcp.pop %v3245
        %v3341 = vmul.f32 1.0, %v3340
        %v3342 = vrcp.pop %v3246
        %v3343 = vmul.f32 1.0, %v3342
        %v3344 = vrcp.pop %v3247
        %v3345 = vmul.f32 1.0, %v3344
        %v3346 = vrcp.pop %v3248
        %v3347 = vmul.f32 1.0, %v3346
        %v3348 = vrcp.pop %v3249
        %v3349 = vmul.f32 1.0, %v3348
        %v3350 = vrcp.pop %v3250
        %v3351 = vmul.f32 1.0, %v3350
        %v3352 = vrcp.pop %v3251
        %v3353 = vmul.f32 1.0, %v3352
        %v3354 = vrcp.pop %v3252
        %v3355 = vmul.f32 1.0, %v3354
        %v3356 = vrcp.pop %v3253
        %v3357 = vmul.f32 1.0, %v3356
        %v3358 = vrcp.pop %v3254
        %v3359 = vmul.f32 1.0, %v3358
        %v3360 = vrcp.pop %v3255
        %v3361 = vmul.f32 1.0, %v3360
        %v3362 = vrcp.pop %v3256
        %v3363 = vmul.f32 1.0, %v3362
        %v3364 = vrcp.pop %v3257
        %v3365 = vmul.f32 1.0, %v3364
        %v3366 = vrcp.pop %v3258
        %v3367 = vmul.f32 1.0, %v3366
        %v3368 = vrcp.pop %v3259
        %v3369 = vmul.f32 1.0, %v3368
        %v3370 = vrcp.pop %v3260
        %v3371 = vmul.f32 1.0, %v3370
        %v3372 = vrcp.pop %v3261
        %v3373 = vmul.f32 1.0, %v3372
        %v3374 = vrcp.pop %v3262
        %v3375 = vmul.f32 1.0, %v3374
        %v3376 = vrcp.pop %v3263
        %v3377 = vmul.f32 1.0, %v3376
        %v3378 = vrcp.pop %v3264
        %v3379 = vmul.f32 1.0, %v3378
        %v3380 = vrcp.pop %v3265
        %v3381 = vmul.f32 1.0, %v3380
        %v3382 = vrcp.pop %v3266
        %v3383 = vmul.f32 1.0, %v3382
        %v3384 = vrcp.pop %v3267
        %v3385 = vmul.f32 1.0, %v3384
        %v3386 = vrcp.pop %v3268
        %v3387 = vmul.f32 1.0, %v3386
        %v3388 = vrcp.pop %v3269
        %v3389 = vmul.f32 1.0, %v3388
        %v3390 = vrcp.pop %v3270
        %v3391 = vmul.f32 1.0, %v3390
        %v3392 = vrcp.pop %v3271
        %v3393 = vmul.f32 1.0, %v3392
        %v3394 = vrcp.pop %v3272
        %v3395 = vmul.f32 1.0, %v3394
        %v3396 = vrcp.pop %v3273
        %v3397 = vmul.f32 1.0, %v3396
        %v3398 = vrcp.pop %v3274
        %v3399 = vmul.f32 1.0, %v3398
        %v3400 = vrcp.pop %v3275
        %v3401 = vmul.f32 1.0, %v3400
        %v3402 = vrcp.pop %v3276
        %v3403 = vmul.f32 1.0, %v3402
        %v3404 = vrcp.pop %v3277
        %v3405 = vmul.f32 1.0, %v3404
        %v3406 = vmul.f32 %v2958, %v3279
        %v3407 = vmul.f32 %v2959, %v3281
        %v3408 = vmul.f32 %v2960, %v3283
        %v3409 = vmul.f32 %v2961, %v3285
        %v3410 = vmul.f32 %v2962, %v3287
        %v3411 = vmul.f32 %v2963, %v3289
        %v3412 = vmul.f32 %v2964, %v3291
        %v3413 = vmul.f32 %v2965, %v3293
        %v3414 = vmul.f32 %v2966, %v3295
        %v3415 = vmul.f32 %v2967, %v3297
        %v3416 = vmul.f32 %v2968, %v3299
        %v3417 = vmul.f32 %v2969, %v3301
        %v3418 = vmul.f32 %v2970, %v3303
        %v3419 = vmul.f32 %v2971, %v3305
        %v3420 = vmul.f32 %v2972, %v3307
        %v3421 = vmul.f32 %v2973, %v3309
        %v3422 = vmul.f32 %v2974, %v3311
        %v3423 = vmul.f32 %v2975, %v3313
        %v3424 = vmul.f32 %v2976, %v3315
        %v3425 = vmul.f32 %v2977, %v3317
        %v3426 = vmul.f32 %v2978, %v3319
        %v3427 = vmul.f32 %v2979, %v3321
        %v3428 = vmul.f32 %v2980, %v3323
        %v3429 = vmul.f32 %v2981, %v3325
        %v3430 = vmul.f32 %v2982, %v3327
        %v3431 = vmul.f32 %v2983, %v3329
        %v3432 = vmul.f32 %v2984, %v3331
        %v3433 = vmul.f32 %v2985, %v3333
        %v3434 = vmul.f32 %v2986, %v3335
        %v3435 = vmul.f32 %v2987, %v3337
        %v3436 = vmul.f32 %v2988, %v3339
        %v3437 = vmul.f32 %v2989, %v3341
        %v3438 = vmul.f32 %v2990, %v3343
        %v3439 = vmul.f32 %v2991, %v3345
        %v3440 = vmul.f32 %v2992, %v3347
        %v3441 = vmul.f32 %v2993, %v3349
        %v3442 = vmul.f32 %v2994, %v3351
        %v3443 = vmul.f32 %v2995, %v3353
        %v3444 = vmul.f32 %v2996, %v3355
        %v3445 = vmul.f32 %v2997, %v3357
        %v3446 = vmul.f32 %v2998, %v3359
        %v3447 = vmul.f32 %v2999, %v3361
        %v3448 = vmul.f32 %v3000, %v3363
        %v3449 = vmul.f32 %v3001, %v3365
        %v3450 = vmul.f32 %v3002, %v3367
        %v3451 = vmul.f32 %v3003, %v3369
        %v3452 = vmul.f32 %v3004, %v3371
        %v3453 = vmul.f32 %v3005, %v3373
        %v3454 = vmul.f32 %v3006, %v3375
        %v3455 = vmul.f32 %v3007, %v3377
        %v3456 = vmul.f32 %v3008, %v3379
        %v3457 = vmul.f32 %v3009, %v3381
        %v3458 = vmul.f32 %v3010, %v3383
        %v3459 = vmul.f32 %v3011, %v3385
        %v3460 = vmul.f32 %v3012, %v3387
        %v3461 = vmul.f32 %v3013, %v3389
        %v3462 = vmul.f32 %v3014, %v3391
        %v3463 = vmul.f32 %v3015, %v3393
        %v3464 = vmul.f32 %v3016, %v3395
        %v3465 = vmul.f32 %v3017, %v3397
        %v3466 = vmul.f32 %v3018, %v3399
        %v3467 = vmul.f32 %v3019, %v3401
        %v3468 = vmul.f32 %v3020, %v3403
        %v3469 = vmul.f32 %v3021, %v3405
        %v3470 = vld [vmem:[%s8] sm:$0xf]
        %v3471 = vld [vmem:[%s8 + $0x4] sm:$0xf]
        %v3472 = vld [vmem:[%s8 + $0x8] sm:$0xf]
        %v3473 = vld [vmem:[%s8 + $0xc] sm:$0xf]
        %v3474 = vld [vmem:[%s8 + $0x10] sm:$0xf]
        %v3475 = vld [vmem:[%s8 + $0x14] sm:$0xf]
        %v3476 = vld [vmem:[%s8 + $0x18] sm:$0xf]
        %v3477 = vld [vmem:[%s8 + $0x1c] sm:$0xf]
        %v3478 = vld [vmem:[%s8 + $0x20] sm:$0xf]
        %v3479 = vld [vmem:[%s8 + $0x24] sm:$0xf]
        %v3480 = vld [vmem:[%s8 + $0x28] sm:$0xf]
        %v3481 = vld [vmem:[%s8 + $0x2c] sm:$0xf]
        %v3482 = vld [vmem:[%s8 + $0x30] sm:$0xf]
        %v3483 = vld [vmem:[%s8 + $0x34] sm:$0xf]
        %v3484 = vld [vmem:[%s8 + $0x38] sm:$0xf]
        %v3485 = vld [vmem:[%s8 + $0x3c] sm:$0xf]
        %v3486 = vpack.c.bf16 %v3407, %v3406
        %v3487 = vpack.c.bf16 %v3409, %v3408
        %v3488 = vpack.c.bf16 %v3411, %v3410
        %v3489 = vpack.c.bf16 %v3413, %v3412
        %v3490 = vpack.c.bf16 %v3415, %v3414
        %v3491 = vpack.c.bf16 %v3417, %v3416
        %v3492 = vpack.c.bf16 %v3419, %v3418
        %v3493 = vpack.c.bf16 %v3421, %v3420
        %v3494 = vpack.c.bf16 %v3423, %v3422
        %v3495 = vpack.c.bf16 %v3425, %v3424
        %v3496 = vpack.c.bf16 %v3427, %v3426
        %v3497 = vpack.c.bf16 %v3429, %v3428
        %v3498 = vpack.c.bf16 %v3431, %v3430
        %v3499 = vpack.c.bf16 %v3433, %v3432
        %v3500 = vpack.c.bf16 %v3435, %v3434
        %v3501 = vpack.c.bf16 %v3437, %v3436
        %v3502 = vpack.c.bf16 %v3439, %v3438
        %v3503 = vpack.c.bf16 %v3441, %v3440
        %v3504 = vpack.c.bf16 %v3443, %v3442
        %v3505 = vpack.c.bf16 %v3445, %v3444
        %v3506 = vpack.c.bf16 %v3447, %v3446
        %v3507 = vpack.c.bf16 %v3449, %v3448
        %v3508 = vpack.c.bf16 %v3451, %v3450
        %v3509 = vpack.c.bf16 %v3453, %v3452
        %v3510 = vpack.c.bf16 %v3455, %v3454
        %v3511 = vpack.c.bf16 %v3457, %v3456
        %v3512 = vpack.c.bf16 %v3459, %v3458
        %v3513 = vpack.c.bf16 %v3461, %v3460
        %v3514 = vpack.c.bf16 %v3463, %v3462
        %v3515 = vpack.c.bf16 %v3465, %v3464
        %v3516 = vpack.c.bf16 %v3467, %v3466
        %v3517 = vpack.c.bf16 %v3469, %v3468
        %v3518 = vld [vmem:[#allocation7] sm:$0x1]
        %3520 = vset.pattern.permute.xlu0 0
        %3521 = vperm.xlu0 %3520, %v3518
        %v3522 = vpop.permute.xlu0 %3521
        %v3524 = vlaneseq
        %v3525 = vshrl.u32 %v3524, 7
        %v3526 = vsub.s32 0, %v3525
        %v3527 = vrot.slane %v3522, %v3526
        %v3544 = vunpack.c.l.b16 %v3470
        %v3545 = vunpack.c.l.b16 %v3471
        %v3546 = vunpack.c.l.b16 %v3472
        %v3547 = vunpack.c.l.b16 %v3473
        %v3548 = vunpack.c.l.b16 %v3474
        %v3549 = vunpack.c.l.b16 %v3475
        %v3550 = vunpack.c.l.b16 %v3476
        %v3551 = vunpack.c.l.b16 %v3477
        %v3552 = vunpack.c.l.b16 %v3478
        %v3553 = vunpack.c.l.b16 %v3479
        %v3554 = vunpack.c.l.b16 %v3480
        %v3555 = vunpack.c.l.b16 %v3481
        %v3556 = vunpack.c.l.b16 %v3482
        %v3557 = vunpack.c.l.b16 %v3483
        %v3558 = vunpack.c.l.b16 %v3484
        %v3559 = vunpack.c.l.b16 %v3485
        %v3560 = vpack.c.b16 %v3545, %v3544
        %v3561 = vpack.c.b16 %v3547, %v3546
        %v3562 = vpack.c.b16 %v3549, %v3548
        %v3563 = vpack.c.b16 %v3551, %v3550
        %v3564 = vpack.c.b16 %v3553, %v3552
        %v3565 = vpack.c.b16 %v3555, %v3554
        %v3566 = vpack.c.b16 %v3557, %v3556
        %v3567 = vpack.c.b16 %v3559, %v3558
        %3576 = vxpose.xlu0.c.b16.start [1/8] %v3560, 128
        %3577 = vxpose.xlu0.c.b16.cont [2/8] %v3561, 128
        %3578 = vxpose.xlu0.c.b16.cont [3/8] %v3562, 128
        %3579 = vxpose.xlu0.c.b16.cont [4/8] %v3563, 128
        %3580 = vxpose.xlu0.c.b16.cont [5/8] %v3564, 128
        %3581 = vxpose.xlu0.c.b16.cont [6/8] %v3565, 128
        %3582 = vxpose.xlu0.c.b16.cont [7/8] %v3566, 128
        %3583 = vxpose.xlu0.c.b16.end [8/8] %v3567, 128
        %v3584 = vpop.trf.xlu0
        %v3585 = vpop.trf.xlu0
        %v3586 = vpop.trf.xlu0
        %v3587 = vpop.trf.xlu0
        %v3588 = vpop.trf.xlu0
        %v3589 = vpop.trf.xlu0
        %v3590 = vpop.trf.xlu0
        %v3591 = vpop.trf.xlu0
        %3592 = vmatprep.subr.bf16.mxu0 0
        %3593 = vmatpush1.bf16.xpose.msra.mxu0 %v3493
        %3594 = vmatprep.subr.bf16.mxu0 0
        %3595 = vmatpush1.bf16.xpose.msra.mxu0 %v3492
        %3596 = vmatprep.subr.bf16.mxu0 0
        %3597 = vmatpush1.bf16.xpose.msra.mxu0 %v3491
        %3598 = vmatprep.subr.bf16.mxu0 0
        %3599 = vmatpush1.bf16.xpose.msra.mxu0 %v3490
        %3600 = vmatprep.subr.bf16.mxu0 0
        %3601 = vmatpush1.bf16.xpose.msra.mxu0 %v3489
        %3602 = vmatprep.subr.bf16.mxu0 0
        %3603 = vmatpush1.bf16.xpose.msra.mxu0 %v3488
        %3604 = vmatprep.subr.bf16.mxu0 0
        %3605 = vmatpush1.bf16.xpose.msra.mxu0 %v3487
        %3606 = vmatprep.subr.bf16.mxu0 0
        %3607 = vmatpush1.bf16.xpose.msra.mxu0 %v3486
        %3608 = vmatprep.subr.bf16.mxu0 0
        %3609 = vmatpush2.bf16.xpose.msra.mxu0 %v3501
        %3610 = vmatprep.subr.bf16.mxu0 0
        %3611 = vmatpush2.bf16.xpose.msra.mxu0 %v3500
        %3612 = vmatprep.subr.bf16.mxu0 0
        %3613 = vmatpush2.bf16.xpose.msra.mxu0 %v3499
        %3614 = vmatprep.subr.bf16.mxu0 0
        %3615 = vmatpush2.bf16.xpose.msra.mxu0 %v3498
        %3616 = vmatprep.subr.bf16.mxu0 0
        %3617 = vmatpush2.bf16.xpose.msra.mxu0 %v3497
        %3618 = vmatprep.subr.bf16.mxu0 0
        %3619 = vmatpush2.bf16.xpose.msra.mxu0 %v3496
        %3620 = vmatprep.subr.bf16.mxu0 0
        %3621 = vmatpush2.bf16.xpose.msra.mxu0 %v3495
        %3622 = vmatprep.subr.bf16.mxu0 0
        %3623 = vmatpush2.bf16.xpose.msra.mxu0 %v3494
        %3624 = vmatprep.mubr.bf16.mxu0 0
        %3625 = vmatmul.mubr.bf16.gmra.mxu0 %v3584
        %v3626 = vpop.f32.mrf.mxu0
        %v3627 = vadd.f32 %v3527, %v3626
        %v3628 = vpop.f32.mrf.mxu0
        %v3629 = vadd.f32 %v3527, %v3628
        %v3630 = vpop.f32.mrf.mxu0
        %v3631 = vpop.f32.mrf.mxu0
        %3632 = vdwg.mxu0
        %3633 = vmatprep.subr.bf16.mxu0 0
        %3634 = vmatpush1.bf16.xpose.msra.mxu0 %v3509
        %3635 = vmatprep.subr.bf16.mxu0 0
        %3636 = vmatpush1.bf16.xpose.msra.mxu0 %v3508
        %3637 = vmatprep.subr.bf16.mxu0 0
        %3638 = vmatpush1.bf16.xpose.msra.mxu0 %v3507
        %3639 = vmatprep.subr.bf16.mxu0 0
        %3640 = vmatpush1.bf16.xpose.msra.mxu0 %v3506
        %3641 = vmatprep.subr.bf16.mxu0 0
        %3642 = vmatpush1.bf16.xpose.msra.mxu0 %v3505
        %3643 = vmatprep.subr.bf16.mxu0 0
        %3644 = vmatpush1.bf16.xpose.msra.mxu0 %v3504
        %3645 = vmatprep.subr.bf16.mxu0 0
        %3646 = vmatpush1.bf16.xpose.msra.mxu0 %v3503
        %3647 = vmatprep.subr.bf16.mxu0 0
        %3648 = vmatpush1.bf16.xpose.msra.mxu0 %v3502
        %3649 = vmatprep.subr.bf16.mxu0 0
        %3650 = vmatpush2.bf16.xpose.msra.mxu0 %v3517
        %3651 = vmatprep.subr.bf16.mxu0 0
        %3652 = vmatpush2.bf16.xpose.msra.mxu0 %v3516
        %3653 = vmatprep.subr.bf16.mxu0 0
        %3654 = vmatpush2.bf16.xpose.msra.mxu0 %v3515
        %3655 = vmatprep.subr.bf16.mxu0 0
        %3656 = vmatpush2.bf16.xpose.msra.mxu0 %v3514
        %3657 = vmatprep.subr.bf16.mxu0 0
        %3658 = vmatpush2.bf16.xpose.msra.mxu0 %v3513
        %3659 = vmatprep.subr.bf16.mxu0 0
        %3660 = vmatpush2.bf16.xpose.msra.mxu0 %v3512
        %3661 = vmatprep.subr.bf16.mxu0 0
        %3662 = vmatpush2.bf16.xpose.msra.mxu0 %v3511
        %3663 = vmatprep.subr.bf16.mxu0 0
        %3664 = vmatpush2.bf16.xpose.msra.mxu0 %v3510
        %3665 = vmatprep.mubr.bf16.mxu0 0
        %3666 = vmatmul.mubr.bf16.gmra.mxu0 %v3584
        %v3667 = vpop.f32.mrf.mxu0
        %v3668 = vadd.f32 %v3527, %v3667
        %v3669 = vpop.f32.mrf.mxu0
        %v3670 = vadd.f32 %v3527, %v3669
        %v3671 = vpop.f32.mrf.mxu0
        %v3672 = vpop.f32.mrf.mxu0
        %3673 = vdwg.mxu0
        %v3678 = vcombine.low %v3627, %v3629
        %v3679 = vcombine.low %v3668, %v3670
        %v3681 = vunpack.c.l.s4 1966171168
        %v3682 = vunpack.c.0.s8 %v3681
        %v3683 = vlaneseq
        %v3684 = vshrl.u32 %v3683, 7
        %v3685 = vsub.s32 %v3682, %v3684
        %v3686 = vrot.slane %v3678, %v3685
        %v3688 = vunpack.c.l.s4 1966171168
        %v3689 = vunpack.c.0.s8 %v3688
        %v3690 = vlaneseq
        %v3691 = vshrl.u32 %v3690, 7
        %v3692 = vsub.s32 %v3689, %v3691
        %v3693 = vrot.slane %v3679, %v3692
        %v3694 = vcombine.low %v3686, %v3693
        %v3696 = vunpack.c.l.s4 1966171168
        %v3697 = vunpack.c.0.s8 %v3696
        %v3698 = vlaneseq
        %v3699 = vshrl.u32 %v3698, 7
        %v3700 = vsub.s32 %v3697, %v3699
        %v3701 = vrot.slane %v3694, %v3700
        %v3703 = vlaneseq
        %vm3704 = vcmp.ge.s32.totalorder %v3703, 0
        %vm3705 = vcmp.lt.s32.totalorder %v3703, 512
        %vm3706 = vmand %vm3704, %vm3705
        %3707 = vst.msk [vmem:[%s499] sm:$0xf] %vm3706, %v3701
        %v3708 = vlaneseq
        %v3709 = vand.u32 %v3708, 127
        %v3710 = vadd.s32 %v3709, 128
        %v3711 = vadd.s32 %v3709, 256
        %v3712 = vadd.s32 %v3709, 384
        %s3713 = smul.u32 %s38, 512
        %v3714 = vstv %s3713
        %v3715 = vadd.s32 %v3709, %v3714
        %v3716 = vadd.s32 %v3710, %v3714
        %v3717 = vadd.s32 %v3711, %v3714
        %v3718 = vadd.s32 %v3712, %v3714
        %s3719 = sld [smem:[#allocation6]]
        %v3720 = vstv %s3719
        %vm3721 = vcmp.lt.s32.totalorder %v3715, %v3720
        %vm3722 = vcmp.lt.s32.totalorder %v3716, %v3720
        %vm3723 = vcmp.lt.s32.totalorder %v3717, %v3720
        %vm3724 = vcmp.lt.s32.totalorder %v3718, %v3720
        %v3725 = vsel %vm3721, %v3627, -1e+30
        %v3726 = vsel %vm3722, %v3629, -1e+30
        %v3727 = vsel %vm3723, %v3668, -1e+30
        %v3728 = vsel %vm3724, %v3670, -1e+30
        %v3729 = vld [vmem:[#allocation2] sm:$0x1]
        %vm3730 = vcmask 1040384
        %v3731 = vsel %vm3730, %v3725, -inf
        %v3732 = vsel %vm3730, %v3726, -inf
        %v3733 = vsel %vm3730, %v3727, -inf
        %v3734 = vsel %vm3730, %v3728, -inf
        %v3735 = vmax.f32 %v3731, %v3732
        %v3736 = vmax.f32 %v3733, %v3734
        %v3737 = vmax.f32 %v3735, %v3736
        %3738 = vmax.xlane.f32.xlu0 %v3737
        %v3739 = vpop.xlane.xlu0 %3738
        %v3740 = vmax.f32 %v3729, %v3739
        %v3741 = vsub.f32 %v3729, %v3740
        %v3742 = vmul.f32 %v3741, 1.442695
        %v3743 = vpow.pop %v3742
        %3745 = vset.pattern.permute.xlu0 0
        %3746 = vperm.xlu0 %3745, %v3740
        %v3747 = vpop.permute.xlu0 %3746
        %v3749 = vlaneseq
        %v3750 = vshrl.u32 %v3749, 7
        %v3751 = vsub.s32 0, %v3750
        %v3752 = vrot.slane %v3747, %v3751
        %v3753 = vsub.f32 %v3725, %v3752
        %v3754 = vsub.f32 %v3726, %v3752
        %v3755 = vsub.f32 %v3727, %v3752
        %v3756 = vsub.f32 %v3728, %v3752
        %v3757 = vmul.f32 %v3753, 1.442695
        %v3758 = vpow.pop %v3757
        %v3759 = vmul.f32 %v3754, 1.442695
        %v3760 = vpow.pop %v3759
        %v3761 = vmul.f32 %v3755, 1.442695
        %v3762 = vpow.pop %v3761
        %v3763 = vmul.f32 %v3756, 1.442695
        %v3764 = vpow.pop %v3763
        %v3765 = vld [vmem:[#allocation3] sm:$0x1]
        %v3766 = vmul.f32 %v3743, %v3765
        %v3767 = vsel %vm3730, %v3758, 0.0
        %v3768 = vsel %vm3730, %v3760, 0.0
        %v3769 = vadd.f32 %v3767, %v3768
        %v3770 = vsel %vm3730, %v3762, 0.0
        %v3771 = vadd.f32 %v3769, %v3770
        %v3772 = vsel %vm3730, %v3764, 0.0
        %v3773 = vadd.f32 %v3771, %v3772
        %3774 = vadd.xlane.f32.xlu0 %v3773
        %v3775 = vpop.xlane.xlu0 %3774
        %v3776 = vadd.f32 %v3766, %v3775
        %vm3777 = vcmask 0
        %3778 = vst.msk [vmem:[#allocation3] sm:$0x1] %vm3777, %v3776
        %3779 = vmatprep.subr.mxu0 %v2240
        %3780 = vmatpush1.msra.mxu0 %v2239
        %3781 = vmatprep.subr.mxu0 %v2238
        %3782 = vmatpush1.msra.mxu0 %v2237
        %3783 = vmatprep.subr.mxu0 %v2236
        %3784 = vmatpush1.msra.mxu0 %v2235
        %3785 = vmatprep.subr.mxu0 %v2234
        %3786 = vmatpush1.msra.mxu0 %v2233
        %3787 = vmatprep.subr.mxu0 %v2232
        %3788 = vmatpush1.msra.mxu0 %v2231
        %3789 = vmatprep.subr.mxu0 %v2230
        %3790 = vmatpush1.msra.mxu0 %v2229
        %3791 = vmatprep.subr.mxu0 %v2228
        %3792 = vmatpush1.msra.mxu0 %v2227
        %3793 = vmatprep.subr.mxu0 %v2226
        %3794 = vmatpush1.msra.mxu0 %v2225
        %3795 = vmatprep.subr.mxu0 %v2224
        %3796 = vmatpush1.msra.mxu0 %v2223
        %3797 = vmatprep.subr.mxu0 %v2222
        %3798 = vmatpush1.msra.mxu0 %v2221
        %3799 = vmatprep.subr.mxu0 %v2220
        %3800 = vmatpush1.msra.mxu0 %v2219
        %3801 = vmatprep.subr.mxu0 %v2218
        %3802 = vmatpush1.msra.mxu0 %v2217
        %3803 = vmatprep.subr.mxu0 %v2216
        %3804 = vmatpush1.msra.mxu0 %v2215
        %3805 = vmatprep.subr.mxu0 %v2214
        %3806 = vmatpush1.msra.mxu0 %v2213
        %3807 = vmatprep.subr.mxu0 %v2212
        %3808 = vmatpush1.msra.mxu0 %v2211
        %3809 = vmatprep.subr.mxu0 %v2210
        %3810 = vmatpush1.msra.mxu0 %v2209
        %3811 = vmatprep.subr.mxu0 %v2272
        %3812 = vmatpush2.msra.mxu0 %v2271
        %3813 = vmatprep.subr.mxu0 %v2270
        %3814 = vmatpush2.msra.mxu0 %v2269
        %3815 = vmatprep.subr.mxu0 %v2268
        %3816 = vmatpush2.msra.mxu0 %v2267
        %3817 = vmatprep.subr.mxu0 %v2266
        %3818 = vmatpush2.msra.mxu0 %v2265
        %3819 = vmatprep.subr.mxu0 %v2264
        %3820 = vmatpush2.msra.mxu0 %v2263
        %3821 = vmatprep.subr.mxu0 %v2262
        %3822 = vmatpush2.msra.mxu0 %v2261
        %3823 = vmatprep.subr.mxu0 %v2260
        %3824 = vmatpush2.msra.mxu0 %v2259
        %3825 = vmatprep.subr.mxu0 %v2258
        %3826 = vmatpush2.msra.mxu0 %v2257
        %3827 = vmatprep.subr.mxu0 %v2256
        %3828 = vmatpush2.msra.mxu0 %v2255
        %3829 = vmatprep.subr.mxu0 %v2254
        %3830 = vmatpush2.msra.mxu0 %v2253
        %3831 = vmatprep.subr.mxu0 %v2252
        %3832 = vmatpush2.msra.mxu0 %v2251
        %3833 = vmatprep.subr.mxu0 %v2250
        %3834 = vmatpush2.msra.mxu0 %v2249
        %3835 = vmatprep.subr.mxu0 %v2248
        %3836 = vmatpush2.msra.mxu0 %v2247
        %3837 = vmatprep.subr.mxu0 %v2246
        %3838 = vmatpush2.msra.mxu0 %v2245
        %3839 = vmatprep.subr.mxu0 %v2244
        %3840 = vmatpush2.msra.mxu0 %v2243
        %3841 = vmatprep.subr.mxu0 %v2242
        %3842 = vmatpush2.msra.mxu0 %v2241
        %3843 = vmatprep.mubr.f32.mxu0 %v3760
        %3844 = vmatmul.mubr.f32.gmra.mxu0 %v3758
        %v3845 = vpop.f32.mrf.mxu0
        %v3846 = vadd.f32 0.0, %v3845
        %v3847 = vpop.f32.mrf.mxu0
        %v3848 = vadd.f32 0.0, %v3847
        %3849 = vdwg.mxu0
        %3850 = vmatprep.subr.mxu0 %v2304
        %3851 = vmatpush1.msra.mxu0 %v2303
        %3852 = vmatprep.subr.mxu0 %v2302
        %3853 = vmatpush1.msra.mxu0 %v2301
        %3854 = vmatprep.subr.mxu0 %v2300
        %3855 = vmatpush1.msra.mxu0 %v2299
        %3856 = vmatprep.subr.mxu0 %v2298
        %3857 = vmatpush1.msra.mxu0 %v2297
        %3858 = vmatprep.subr.mxu0 %v2296
        %3859 = vmatpush1.msra.mxu0 %v2295
        %3860 = vmatprep.subr.mxu0 %v2294
        %3861 = vmatpush1.msra.mxu0 %v2293
        %3862 = vmatprep.subr.mxu0 %v2292
        %3863 = vmatpush1.msra.mxu0 %v2291
        %3864 = vmatprep.subr.mxu0 %v2290
        %3865 = vmatpush1.msra.mxu0 %v2289
        %3866 = vmatprep.subr.mxu0 %v2288
        %3867 = vmatpush1.msra.mxu0 %v2287
        %3868 = vmatprep.subr.mxu0 %v2286
        %3869 = vmatpush1.msra.mxu0 %v2285
        %3870 = vmatprep.subr.mxu0 %v2284
        %3871 = vmatpush1.msra.mxu0 %v2283
        %3872 = vmatprep.subr.mxu0 %v2282
        %3873 = vmatpush1.msra.mxu0 %v2281
        %3874 = vmatprep.subr.mxu0 %v2280
        %3875 = vmatpush1.msra.mxu0 %v2279
        %3876 = vmatprep.subr.mxu0 %v2278
        %3877 = vmatpush1.msra.mxu0 %v2277
        %3878 = vmatprep.subr.mxu0 %v2276
        %3879 = vmatpush1.msra.mxu0 %v2275
        %3880 = vmatprep.subr.mxu0 %v2274
        %3881 = vmatpush1.msra.mxu0 %v2273
        %3882 = vmatprep.subr.mxu0 %v2336
        %3883 = vmatpush2.msra.mxu0 %v2335
        %3884 = vmatprep.subr.mxu0 %v2334
        %3885 = vmatpush2.msra.mxu0 %v2333
        %3886 = vmatprep.subr.mxu0 %v2332
        %3887 = vmatpush2.msra.mxu0 %v2331
        %3888 = vmatprep.subr.mxu0 %v2330
        %3889 = vmatpush2.msra.mxu0 %v2329
        %3890 = vmatprep.subr.mxu0 %v2328
        %3891 = vmatpush2.msra.mxu0 %v2327
        %3892 = vmatprep.subr.mxu0 %v2326
        %3893 = vmatpush2.msra.mxu0 %v2325
        %3894 = vmatprep.subr.mxu0 %v2324
        %3895 = vmatpush2.msra.mxu0 %v2323
        %3896 = vmatprep.subr.mxu0 %v2322
        %3897 = vmatpush2.msra.mxu0 %v2321
        %3898 = vmatprep.subr.mxu0 %v2320
        %3899 = vmatpush2.msra.mxu0 %v2319
        %3900 = vmatprep.subr.mxu0 %v2318
        %3901 = vmatpush2.msra.mxu0 %v2317
        %3902 = vmatprep.subr.mxu0 %v2316
        %3903 = vmatpush2.msra.mxu0 %v2315
        %3904 = vmatprep.subr.mxu0 %v2314
        %3905 = vmatpush2.msra.mxu0 %v2313
        %3906 = vmatprep.subr.mxu0 %v2312
        %3907 = vmatpush2.msra.mxu0 %v2311
        %3908 = vmatprep.subr.mxu0 %v2310
        %3909 = vmatpush2.msra.mxu0 %v2309
        %3910 = vmatprep.subr.mxu0 %v2308
        %3911 = vmatpush2.msra.mxu0 %v2307
        %3912 = vmatprep.subr.mxu0 %v2306
        %3913 = vmatpush2.msra.mxu0 %v2305
        %3914 = vmatprep.mubr.f32.mxu0 %v3764
        %3915 = vmatmul.mubr.f32.gmra.mxu0 %v3762
        %v3916 = vpop.f32.mrf.mxu0
        %v3917 = vadd.f32 %v3846, %v3916
        %v3918 = vpop.f32.mrf.mxu0
        %v3919 = vadd.f32 %v3848, %v3918
        %3920 = vdwg.mxu0
        %v3921 = vld [vmem:[#allocation4] sm:$0x3]
        %3923 = vset.pattern.permute.xlu0 0
        %3924 = vperm.xlu0 %3923, %v3743
        %v3925 = vpop.permute.xlu0 %3924
        %v3927 = vlaneseq
        %v3928 = vshrl.u32 %v3927, 7
        %v3929 = vsub.s32 0, %v3928
        %v3930 = vrot.slane %v3925, %v3929
        %v3931 = vmul.f32 %v3930, %v3921
        %v3934 = vcombine.low %v3917, %v3919
        %v3936 = vunpack.c.l.s4 1966171168
        %v3937 = vunpack.c.0.s8 %v3936
        %v3938 = vlaneseq
        %v3939 = vshrl.u32 %v3938, 7
        %v3940 = vsub.s32 %v3937, %v3939
        %v3941 = vrot.slane %v3934, %v3940
        %v3943 = vunpack.c.l.s4 1966171168
        %v3944 = vunpack.c.0.s8 %v3943
        %v3945 = vlaneseq
        %v3946 = vshrl.u32 %v3945, 7
        %v3947 = vsub.s32 %v3944, %v3946
        %v3948 = vrot.slane %v3941, %v3947
        %v3950 = vadd.f32 %v3931, %v3948
        %vm3951 = vcmp.lt.s32.totalorder %v3703, 256
        %vm3952 = vmand %vm3704, %vm3951
        %3953 = vst.msk [vmem:[#allocation4] sm:$0x3] %vm3952, %v3950
        %3954 = vst.msk [vmem:[#allocation2] sm:$0x1] %vm3777, %v3740
        %p3955 = scmp.eq.s32.totalorder %s38, 1
        // Predicated region
        $region85: #{tpu_custom_call.1} parent=63 // pred_check
          %p3956 = pneg %p3955
        $region86: #{tpu_custom_call.1} parent=63 // pred_check_branch
          %3958 = sbr.rel (%p3956) target = $region88
        $region87: #{tpu_custom_call.1} parent=63 // pred_region
          %v3959 = vld [vmem:[#allocation4] sm:$0x3]
          %v3960 = vld [vmem:[#allocation3] sm:$0x1]
          %v3961 = vrcp.pop %v3960
          %3963 = vset.pattern.permute.xlu0 0
          %3964 = vperm.xlu0 %3963, %v3961
          %v3965 = vpop.permute.xlu0 %3964
          %v3967 = vlaneseq
          %v3968 = vshrl.u32 %v3967, 7
          %v3969 = vsub.s32 0, %v3968
          %v3970 = vrot.slane %v3965, %v3969
          %v3971 = vmul.f32 %v3959, %v3970
          %v3973 = vlaneseq
          %v3974 = vshrl.u32 %v3973, 7
          %v3975 = vsub.s32 0, %v3974
          %v3976 = vrot.slane %v3971, %v3975
          %v3977 = vlaneseq
          %v3978 = vshrl.u32 %v3977, 7
          %v3979 = vsub.s32 1, %v3978
          %v3980 = vrot.slane %v3971, %v3979
          %v3983 = vpack.c.bf16 %v3976, %v3976
          %v3984 = vpack.c.bf16 %v3980, %v3980
          %v3985 = vld [vmem:[%s10] sm:$0xf]
          %v3986 = vld [vmem:[%s10 + $0x4] sm:$0xf]
          %v3987 = vld [vmem:[%s10 + $0x8] sm:$0xf]
          %v3988 = vld [vmem:[%s10 + $0xc] sm:$0xf]
          %v3989 = vld [vmem:[%s10 + $0x10] sm:$0xf]
          %v3990 = vld [vmem:[%s10 + $0x14] sm:$0xf]
          %v3991 = vld [vmem:[%s10 + $0x18] sm:$0xf]
          %v3992 = vld [vmem:[%s10 + $0x1c] sm:$0xf]
          %v3993 = vld [vmem:[%s10 + $0x20] sm:$0xf]
          %v3994 = vld [vmem:[%s10 + $0x24] sm:$0xf]
          %v3995 = vld [vmem:[%s10 + $0x28] sm:$0xf]
          %v3996 = vld [vmem:[%s10 + $0x2c] sm:$0xf]
          %v3997 = vld [vmem:[%s10 + $0x30] sm:$0xf]
          %v3998 = vld [vmem:[%s10 + $0x34] sm:$0xf]
          %v3999 = vld [vmem:[%s10 + $0x38] sm:$0xf]
          %v4000 = vld [vmem:[%s10 + $0x3c] sm:$0xf]
          %v4001 = vld [vmem:[%s10 + $0x40] sm:$0xf]
          %v4002 = vld [vmem:[%s10 + $0x44] sm:$0xf]
          %v4003 = vld [vmem:[%s10 + $0x48] sm:$0xf]
          %v4004 = vld [vmem:[%s10 + $0x4c] sm:$0xf]
          %v4005 = vld [vmem:[%s10 + $0x50] sm:$0xf]
          %v4006 = vld [vmem:[%s10 + $0x54] sm:$0xf]
          %v4007 = vld [vmem:[%s10 + $0x58] sm:$0xf]
          %v4008 = vld [vmem:[%s10 + $0x5c] sm:$0xf]
          %v4009 = vld [vmem:[%s10 + $0x60] sm:$0xf]
          %v4010 = vld [vmem:[%s10 + $0x64] sm:$0xf]
          %v4011 = vld [vmem:[%s10 + $0x68] sm:$0xf]
          %v4012 = vld [vmem:[%s10 + $0x6c] sm:$0xf]
          %v4013 = vld [vmem:[%s10 + $0x70] sm:$0xf]
          %v4014 = vld [vmem:[%s10 + $0x74] sm:$0xf]
          %v4015 = vld [vmem:[%s10 + $0x78] sm:$0xf]
          %v4016 = vld [vmem:[%s10 + $0x7c] sm:$0xf]
          %v4017 = vld [vmem:[%s11] sm:$0x1]
          %v4050 = vunpack.c.l.b16 %v3985
          %v4051 = vunpack.c.l.b16 %v3986
          %v4052 = vunpack.c.l.b16 %v3987
          %v4053 = vunpack.c.l.b16 %v3988
          %v4054 = vunpack.c.l.b16 %v3989
          %v4055 = vunpack.c.l.b16 %v3990
          %v4056 = vunpack.c.l.b16 %v3991
          %v4057 = vunpack.c.l.b16 %v3992
          %v4058 = vunpack.c.l.b16 %v3993
          %v4059 = vunpack.c.l.b16 %v3994
          %v4060 = vunpack.c.l.b16 %v3995
          %v4061 = vunpack.c.l.b16 %v3996
          %v4062 = vunpack.c.l.b16 %v3997
          %v4063 = vunpack.c.l.b16 %v3998
          %v4064 = vunpack.c.l.b16 %v3999
          %v4065 = vunpack.c.l.b16 %v4000
          %v4066 = vunpack.c.l.b16 %v4001
          %v4067 = vunpack.c.l.b16 %v4002
          %v4068 = vunpack.c.l.b16 %v4003
          %v4069 = vunpack.c.l.b16 %v4004
          %v4070 = vunpack.c.l.b16 %v4005
          %v4071 = vunpack.c.l.b16 %v4006
          %v4072 = vunpack.c.l.b16 %v4007
          %v4073 = vunpack.c.l.b16 %v4008
          %v4074 = vunpack.c.l.b16 %v4009
          %v4075 = vunpack.c.l.b16 %v4010
          %v4076 = vunpack.c.l.b16 %v4011
          %v4077 = vunpack.c.l.b16 %v4012
          %v4078 = vunpack.c.l.b16 %v4013
          %v4079 = vunpack.c.l.b16 %v4014
          %v4080 = vunpack.c.l.b16 %v4015
          %v4081 = vunpack.c.l.b16 %v4016
          %v4082 = vpack.c.b16 %v4051, %v4050
          %v4083 = vpack.c.b16 %v4053, %v4052
          %v4084 = vpack.c.b16 %v4055, %v4054
          %v4085 = vpack.c.b16 %v4057, %v4056
          %v4086 = vpack.c.b16 %v4059, %v4058
          %v4087 = vpack.c.b16 %v4061, %v4060
          %v4088 = vpack.c.b16 %v4063, %v4062
          %v4089 = vpack.c.b16 %v4065, %v4064
          %v4090 = vpack.c.b16 %v4067, %v4066
          %v4091 = vpack.c.b16 %v4069, %v4068
          %v4092 = vpack.c.b16 %v4071, %v4070
          %v4093 = vpack.c.b16 %v4073, %v4072
          %v4094 = vpack.c.b16 %v4075, %v4074
          %v4095 = vpack.c.b16 %v4077, %v4076
          %v4096 = vpack.c.b16 %v4079, %v4078
          %v4097 = vpack.c.b16 %v4081, %v4080
          %4114 = vmatprep.subr.bf16.mxu0 0
          %4115 = vmatpush1.bf16.msra.mxu0 %v4089
          %4116 = vmatprep.subr.bf16.mxu0 0
          %4117 = vmatpush1.bf16.msra.mxu0 %v4088
          %4118 = vmatprep.subr.bf16.mxu0 0
          %4119 = vmatpush1.bf16.msra.mxu0 %v4087
          %4120 = vmatprep.subr.bf16.mxu0 0
          %4121 = vmatpush1.bf16.msra.mxu0 %v4086
          %4122 = vmatprep.subr.bf16.mxu0 0
          %4123 = vmatpush1.bf16.msra.mxu0 %v4085
          %4124 = vmatprep.subr.bf16.mxu0 0
          %4125 = vmatpush1.bf16.msra.mxu0 %v4084
          %4126 = vmatprep.subr.bf16.mxu0 0
          %4127 = vmatpush1.bf16.msra.mxu0 %v4083
          %4128 = vmatprep.subr.bf16.mxu0 0
          %4129 = vmatpush1.bf16.msra.mxu0 %v4082
          %4130 = vmatprep.subr.bf16.mxu0 0
          %4131 = vmatpush2.bf16.msra.mxu0 %v4097
          %4132 = vmatprep.subr.bf16.mxu0 0
          %4133 = vmatpush2.bf16.msra.mxu0 %v4096
          %4134 = vmatprep.subr.bf16.mxu0 0
          %4135 = vmatpush2.bf16.msra.mxu0 %v4095
          %4136 = vmatprep.subr.bf16.mxu0 0
          %4137 = vmatpush2.bf16.msra.mxu0 %v4094
          %4138 = vmatprep.subr.bf16.mxu0 0
          %4139 = vmatpush2.bf16.msra.mxu0 %v4093
          %4140 = vmatprep.subr.bf16.mxu0 0
          %4141 = vmatpush2.bf16.msra.mxu0 %v4092
          %4142 = vmatprep.subr.bf16.mxu0 0
          %4143 = vmatpush2.bf16.msra.mxu0 %v4091
          %4144 = vmatprep.subr.bf16.mxu0 0
          %4145 = vmatpush2.bf16.msra.mxu0 %v4090
          %4146 = vmatprep.mubr.bf16.mxu0 %v3984
          %4147 = vmatmul.mubr.bf16.gmra.mxu0 %v3983
          %v4148 = vpop.f32.mrf.mxu0
          %v4149 = vadd.f32 %v4017, %v4148
          %v4150 = vpop.f32.mrf.mxu0
          %v4151 = vpop.f32.mrf.mxu0
          %v4152 = vpop.f32.mrf.mxu0
          %4153 = vdwg.mxu0
          %vm4154 = vcmask 8192
          %4155 = vst.msk [vmem:[#allocation17] sm:$0x1] %vm4154, %v4149
          %v4156 = vsel %vm4154, %v4149, -inf
          %4157 = vmax.xlane.f32.xlu0 %v4156
          %v4158 = vpop.xlane.xlu0 %4157
          %v4159 = vsub.f32 %v4149, %v4158
          %v4160 = vmul.f32 %v4159, 1.442695
          %v4161 = vpow.pop %v4160
          %v4162 = vsel %vm4154, %v4161, 0.0
          %4163 = vadd.xlane.f32.xlu0 %v4162
          %v4164 = vpop.xlane.xlu0 %4163
          %v4165 = vrcp.pop %v4164
          %v4166 = vmul.f32 %v4161, %v4165
          %4167 = vst.msk [vmem:[#allocation19] sm:$0x1] %vm4154, %v4166
        $region88: #{tpu_custom_call.1} parent=63 // pred_fallthru
          _
        %s4168 = sand.u32 %s282, 1
        %s4169 = scalar_lea.sflag [#allocation10], %s4168
        %s4170 = sand.u32 %s282, 1
        %s4171 = smul.addr %s4170, 4
        %s4172 = scalar_lea.vmem [#allocation16], %s4171
        // Predicated region
        $region89: #{tpu_custom_call.1} parent=63 // pred_check
          %p4173 = pneg %p292
        $region90: #{tpu_custom_call.1} parent=63 // pred_check_branch
          %4175 = sbr.rel (%p4173) target = $region92
        $region91: #{tpu_custom_call.1} parent=63 // pred_region
          %s4176 = smul.u32 4, %s38
          %s4178 = ssub.s32 64, 64
          %4179 = vsyncadd %s4169, %s4178
          %s4180 = smul.addr %s4176, 16
          %s4181 = scalar_lea.hbm %s12, %s4180
          %s4183 = sshll.u32 %s4172, 4
          %s4184 = int_to_ptr.vmem [resolvable:$true] %s4183
          %4186 = dma.vmem_to_hbm [thread:$0]  %s4184, 64, %s4181, %s4169
        $region92: #{tpu_custom_call.1} parent=63 // pred_fallthru
          _
        // Predicated region
        $region93: #{tpu_custom_call.1} parent=63 // pred_check
          %p4187 = pneg %p313
        $region94: #{tpu_custom_call.1} parent=63 // pred_check_branch
          %4189 = sbr.rel (%p4187) target = $region96
        $region95: #{tpu_custom_call.1} parent=63 // pred_region
          %s4191 = ssub.s32 16, 16
          %4192 = vsyncadd [#allocation18], %s4191
          %s4194 = sshll.u32 [#allocation17], 4
          %s4195 = int_to_ptr.vmem [resolvable:$true] %s4194
          %4197 = dma.vmem_to_hbm [thread:$0]  %s4195, 16, %s13, [#allocation18]
        $region96: #{tpu_custom_call.1} parent=63 // pred_fallthru
          _
        // Predicated region
        $region97: #{tpu_custom_call.1} parent=63 // pred_check
          %p4198 = pneg %p334
        $region98: #{tpu_custom_call.1} parent=63 // pred_check_branch
          %4200 = sbr.rel (%p4198) target = $region100
        $region99: #{tpu_custom_call.1} parent=63 // pred_region
          %s4202 = ssub.s32 16, 16
          %4203 = vsyncadd [#allocation18], %s4202
          %s4205 = sshll.u32 [#allocation19], 4
          %s4206 = int_to_ptr.vmem [resolvable:$true] %s4205
          %4208 = dma.vmem_to_hbm [thread:$0]  %s4206, 16, %s14, [#allocation18]
        $region100: #{tpu_custom_call.1} parent=63 // pred_fallthru
          _
        // Predicated region
        $region101: #{tpu_custom_call.1} parent=63 // pred_check
          %p4209 = pneg %p313
        $region102: #{tpu_custom_call.1} parent=63 // pred_check_branch
          %4211 = sbr.rel (%p4209) target = $region104
        $region103: #{tpu_custom_call.1} parent=63 // pred_region
          %4212 = dma.done [#allocation18], 16
        $region104: #{tpu_custom_call.1} parent=63 // pred_fallthru
          _
        // Predicated region
        $region105: #{tpu_custom_call.1} parent=63 // pred_check
          %p4213 = pneg %p334
        $region106: #{tpu_custom_call.1} parent=63 // pred_check_branch
          %4215 = sbr.rel (%p4213) target = $region108
        $region107: #{tpu_custom_call.1} parent=63 // pred_region
          %4216 = dma.done [#allocation18], 16
        $region108: #{tpu_custom_call.1} parent=63 // pred_fallthru
          _
      $region64: #{tpu_custom_call.1} parent=5 // pred_fallthru
        _
      %p4217 = scmp.le.s32.totalorder 2, %s33
      // Predicated region
      $region109: #{tpu_custom_call.1} parent=5 // pred_check
        %p4218 = pneg %p4217
      $region110: #{tpu_custom_call.1} parent=5 // pred_check_branch
        %4220 = sbr.rel (%p4218) target = $region112
      $region111: #{tpu_custom_call.1} parent=5 // pred_region
        %s4221 = ssub.s32 %s33, 2
        // Predicated region
        $region113: #{tpu_custom_call.1} parent=111 // pred_check
          %p4222 = pneg %p298
        $region114: #{tpu_custom_call.1} parent=111 // pred_check_branch
          %4224 = sbr.rel (%p4222) target = $region116
        $region115: #{tpu_custom_call.1} parent=111 // pred_region
          %s4225 = sand.u32 %s283, 1
          %s4226 = scalar_lea.sflag [#allocation10], %s4225
          %s4227 = sand.u32 %s283, 1
          %s4228 = smul.addr %s4227, 4
          %s4229 = scalar_lea.vmem [#allocation16], %s4228
          %4230 = dma.done %s4226, 64
        $region116: #{tpu_custom_call.1} parent=111 // pred_fallthru
          _
      $region112: #{tpu_custom_call.1} parent=5 // pred_fallthru
        _
    $region6: #{tpu_custom_call.1} parent=1 // loop_footer
      %s37 = sadd.s32 1, %s33
    $region7: #{tpu_custom_call.1} parent=1 // loop_footer_branch
      %32 = sbr.rel target = $region3
    $region8: #{tpu_custom_call.1} parent=1 // loop_exit
      _
    %4231 = vsyncpa [#allocation9], 1
    %s4232 = scalar_lea.sflag [#allocation9], 1
    %4233 = vsyncpa %s4232, 1
    %4234 = vsyncpa [#allocation12], 1
    %4235 = vsyncpa [#allocation15], 1
    %4236 = vsyncpa [#allocation10], 1
    %s4237 = scalar_lea.sflag [#allocation10], 1
    %4238 = vsyncpa %s4237, 1
    %4239 = vsyncpa [#allocation18], 1

</llo_original>
